<compile_context>
chip_gen: v7x
topology: tpu7x:2x2x1
jax: 0.10.0
libtpu: 0.0.40
codegen_flags: <defaults>
</compile_context>

<pallas_src>
import math
import functools

import jax
import jax.numpy as jnp
from jax.experimental import pallas as pl
from jax.experimental.pallas import tpu as pltpu

NUM_HEADS = 8
ALPHA = 1.9
BETA = 1.9 * 4
GAMMA = 1.9 * 6
MASK_VALUE = -1e9  # additive mask for cross-window positions inside a packed tile


def _piecewise_index(rel, shift):
    """float32 re-implementation of the spec's piecewise_index (rel is integer-valued).

    Matches the provided PyTorch source exactly: |rel| <= 2*alpha -> sign(rel)
    (so rel == 0 -> 0), otherwise sign(rel) * min(round(log(|rel|/alpha) /
    log(gamma/alpha) * (beta - 2*alpha)), shift)."""
    rp_abs = jnp.abs(rel)
    mask = rp_abs <= 2.0 * ALPHA
    sgn = jnp.sign(rel)
    safe = jnp.maximum(rp_abs, 1e-6)  # avoid log(0) on lanes covered by `mask`
    y = sgn * jnp.minimum(
        jnp.round(jnp.log(safe / ALPHA) / math.log(GAMMA / ALPHA) * (BETA - 2.0 * ALPHA)),
        float(shift),
    )
    return jnp.where(mask, sgn, y)


def _packed_bias(coords, table, window_size, shift, g):
    """Relative-position bias packed into block-diagonal (G*ws, G*ws) tiles with
    the cross-window additive mask fused in.

    Returns (B_/g, H, g*ws, g*ws) bf16, lane-dense (last dim a multiple of 128
    when g*ws == 128)."""
    B, N, _ = coords.shape
    ws = window_size
    B_ = B * (N // ws)
    cw = coords.reshape(B_, ws, 2).astype(jnp.float32)
    rel = cw[:, :, None, :] - cw[:, None, :, :]                     # (B_, ws, ws, 2)
    idx = (jnp.abs(_piecewise_index(rel[..., 0], shift))
           + jnp.abs(_piecewise_index(rel[..., 1], shift)))          # ints in [0, 2*shift]
    idx = jnp.round(idx).astype(jnp.int32)
    bias = table[idx]                                                # (B_, ws, ws, H) f32

    n_tiles = B_ // g
    gw = g * ws
    bias = bias.reshape(n_tiles, g, ws, ws, NUM_HEADS)
    eye = jnp.eye(g, dtype=bias.dtype)
    # packed[t, h, g*ws+i, k*ws+j] = bias[t, g, i, j, h] if g == k else 0
    packed = jnp.einsum('tgijh,gk->thgikj', bias, eye)
    packed = packed.reshape(n_tiles, NUM_HEADS, gw, gw)
    # Fuse the block-diagonal window mask (off-diagonal blocks -> MASK_VALUE).
    blockdiag = jnp.kron(jnp.eye(g, dtype=jnp.float32),
                         jnp.ones((ws, ws), jnp.float32))             # (gw, gw)
    packed = packed + (1.0 - blockdiag) * MASK_VALUE
    return packed.astype(jnp.bfloat16)


def _window_attn_kernel(x_ref, bias_ref, wq_ref, wk_ref, wv_ref,
                        bq_ref, bk_ref, bv_ref, wproj_ref, bproj_ref,
                        o_ref, acc_ref, *, n_win, n_tiles, ws, dim):
    hd = dim // NUM_HEADS
    gw = (n_win // n_tiles) * ws          # packed tile width (windows-per-tile * ws)
    rows = n_win * ws

    # --- projections: three (rows, C) x (C, C) bf16 GEMMs, f32 accum, bf16 out ---
    x = x_ref[...].reshape(rows, dim)     # already bf16 (cast in the wrapper)
    q = (jnp.dot(x, wq_ref[...], preferred_element_type=jnp.float32)
         + bq_ref[...]).astype(jnp.bfloat16)            # softmax scale folded into wq/bq
    k = (jnp.dot(x, wk_ref[...], preferred_element_type=jnp.float32)
         + bk_ref[...]).astype(jnp.bfloat16)
    v = (jnp.dot(x, wv_ref[...], preferred_element_type=jnp.float32)
         + bv_ref[...]).astype(jnp.bfloat16)

    # Heads are processed in groups whose combined lane width is >= 128 so the
    # scratch stores stay lane-dense.
    hpg = max(1, min(NUM_HEADS, 128 // hd)) if hd < 128 else 1
    while NUM_HEADS % hpg:
        hpg -= 1

    for g0 in range(0, NUM_HEADS, hpg):
        grp_outs = []
        for h in range(g0, g0 + hpg):
            sl = slice(h * hd, (h + 1) * hd)
            q_h = q[:, sl].reshape(n_tiles, gw, hd)
            k_h = k[:, sl].reshape(n_tiles, gw, hd)
            v_h = v[:, sl].reshape(n_tiles, gw, hd)

            # Packed (gw x gw) scores on the MXU; block-diag bias + window mask.
            s = jnp.einsum('tqd,tkd->tqk', q_h, k_h,
                           preferred_element_type=jnp.float32)        # (T, gw, gw)
            s = s + bias_ref[:, h].astype(jnp.float32)

            # softmax over keys (lane axis); masked (cross-window) lanes -> 0.
            s = s - jnp.max(s, axis=-1, keepdims=True)
            p = jnp.exp(s)
            p = p / jnp.sum(p, axis=-1, keepdims=True)                # exact division
            # attn_drop: identity in eval mode

            o_h = jnp.einsum('tqk,tkd->tqd', p.astype(jnp.bfloat16), v_h,
                             preferred_element_type=jnp.float32)       # (T, gw, hd)
            grp_outs.append(o_h.reshape(rows, hd).astype(jnp.bfloat16))

        grp = grp_outs[0] if len(grp_outs) == 1 else jnp.concatenate(grp_outs, axis=-1)
        acc_ref[:, g0 * hd:(g0 + hpg) * hd] = grp        # bf16 scratch, lane-dense slice

    # --- output projection from the bf16 scratch: (rows, C) x (C, C) ---
    y = jnp.dot(acc_ref[...], wproj_ref[...],
                preferred_element_type=jnp.float32) + bproj_ref[...]
    # proj_drop: identity in eval mode
    o_ref[...] = y.reshape(n_win, ws, dim).astype(o_ref.dtype)        # lane-dense store


def _pick_group(n_windows, ws, pack_width=128):
    """Windows packed per attention tile: largest divisor of n_windows with
    g*ws <= pack_width (128 exactly fills v5e's MXU; half-fills v6e/v7x)."""
    g_max = max(1, pack_width // ws)
    g = 1
    for d in range(1, min(g_max, n_windows) + 1):
        if n_windows % d == 0:
            g = d
    return g


def _pick_windows_per_block(n_windows, ws, dim, g, vmem_budget):
    """Windows per grid step: multiple of g, divisor of n_windows, fitting the
    VMEM budget; prefer deep grids (>=4-8 steps) while keeping >=128-256 GEMM
    rows per step."""
    cands = sorted(w for w in range(g, n_windows + 1, g) if n_windows % w == 0)
    if not cands:
        return n_windows

    def fits(w):
        rows = w * ws
        gw = g * ws
        t = w // g
        blocks = 2 * (rows * dim * 2            # x block (bf16, double-buffered)
                      + rows * dim * 4          # out block (f32, double-buffered)
                      + t * NUM_HEADS * gw * gw * 2)   # packed bias (bf16)
        weights = 2 * (4 * dim * dim * 2 + 4 * dim * 4)
        scratch = rows * dim * 2
        interm = 4 * rows * dim * 4             # rough live q/k/v/score headroom
        return blocks + weights + scratch + interm <= vmem_budget

    ok_vmem = [w for w in cands if fits(w)] or cands[:1]
    steps = lambda w: n_windows // w
    for min_rows, min_steps in ((256, 8), (256, 4), (128, 4), (128, 2), (128, 1)):
        ok = [w for w in ok_vmem if w * ws >= min_rows and steps(w) >= min_steps]
        if ok:
            return min(ok)     # smallest block meeting the criteria => deepest grid
    return ok_vmem[-1]


def window_attention(x, coords, wqkv, bqkv, wproj, bproj, table, *,
                     window_size, windows_per_block=None, out_dtype=jnp.float32):
    B, N, C = x.shape
    assert N % window_size == 0 and C % NUM_HEADS == 0
    ws = window_size
    B_ = B * (N // ws)
    shift = int(math.isqrt(ws))
    assert table.shape == (2 * shift + 1, NUM_HEADS)
    hd = C // NUM_HEADS
    scale = hd ** (-0.5)

    g = _pick_group(B_, ws)
    gw = g * ws

    # Generation-aware VMEM limit (v5e/v6e: 128 MiB physical, v7x: 64 MiB).
    try:
        vmem_cap = int(pltpu.get_tpu_info().vmem_capacity_bytes)
    except Exception:  # pragma: no cover - conservative fallback
        vmem_cap = 64 * 1024 * 1024
    vmem_limit = int(min(0.75 * vmem_cap, 96 * 1024 * 1024))
    vmem_limit = max(vmem_limit, 32 * 1024 * 1024)
    vmem_budget = int(0.6 * vmem_limit)

    if windows_per_block is None:
        windows_per_block = _pick_windows_per_block(B_, ws, C, g, vmem_budget)
    W = windows_per_block
    assert W % g == 0 and B_ % W == 0, (B_, W, g)
    T = W // g
    grid = (B_ // W,)

    # bf16 activation streaming (review item 1).
    xw = x.reshape(B_, ws, C).astype(jnp.bfloat16)
    # Packed, masked relative-position bias (review items 2 & 9).
    bias = _packed_bias(coords, table, ws, shift, g)        # (B_//g, H, gw, gw) bf16

    # Parameter transforms (wrapper side): split QKV into q/k/v blocks and fold
    # the softmax scale into wq/bq (review item 4).
    wq = (wqkv[:, :C] * scale).astype(jnp.bfloat16)
    wk = wqkv[:, C:2 * C].astype(jnp.bfloat16)
    wv = wqkv[:, 2 * C:].astype(jnp.bfloat16)
    bqkv_f = bqkv.reshape(1, 3 * C).astype(jnp.float32)
    bq = bqkv_f[:, :C] * scale
    bk = bqkv_f[:, C:2 * C]
    bv = bqkv_f[:, 2 * C:]
    wproj_b = wproj.astype(jnp.bfloat16)
    bproj_f = bproj.reshape(1, C).astype(jnp.float32)

    kernel = functools.partial(_window_attn_kernel, n_win=W, n_tiles=T, ws=ws, dim=C)

    rows_total = B_ * ws
    cost = pl.CostEstimate(
        flops=(2 * rows_total * C * 3 * C                         # q/k/v GEMMs
               + 2 * 2 * rows_total * gw * hd * NUM_HEADS         # packed QK^T + PV
               + 2 * rows_total * C * C),                         # proj GEMM
        transcendentals=rows_total * gw * NUM_HEADS,
        bytes_accessed=(xw.size * 2 + rows_total * C * 4 + bias.size * 2
                        + (wq.size + wk.size + wv.size + wproj_b.size) * 2
                        + (bqkv_f.size + bproj_f.size) * 4),
    )

    out = pl.pallas_call(
        kernel,
        out_shape=jax.ShapeDtypeStruct((B_, ws, C), out_dtype),
        grid_spec=pltpu.PrefetchScalarGridSpec(
            num_scalar_prefetch=0,
            grid=grid,
            in_specs=[
                pl.BlockSpec((W, ws, C), lambda i: (i, 0, 0)),                  # x (bf16)
                pl.BlockSpec((T, NUM_HEADS, gw, gw), lambda i: (i, 0, 0, 0)),   # bias+mask
                pl.BlockSpec((C, C), lambda i: (0, 0)),                         # wq (scaled)
                pl.BlockSpec((C, C), lambda i: (0, 0)),                         # wk
                pl.BlockSpec((C, C), lambda i: (0, 0)),                         # wv
                pl.BlockSpec((1, C), lambda i: (0, 0)),                         # bq (scaled)
                pl.BlockSpec((1, C), lambda i: (0, 0)),                         # bk
                pl.BlockSpec((1, C), lambda i: (0, 0)),                         # bv
                pl.BlockSpec((C, C), lambda i: (0, 0)),                         # wproj
                pl.BlockSpec((1, C), lambda i: (0, 0)),                         # bproj
            ],
            out_specs=pl.BlockSpec((W, ws, C), lambda i: (i, 0, 0)),
            scratch_shapes=[pltpu.VMEM((W * ws, C), jnp.bfloat16)],             # attn-out
        ),
        compiler_params=pltpu.CompilerParams(
            dimension_semantics=("parallel",),
            vmem_limit_bytes=vmem_limit,
        ),
        cost_estimate=cost,
    )(xw, bias, wq, wk, wv, bq, bk, bv, wproj_b, bproj_f)

    return out.reshape(B, N, C)


def reference_forward(x, coords, wqkv, bqkv, wproj, bproj, table, *, window_size):
    """Pure-JAX f32 reference mirroring the PyTorch forward (eval mode)."""
    B, N, C = x.shape
    B_ = B * (N // window_size)
    H = NUM_HEADS
    hd = C // H
    shift = int(math.isqrt(window_size))
    scale = hd ** (-0.5)

    xw = x.reshape(B_, window_size, C)
    cw = coords.reshape(B_, window_size, 2).astype(jnp.float32)

    qkv = xw @ wqkv + bqkv                                       # (B_, ws, 3C)
    qkv = qkv.reshape(B_, window_size, 3, H, hd).transpose(2, 0, 3, 1, 4)
    q, k, v = qkv[0], qkv[1], qkv[2]
    q = q * scale
    attn = jnp.einsum('bhqd,bhkd->bhqk', q, k)

    rel = cw[:, :, None, :] - cw[:, None, :, :]
    idx = (jnp.abs(_piecewise_index(rel[..., 0], shift))
           + jnp.abs(_piecewise_index(rel[..., 1], shift)))
    bias = table[jnp.round(idx).astype(jnp.int32)]               # (B_, ws, ws, H)
    attn = attn + jnp.transpose(bias, (0, 3, 1, 2))
    attn = jax.nn.softmax(attn, axis=-1)

    out = jnp.einsum('bhqk,bhkd->bhqd', attn, v)
    out = jnp.transpose(out, (0, 2, 1, 3)).reshape(B_, window_size, C)
    out = out @ wproj + bproj
    return out.reshape(B, N, C)


if __name__ == "__main__":
    # Small shapes consistent with the module: dim divisible by 8 heads,
    # N divisible by window_size, shift = int(sqrt(window_size)).
    B, NW, WS, C = 2, 16, 16, 128        # 2 batches, 16 windows of 16 tokens, dim=128
    N = NW * WS
    SHIFT = int(math.isqrt(WS))

    key = jax.random.PRNGKey(0)
    k0, k1, k2, k3, k4, k5, k6 = jax.random.split(key, 7)

    x = jax.random.normal(k0, (B, N, C), jnp.float32)
    coords = jax.random.randint(k1, (B, N, 2), 0, 30).astype(jnp.float32)

    # Deterministic synthetic parameters (module __init__ shapes).
    wqkv = 0.05 * jax.random.normal(k2, (C, 3 * C), jnp.float32)      # Linear(dim, 3*dim)
    bqkv = 0.02 * jax.random.normal(k3, (1, 3 * C), jnp.float32)
    wproj = 0.05 * jax.random.normal(k4, (C, C), jnp.float32)          # Linear(dim, dim)
    bproj = 0.02 * jax.random.normal(k5, (1, C), jnp.float32)
    table = 0.02 * jax.random.normal(k6, (2 * SHIFT + 1, NUM_HEADS), jnp.float32)

    out = window_attention(x, coords, wqkv, bqkv, wproj, bproj, table, window_size=WS)
    out = jax.block_until_ready(out)

    ref = reference_forward(x, coords, wqkv, bqkv, wproj, bproj, table, window_size=WS)
    max_err = float(jnp.max(jnp.abs(out - ref)))
    assert out.shape == (B, N, C)
    assert max_err < 3e-2, f"mismatch vs reference: {max_err}"

    print("KERNEL_OK")
</pallas_src>

<mosaic_0001>
module attributes {stable_mosaic.version = 11 : i64} {
  func.func @_window_attn_kernel(%arg0: i32, %arg1: memref<8x16x128xbf16, #tpu.memory_space<vmem>>, %arg2: memref<1x8x128x128xbf16, #tpu.memory_space<vmem>>, %arg3: memref<128x128xbf16, #tpu.memory_space<vmem>>, %arg4: memref<128x128xbf16, #tpu.memory_space<vmem>>, %arg5: memref<128x128xbf16, #tpu.memory_space<vmem>>, %arg6: memref<1x128xf32, #tpu.memory_space<vmem>>, %arg7: memref<1x128xf32, #tpu.memory_space<vmem>>, %arg8: memref<1x128xf32, #tpu.memory_space<vmem>>, %arg9: memref<128x128xbf16, #tpu.memory_space<vmem>>, %arg10: memref<1x128xf32, #tpu.memory_space<vmem>>, %arg11: memref<8x16x128xf32, #tpu.memory_space<vmem>>, %arg12: memref<128x128xbf16, #tpu.memory_space<vmem>>) attributes {dimension_semantics = [#tpu.dimension_semantics<parallel>], iteration_bounds = array<i64: 4>, scalar_prefetch = 0 : i64, scratch_operands = 1 : i64, tpu.core_type = #tpu.core_type<tc>, window_params = [{transform_indices = @transform_0, window_bounds = array<i64: 8, 16, 128>}, {transform_indices = @transform_1, window_bounds = array<i64: 1, 8, 128, 128>}, {pipeline_mode = #tpu.pipeline_mode<synchronous>, transform_indices = @transform_2, window_bounds = array<i64: 128, 128>}, {pipeline_mode = #tpu.pipeline_mode<synchronous>, transform_indices = @transform_3, window_bounds = array<i64: 128, 128>}, {pipeline_mode = #tpu.pipeline_mode<synchronous>, transform_indices = @transform_4, window_bounds = array<i64: 128, 128>}, {pipeline_mode = #tpu.pipeline_mode<synchronous>, transform_indices = @transform_5, window_bounds = array<i64: 1, 128>}, {pipeline_mode = #tpu.pipeline_mode<synchronous>, transform_indices = @transform_6, window_bounds = array<i64: 1, 128>}, {pipeline_mode = #tpu.pipeline_mode<synchronous>, transform_indices = @transform_7, window_bounds = array<i64: 1, 128>}, {pipeline_mode = #tpu.pipeline_mode<synchronous>, transform_indices = @transform_8, window_bounds = array<i64: 128, 128>}, {pipeline_mode = #tpu.pipeline_mode<synchronous>, transform_indices = @transform_9, window_bounds = array<i64: 1, 128>}, {transform_indices = @transform_10, window_bounds = array<i64: 8, 16, 128>}]} {
    %c0 = arith.constant 0 : index
    %c0_0 = arith.constant 0 : index
    %c0_1 = arith.constant 0 : index
    %0 = vector.load %arg1[%c0, %c0_0, %c0_1] : memref<8x16x128xbf16, #tpu.memory_space<vmem>>, vector<8x16x128xbf16>
    %1 = vector.shape_cast %0 : vector<8x16x128xbf16> to vector<128x128xbf16>
    %c0_2 = arith.constant 0 : index
    %c0_3 = arith.constant 0 : index
    %2 = vector.load %arg3[%c0_2, %c0_3] : memref<128x128xbf16, #tpu.memory_space<vmem>>, vector<128x128xbf16>
    %cst = arith.constant dense<0.000000e+00> : vector<128x128xf32>
    %3 = tpu.matmul %1, %2, %cst {dimension_numbers = #tpu.dot_dimension_numbers<[1], [0], [0], [1], [0, 0, 1, 1], [], []>} : vector<128x128xbf16>, vector<128x128xbf16>, vector<128x128xf32> -> vector<128x128xf32>
    %c0_4 = arith.constant 0 : index
    %c0_5 = arith.constant 0 : index
    %4 = vector.load %arg6[%c0_4, %c0_5] : memref<1x128xf32, #tpu.memory_space<vmem>>, vector<1x128xf32>
    %5 = vector.broadcast %4 : vector<1x128xf32> to vector<128x128xf32>
    %6 = arith.addf %3, %5 : vector<128x128xf32>
    %7 = arith.truncf %6 : vector<128x128xf32> to vector<128x128xbf16>
    %c0_6 = arith.constant 0 : index
    %c0_7 = arith.constant 0 : index
    %8 = vector.load %arg4[%c0_6, %c0_7] : memref<128x128xbf16, #tpu.memory_space<vmem>>, vector<128x128xbf16>
    %cst_8 = arith.constant dense<0.000000e+00> : vector<128x128xf32>
    %9 = tpu.matmul %1, %8, %cst_8 {dimension_numbers = #tpu.dot_dimension_numbers<[1], [0], [0], [1], [0, 0, 1, 1], [], []>} : vector<128x128xbf16>, vector<128x128xbf16>, vector<128x128xf32> -> vector<128x128xf32>
    %c0_9 = arith.constant 0 : index
    %c0_10 = arith.constant 0 : index
    %10 = vector.load %arg7[%c0_9, %c0_10] : memref<1x128xf32, #tpu.memory_space<vmem>>, vector<1x128xf32>
    %11 = vector.broadcast %10 : vector<1x128xf32> to vector<128x128xf32>
    %12 = arith.addf %9, %11 : vector<128x128xf32>
    %13 = arith.truncf %12 : vector<128x128xf32> to vector<128x128xbf16>
    %c0_11 = arith.constant 0 : index
    %c0_12 = arith.constant 0 : index
    %14 = vector.load %arg5[%c0_11, %c0_12] : memref<128x128xbf16, #tpu.memory_space<vmem>>, vector<128x128xbf16>
    %cst_13 = arith.constant dense<0.000000e+00> : vector<128x128xf32>
    %15 = tpu.matmul %1, %14, %cst_13 {dimension_numbers = #tpu.dot_dimension_numbers<[1], [0], [0], [1], [0, 0, 1, 1], [], []>} : vector<128x128xbf16>, vector<128x128xbf16>, vector<128x128xf32> -> vector<128x128xf32>
    %c0_14 = arith.constant 0 : index
    %c0_15 = arith.constant 0 : index
    %16 = vector.load %arg8[%c0_14, %c0_15] : memref<1x128xf32, #tpu.memory_space<vmem>>, vector<1x128xf32>
    %17 = vector.broadcast %16 : vector<1x128xf32> to vector<128x128xf32>
    %18 = arith.addf %15, %17 : vector<128x128xf32>
    %19 = arith.truncf %18 : vector<128x128xf32> to vector<128x128xbf16>
    %20 = vector.extract_strided_slice %7 {offsets = [0, 0], sizes = [128, 16], strides = [1, 1]} : vector<128x128xbf16> to vector<128x16xbf16>
    %21 = vector.shape_cast %20 : vector<128x16xbf16> to vector<1x128x16xbf16>
    %22 = vector.extract_strided_slice %13 {offsets = [0, 0], sizes = [128, 16], strides = [1, 1]} : vector<128x128xbf16> to vector<128x16xbf16>
    %23 = vector.shape_cast %22 : vector<128x16xbf16> to vector<1x128x16xbf16>
    %24 = vector.extract_strided_slice %19 {offsets = [0, 0], sizes = [128, 16], strides = [1, 1]} : vector<128x128xbf16> to vector<128x16xbf16>
    %25 = vector.shape_cast %24 : vector<128x16xbf16> to vector<1x128x16xbf16>
    "tpu.trace_start"() <{level = 10 : i32, message = "tqd,tkd->tqk"}> : () -> ()
    %cst_16 = arith.constant dense<0.000000e+00> : vector<1x128x128xf32>
    %26 = tpu.matmul %21, %23, %cst_16 {dimension_numbers = #tpu.dot_dimension_numbers<[2], [2], [1], [1], [0, 0, 0, 1, 1, 1], [0], [0]>} : vector<1x128x16xbf16>, vector<1x128x16xbf16>, vector<1x128x128xf32> -> vector<1x128x128xf32>
    "tpu.trace_stop"() : () -> ()
    %c0_17 = arith.constant 0 : index
    %c0_18 = arith.constant 0 : index
    %c0_19 = arith.constant 0 : index
    %c0_20 = arith.constant 0 : index
    %27 = vector.load %arg2[%c0_17, %c0_18, %c0_19, %c0_20] : memref<1x8x128x128xbf16, #tpu.memory_space<vmem>>, vector<1x1x128x128xbf16>
    %28 = vector.shape_cast %27 : vector<1x1x128x128xbf16> to vector<1x128x128xbf16>
    %29 = arith.extf %28 : vector<1x128x128xbf16> to vector<1x128x128xf32>
    %30 = arith.addf %26, %29 : vector<1x128x128xf32>
    %cst_21 = arith.constant dense<0xFF800000> : vector<1x128xf32>
    %31 = vector.multi_reduction <maximumf>, %30, %cst_21 [2] : vector<1x128x128xf32> to vector<1x128xf32>
    %32 = vector.shape_cast %31 : vector<1x128xf32> to vector<1x128x1xf32>
    %33 = vector.broadcast %32 : vector<1x128x1xf32> to vector<1x128x128xf32>
    %34 = arith.subf %30, %33 : vector<1x128x128xf32>
    %35 = math.exp %34 : vector<1x128x128xf32>
    %cst_22 = arith.constant dense<0.000000e+00> : vector<1x128xf32>
    %36 = vector.multi_reduction <add>, %35, %cst_22 [2] : vector<1x128x128xf32> to vector<1x128xf32>
    %37 = vector.shape_cast %36 : vector<1x128xf32> to vector<1x128x1xf32>
    %38 = vector.broadcast %37 : vector<1x128x1xf32> to vector<1x128x128xf32>
    %39 = arith.divf %35, %38 : vector<1x128x128xf32>
    %40 = arith.truncf %39 : vector<1x128x128xf32> to vector<1x128x128xbf16>
    "tpu.trace_start"() <{level = 10 : i32, message = "tqk,tkd->tqd"}> : () -> ()
    %cst_23 = arith.constant dense<0.000000e+00> : vector<1x128x16xf32>
    %41 = tpu.matmul %40, %25, %cst_23 {dimension_numbers = #tpu.dot_dimension_numbers<[2], [1], [1], [2], [0, 0, 0, 1, 1, 2], [0], [0]>} : vector<1x128x128xbf16>, vector<1x128x16xbf16>, vector<1x128x16xf32> -> vector<1x128x16xf32>
    "tpu.trace_stop"() : () -> ()
    %42 = vector.shape_cast %41 : vector<1x128x16xf32> to vector<128x16xf32>
    %43 = arith.truncf %42 : vector<128x16xf32> to vector<128x16xbf16>
    %44 = vector.extract_strided_slice %7 {offsets = [0, 16], sizes = [128, 16], strides = [1, 1]} : vector<128x128xbf16> to vector<128x16xbf16>
    %45 = vector.shape_cast %44 : vector<128x16xbf16> to vector<1x128x16xbf16>
    %46 = vector.extract_strided_slice %13 {offsets = [0, 16], sizes = [128, 16], strides = [1, 1]} : vector<128x128xbf16> to vector<128x16xbf16>
    %47 = vector.shape_cast %46 : vector<128x16xbf16> to vector<1x128x16xbf16>
    %48 = vector.extract_strided_slice %19 {offsets = [0, 16], sizes = [128, 16], strides = [1, 1]} : vector<128x128xbf16> to vector<128x16xbf16>
    %49 = vector.shape_cast %48 : vector<128x16xbf16> to vector<1x128x16xbf16>
    "tpu.trace_start"() <{level = 10 : i32, message = "tqd,tkd->tqk"}> : () -> ()
    %cst_24 = arith.constant dense<0.000000e+00> : vector<1x128x128xf32>
    %50 = tpu.matmul %45, %47, %cst_24 {dimension_numbers = #tpu.dot_dimension_numbers<[2], [2], [1], [1], [0, 0, 0, 1, 1, 1], [0], [0]>} : vector<1x128x16xbf16>, vector<1x128x16xbf16>, vector<1x128x128xf32> -> vector<1x128x128xf32>
    "tpu.trace_stop"() : () -> ()
    %c0_25 = arith.constant 0 : index
    %c1 = arith.constant 1 : index
    %c0_26 = arith.constant 0 : index
    %c0_27 = arith.constant 0 : index
    %51 = vector.load %arg2[%c0_25, %c1, %c0_26, %c0_27] : memref<1x8x128x128xbf16, #tpu.memory_space<vmem>>, vector<1x1x128x128xbf16>
    %52 = vector.shape_cast %51 : vector<1x1x128x128xbf16> to vector<1x128x128xbf16>
    %53 = arith.extf %52 : vector<1x128x128xbf16> to vector<1x128x128xf32>
    %54 = arith.addf %50, %53 : vector<1x128x128xf32>
    %cst_28 = arith.constant dense<0xFF800000> : vector<1x128xf32>
    %55 = vector.multi_reduction <maximumf>, %54, %cst_28 [2] : vector<1x128x128xf32> to vector<1x128xf32>
    %56 = vector.shape_cast %55 : vector<1x128xf32> to vector<1x128x1xf32>
    %57 = vector.broadcast %56 : vector<1x128x1xf32> to vector<1x128x128xf32>
    %58 = arith.subf %54, %57 : vector<1x128x128xf32>
    %59 = math.exp %58 : vector<1x128x128xf32>
    %cst_29 = arith.constant dense<0.000000e+00> : vector<1x128xf32>
    %60 = vector.multi_reduction <add>, %59, %cst_29 [2] : vector<1x128x128xf32> to vector<1x128xf32>
    %61 = vector.shape_cast %60 : vector<1x128xf32> to vector<1x128x1xf32>
    %62 = vector.broadcast %61 : vector<1x128x1xf32> to vector<1x128x128xf32>
    %63 = arith.divf %59, %62 : vector<1x128x128xf32>
    %64 = arith.truncf %63 : vector<1x128x128xf32> to vector<1x128x128xbf16>
    "tpu.trace_start"() <{level = 10 : i32, message = "tqk,tkd->tqd"}> : () -> ()
    %cst_30 = arith.constant dense<0.000000e+00> : vector<1x128x16xf32>
    %65 = tpu.matmul %64, %49, %cst_30 {dimension_numbers = #tpu.dot_dimension_numbers<[2], [1], [1], [2], [0, 0, 0, 1, 1, 2], [0], [0]>} : vector<1x128x128xbf16>, vector<1x128x16xbf16>, vector<1x128x16xf32> -> vector<1x128x16xf32>
    "tpu.trace_stop"() : () -> ()
    %66 = vector.shape_cast %65 : vector<1x128x16xf32> to vector<128x16xf32>
    %67 = arith.truncf %66 : vector<128x16xf32> to vector<128x16xbf16>
    %68 = vector.extract_strided_slice %7 {offsets = [0, 32], sizes = [128, 16], strides = [1, 1]} : vector<128x128xbf16> to vector<128x16xbf16>
    %69 = vector.shape_cast %68 : vector<128x16xbf16> to vector<1x128x16xbf16>
    %70 = vector.extract_strided_slice %13 {offsets = [0, 32], sizes = [128, 16], strides = [1, 1]} : vector<128x128xbf16> to vector<128x16xbf16>
    %71 = vector.shape_cast %70 : vector<128x16xbf16> to vector<1x128x16xbf16>
    %72 = vector.extract_strided_slice %19 {offsets = [0, 32], sizes = [128, 16], strides = [1, 1]} : vector<128x128xbf16> to vector<128x16xbf16>
    %73 = vector.shape_cast %72 : vector<128x16xbf16> to vector<1x128x16xbf16>
    "tpu.trace_start"() <{level = 10 : i32, message = "tqd,tkd->tqk"}> : () -> ()
    %cst_31 = arith.constant dense<0.000000e+00> : vector<1x128x128xf32>
    %74 = tpu.matmul %69, %71, %cst_31 {dimension_numbers = #tpu.dot_dimension_numbers<[2], [2], [1], [1], [0, 0, 0, 1, 1, 1], [0], [0]>} : vector<1x128x16xbf16>, vector<1x128x16xbf16>, vector<1x128x128xf32> -> vector<1x128x128xf32>
    "tpu.trace_stop"() : () -> ()
    %c0_32 = arith.constant 0 : index
    %c2 = arith.constant 2 : index
    %c0_33 = arith.constant 0 : index
    %c0_34 = arith.constant 0 : index
    %75 = vector.load %arg2[%c0_32, %c2, %c0_33, %c0_34] : memref<1x8x128x128xbf16, #tpu.memory_space<vmem>>, vector<1x1x128x128xbf16>
    %76 = vector.shape_cast %75 : vector<1x1x128x128xbf16> to vector<1x128x128xbf16>
    %77 = arith.extf %76 : vector<1x128x128xbf16> to vector<1x128x128xf32>
    %78 = arith.addf %74, %77 : vector<1x128x128xf32>
    %cst_35 = arith.constant dense<0xFF800000> : vector<1x128xf32>
    %79 = vector.multi_reduction <maximumf>, %78, %cst_35 [2] : vector<1x128x128xf32> to vector<1x128xf32>
    %80 = vector.shape_cast %79 : vector<1x128xf32> to vector<1x128x1xf32>
    %81 = vector.broadcast %80 : vector<1x128x1xf32> to vector<1x128x128xf32>
    %82 = arith.subf %78, %81 : vector<1x128x128xf32>
    %83 = math.exp %82 : vector<1x128x128xf32>
    %cst_36 = arith.constant dense<0.000000e+00> : vector<1x128xf32>
    %84 = vector.multi_reduction <add>, %83, %cst_36 [2] : vector<1x128x128xf32> to vector<1x128xf32>
    %85 = vector.shape_cast %84 : vector<1x128xf32> to vector<1x128x1xf32>
    %86 = vector.broadcast %85 : vector<1x128x1xf32> to vector<1x128x128xf32>
    %87 = arith.divf %83, %86 : vector<1x128x128xf32>
    %88 = arith.truncf %87 : vector<1x128x128xf32> to vector<1x128x128xbf16>
    "tpu.trace_start"() <{level = 10 : i32, message = "tqk,tkd->tqd"}> : () -> ()
    %cst_37 = arith.constant dense<0.000000e+00> : vector<1x128x16xf32>
    %89 = tpu.matmul %88, %73, %cst_37 {dimension_numbers = #tpu.dot_dimension_numbers<[2], [1], [1], [2], [0, 0, 0, 1, 1, 2], [0], [0]>} : vector<1x128x128xbf16>, vector<1x128x16xbf16>, vector<1x128x16xf32> -> vector<1x128x16xf32>
    "tpu.trace_stop"() : () -> ()
    %90 = vector.shape_cast %89 : vector<1x128x16xf32> to vector<128x16xf32>
    %91 = arith.truncf %90 : vector<128x16xf32> to vector<128x16xbf16>
    %92 = vector.extract_strided_slice %7 {offsets = [0, 48], sizes = [128, 16], strides = [1, 1]} : vector<128x128xbf16> to vector<128x16xbf16>
    %93 = vector.shape_cast %92 : vector<128x16xbf16> to vector<1x128x16xbf16>
    %94 = vector.extract_strided_slice %13 {offsets = [0, 48], sizes = [128, 16], strides = [1, 1]} : vector<128x128xbf16> to vector<128x16xbf16>
    %95 = vector.shape_cast %94 : vector<128x16xbf16> to vector<1x128x16xbf16>
    %96 = vector.extract_strided_slice %19 {offsets = [0, 48], sizes = [128, 16], strides = [1, 1]} : vector<128x128xbf16> to vector<128x16xbf16>
    %97 = vector.shape_cast %96 : vector<128x16xbf16> to vector<1x128x16xbf16>
    "tpu.trace_start"() <{level = 10 : i32, message = "tqd,tkd->tqk"}> : () -> ()
    %cst_38 = arith.constant dense<0.000000e+00> : vector<1x128x128xf32>
    %98 = tpu.matmul %93, %95, %cst_38 {dimension_numbers = #tpu.dot_dimension_numbers<[2], [2], [1], [1], [0, 0, 0, 1, 1, 1], [0], [0]>} : vector<1x128x16xbf16>, vector<1x128x16xbf16>, vector<1x128x128xf32> -> vector<1x128x128xf32>
    "tpu.trace_stop"() : () -> ()
    %c0_39 = arith.constant 0 : index
    %c3 = arith.constant 3 : index
    %c0_40 = arith.constant 0 : index
    %c0_41 = arith.constant 0 : index
    %99 = vector.load %arg2[%c0_39, %c3, %c0_40, %c0_41] : memref<1x8x128x128xbf16, #tpu.memory_space<vmem>>, vector<1x1x128x128xbf16>
    %100 = vector.shape_cast %99 : vector<1x1x128x128xbf16> to vector<1x128x128xbf16>
    %101 = arith.extf %100 : vector<1x128x128xbf16> to vector<1x128x128xf32>
    %102 = arith.addf %98, %101 : vector<1x128x128xf32>
    %cst_42 = arith.constant dense<0xFF800000> : vector<1x128xf32>
    %103 = vector.multi_reduction <maximumf>, %102, %cst_42 [2] : vector<1x128x128xf32> to vector<1x128xf32>
    %104 = vector.shape_cast %103 : vector<1x128xf32> to vector<1x128x1xf32>
    %105 = vector.broadcast %104 : vector<1x128x1xf32> to vector<1x128x128xf32>
    %106 = arith.subf %102, %105 : vector<1x128x128xf32>
    %107 = math.exp %106 : vector<1x128x128xf32>
    %cst_43 = arith.constant dense<0.000000e+00> : vector<1x128xf32>
    %108 = vector.multi_reduction <add>, %107, %cst_43 [2] : vector<1x128x128xf32> to vector<1x128xf32>
    %109 = vector.shape_cast %108 : vector<1x128xf32> to vector<1x128x1xf32>
    %110 = vector.broadcast %109 : vector<1x128x1xf32> to vector<1x128x128xf32>
    %111 = arith.divf %107, %110 : vector<1x128x128xf32>
    %112 = arith.truncf %111 : vector<1x128x128xf32> to vector<1x128x128xbf16>
    "tpu.trace_start"() <{level = 10 : i32, message = "tqk,tkd->tqd"}> : () -> ()
    %cst_44 = arith.constant dense<0.000000e+00> : vector<1x128x16xf32>
    %113 = tpu.matmul %112, %97, %cst_44 {dimension_numbers = #tpu.dot_dimension_numbers<[2], [1], [1], [2], [0, 0, 0, 1, 1, 2], [0], [0]>} : vector<1x128x128xbf16>, vector<1x128x16xbf16>, vector<1x128x16xf32> -> vector<1x128x16xf32>
    "tpu.trace_stop"() : () -> ()
    %114 = vector.shape_cast %113 : vector<1x128x16xf32> to vector<128x16xf32>
    %115 = arith.truncf %114 : vector<128x16xf32> to vector<128x16xbf16>
    %116 = vector.extract_strided_slice %7 {offsets = [0, 64], sizes = [128, 16], strides = [1, 1]} : vector<128x128xbf16> to vector<128x16xbf16>
    %117 = vector.shape_cast %116 : vector<128x16xbf16> to vector<1x128x16xbf16>
    %118 = vector.extract_strided_slice %13 {offsets = [0, 64], sizes = [128, 16], strides = [1, 1]} : vector<128x128xbf16> to vector<128x16xbf16>
    %119 = vector.shape_cast %118 : vector<128x16xbf16> to vector<1x128x16xbf16>
    %120 = vector.extract_strided_slice %19 {offsets = [0, 64], sizes = [128, 16], strides = [1, 1]} : vector<128x128xbf16> to vector<128x16xbf16>
    %121 = vector.shape_cast %120 : vector<128x16xbf16> to vector<1x128x16xbf16>
    "tpu.trace_start"() <{level = 10 : i32, message = "tqd,tkd->tqk"}> : () -> ()
    %cst_45 = arith.constant dense<0.000000e+00> : vector<1x128x128xf32>
    %122 = tpu.matmul %117, %119, %cst_45 {dimension_numbers = #tpu.dot_dimension_numbers<[2], [2], [1], [1], [0, 0, 0, 1, 1, 1], [0], [0]>} : vector<1x128x16xbf16>, vector<1x128x16xbf16>, vector<1x128x128xf32> -> vector<1x128x128xf32>
    "tpu.trace_stop"() : () -> ()
    %c0_46 = arith.constant 0 : index
    %c4 = arith.constant 4 : index
    %c0_47 = arith.constant 0 : index
    %c0_48 = arith.constant 0 : index
    %123 = vector.load %arg2[%c0_46, %c4, %c0_47, %c0_48] : memref<1x8x128x128xbf16, #tpu.memory_space<vmem>>, vector<1x1x128x128xbf16>
    %124 = vector.shape_cast %123 : vector<1x1x128x128xbf16> to vector<1x128x128xbf16>
    %125 = arith.extf %124 : vector<1x128x128xbf16> to vector<1x128x128xf32>
    %126 = arith.addf %122, %125 : vector<1x128x128xf32>
    %cst_49 = arith.constant dense<0xFF800000> : vector<1x128xf32>
    %127 = vector.multi_reduction <maximumf>, %126, %cst_49 [2] : vector<1x128x128xf32> to vector<1x128xf32>
    %128 = vector.shape_cast %127 : vector<1x128xf32> to vector<1x128x1xf32>
    %129 = vector.broadcast %128 : vector<1x128x1xf32> to vector<1x128x128xf32>
    %130 = arith.subf %126, %129 : vector<1x128x128xf32>
    %131 = math.exp %130 : vector<1x128x128xf32>
    %cst_50 = arith.constant dense<0.000000e+00> : vector<1x128xf32>
    %132 = vector.multi_reduction <add>, %131, %cst_50 [2] : vector<1x128x128xf32> to vector<1x128xf32>
    %133 = vector.shape_cast %132 : vector<1x128xf32> to vector<1x128x1xf32>
    %134 = vector.broadcast %133 : vector<1x128x1xf32> to vector<1x128x128xf32>
    %135 = arith.divf %131, %134 : vector<1x128x128xf32>
    %136 = arith.truncf %135 : vector<1x128x128xf32> to vector<1x128x128xbf16>
    "tpu.trace_start"() <{level = 10 : i32, message = "tqk,tkd->tqd"}> : () -> ()
    %cst_51 = arith.constant dense<0.000000e+00> : vector<1x128x16xf32>
    %137 = tpu.matmul %136, %121, %cst_51 {dimension_numbers = #tpu.dot_dimension_numbers<[2], [1], [1], [2], [0, 0, 0, 1, 1, 2], [0], [0]>} : vector<1x128x128xbf16>, vector<1x128x16xbf16>, vector<1x128x16xf32> -> vector<1x128x16xf32>
    "tpu.trace_stop"() : () -> ()
    %138 = vector.shape_cast %137 : vector<1x128x16xf32> to vector<128x16xf32>
    %139 = arith.truncf %138 : vector<128x16xf32> to vector<128x16xbf16>
    %140 = vector.extract_strided_slice %7 {offsets = [0, 80], sizes = [128, 16], strides = [1, 1]} : vector<128x128xbf16> to vector<128x16xbf16>
    %141 = vector.shape_cast %140 : vector<128x16xbf16> to vector<1x128x16xbf16>
    %142 = vector.extract_strided_slice %13 {offsets = [0, 80], sizes = [128, 16], strides = [1, 1]} : vector<128x128xbf16> to vector<128x16xbf16>
    %143 = vector.shape_cast %142 : vector<128x16xbf16> to vector<1x128x16xbf16>
    %144 = vector.extract_strided_slice %19 {offsets = [0, 80], sizes = [128, 16], strides = [1, 1]} : vector<128x128xbf16> to vector<128x16xbf16>
    %145 = vector.shape_cast %144 : vector<128x16xbf16> to vector<1x128x16xbf16>
    "tpu.trace_start"() <{level = 10 : i32, message = "tqd,tkd->tqk"}> : () -> ()
    %cst_52 = arith.constant dense<0.000000e+00> : vector<1x128x128xf32>
    %146 = tpu.matmul %141, %143, %cst_52 {dimension_numbers = #tpu.dot_dimension_numbers<[2], [2], [1], [1], [0, 0, 0, 1, 1, 1], [0], [0]>} : vector<1x128x16xbf16>, vector<1x128x16xbf16>, vector<1x128x128xf32> -> vector<1x128x128xf32>
    "tpu.trace_stop"() : () -> ()
    %c0_53 = arith.constant 0 : index
    %c5 = arith.constant 5 : index
    %c0_54 = arith.constant 0 : index
    %c0_55 = arith.constant 0 : index
    %147 = vector.load %arg2[%c0_53, %c5, %c0_54, %c0_55] : memref<1x8x128x128xbf16, #tpu.memory_space<vmem>>, vector<1x1x128x128xbf16>
    %148 = vector.shape_cast %147 : vector<1x1x128x128xbf16> to vector<1x128x128xbf16>
    %149 = arith.extf %148 : vector<1x128x128xbf16> to vector<1x128x128xf32>
    %150 = arith.addf %146, %149 : vector<1x128x128xf32>
    %cst_56 = arith.constant dense<0xFF800000> : vector<1x128xf32>
    %151 = vector.multi_reduction <maximumf>, %150, %cst_56 [2] : vector<1x128x128xf32> to vector<1x128xf32>
    %152 = vector.shape_cast %151 : vector<1x128xf32> to vector<1x128x1xf32>
    %153 = vector.broadcast %152 : vector<1x128x1xf32> to vector<1x128x128xf32>
    %154 = arith.subf %150, %153 : vector<1x128x128xf32>
    %155 = math.exp %154 : vector<1x128x128xf32>
    %cst_57 = arith.constant dense<0.000000e+00> : vector<1x128xf32>
    %156 = vector.multi_reduction <add>, %155, %cst_57 [2] : vector<1x128x128xf32> to vector<1x128xf32>
    %157 = vector.shape_cast %156 : vector<1x128xf32> to vector<1x128x1xf32>
    %158 = vector.broadcast %157 : vector<1x128x1xf32> to vector<1x128x128xf32>
    %159 = arith.divf %155, %158 : vector<1x128x128xf32>
    %160 = arith.truncf %159 : vector<1x128x128xf32> to vector<1x128x128xbf16>
    "tpu.trace_start"() <{level = 10 : i32, message = "tqk,tkd->tqd"}> : () -> ()
    %cst_58 = arith.constant dense<0.000000e+00> : vector<1x128x16xf32>
    %161 = tpu.matmul %160, %145, %cst_58 {dimension_numbers = #tpu.dot_dimension_numbers<[2], [1], [1], [2], [0, 0, 0, 1, 1, 2], [0], [0]>} : vector<1x128x128xbf16>, vector<1x128x16xbf16>, vector<1x128x16xf32> -> vector<1x128x16xf32>
    "tpu.trace_stop"() : () -> ()
    %162 = vector.shape_cast %161 : vector<1x128x16xf32> to vector<128x16xf32>
    %163 = arith.truncf %162 : vector<128x16xf32> to vector<128x16xbf16>
    %164 = vector.extract_strided_slice %7 {offsets = [0, 96], sizes = [128, 16], strides = [1, 1]} : vector<128x128xbf16> to vector<128x16xbf16>
    %165 = vector.shape_cast %164 : vector<128x16xbf16> to vector<1x128x16xbf16>
    %166 = vector.extract_strided_slice %13 {offsets = [0, 96], sizes = [128, 16], strides = [1, 1]} : vector<128x128xbf16> to vector<128x16xbf16>
    %167 = vector.shape_cast %166 : vector<128x16xbf16> to vector<1x128x16xbf16>
    %168 = vector.extract_strided_slice %19 {offsets = [0, 96], sizes = [128, 16], strides = [1, 1]} : vector<128x128xbf16> to vector<128x16xbf16>
    %169 = vector.shape_cast %168 : vector<128x16xbf16> to vector<1x128x16xbf16>
    "tpu.trace_start"() <{level = 10 : i32, message = "tqd,tkd->tqk"}> : () -> ()
    %cst_59 = arith.constant dense<0.000000e+00> : vector<1x128x128xf32>
    %170 = tpu.matmul %165, %167, %cst_59 {dimension_numbers = #tpu.dot_dimension_numbers<[2], [2], [1], [1], [0, 0, 0, 1, 1, 1], [0], [0]>} : vector<1x128x16xbf16>, vector<1x128x16xbf16>, vector<1x128x128xf32> -> vector<1x128x128xf32>
    "tpu.trace_stop"() : () -> ()
    %c0_60 = arith.constant 0 : index
    %c6 = arith.constant 6 : index
    %c0_61 = arith.constant 0 : index
    %c0_62 = arith.constant 0 : index
    %171 = vector.load %arg2[%c0_60, %c6, %c0_61, %c0_62] : memref<1x8x128x128xbf16, #tpu.memory_space<vmem>>, vector<1x1x128x128xbf16>
    %172 = vector.shape_cast %171 : vector<1x1x128x128xbf16> to vector<1x128x128xbf16>
    %173 = arith.extf %172 : vector<1x128x128xbf16> to vector<1x128x128xf32>
    %174 = arith.addf %170, %173 : vector<1x128x128xf32>
    %cst_63 = arith.constant dense<0xFF800000> : vector<1x128xf32>
    %175 = vector.multi_reduction <maximumf>, %174, %cst_63 [2] : vector<1x128x128xf32> to vector<1x128xf32>
    %176 = vector.shape_cast %175 : vector<1x128xf32> to vector<1x128x1xf32>
    %177 = vector.broadcast %176 : vector<1x128x1xf32> to vector<1x128x128xf32>
    %178 = arith.subf %174, %177 : vector<1x128x128xf32>
    %179 = math.exp %178 : vector<1x128x128xf32>
    %cst_64 = arith.constant dense<0.000000e+00> : vector<1x128xf32>
    %180 = vector.multi_reduction <add>, %179, %cst_64 [2] : vector<1x128x128xf32> to vector<1x128xf32>
    %181 = vector.shape_cast %180 : vector<1x128xf32> to vector<1x128x1xf32>
    %182 = vector.broadcast %181 : vector<1x128x1xf32> to vector<1x128x128xf32>
    %183 = arith.divf %179, %182 : vector<1x128x128xf32>
    %184 = arith.truncf %183 : vector<1x128x128xf32> to vector<1x128x128xbf16>
    "tpu.trace_start"() <{level = 10 : i32, message = "tqk,tkd->tqd"}> : () -> ()
    %cst_65 = arith.constant dense<0.000000e+00> : vector<1x128x16xf32>
    %185 = tpu.matmul %184, %169, %cst_65 {dimension_numbers = #tpu.dot_dimension_numbers<[2], [1], [1], [2], [0, 0, 0, 1, 1, 2], [0], [0]>} : vector<1x128x128xbf16>, vector<1x128x16xbf16>, vector<1x128x16xf32> -> vector<1x128x16xf32>
    "tpu.trace_stop"() : () -> ()
    %186 = vector.shape_cast %185 : vector<1x128x16xf32> to vector<128x16xf32>
    %187 = arith.truncf %186 : vector<128x16xf32> to vector<128x16xbf16>
    %188 = vector.extract_strided_slice %7 {offsets = [0, 112], sizes = [128, 16], strides = [1, 1]} : vector<128x128xbf16> to vector<128x16xbf16>
    %189 = vector.shape_cast %188 : vector<128x16xbf16> to vector<1x128x16xbf16>
    %190 = vector.extract_strided_slice %13 {offsets = [0, 112], sizes = [128, 16], strides = [1, 1]} : vector<128x128xbf16> to vector<128x16xbf16>
    %191 = vector.shape_cast %190 : vector<128x16xbf16> to vector<1x128x16xbf16>
    %192 = vector.extract_strided_slice %19 {offsets = [0, 112], sizes = [128, 16], strides = [1, 1]} : vector<128x128xbf16> to vector<128x16xbf16>
    %193 = vector.shape_cast %192 : vector<128x16xbf16> to vector<1x128x16xbf16>
    "tpu.trace_start"() <{level = 10 : i32, message = "tqd,tkd->tqk"}> : () -> ()
    %cst_66 = arith.constant dense<0.000000e+00> : vector<1x128x128xf32>
    %194 = tpu.matmul %189, %191, %cst_66 {dimension_numbers = #tpu.dot_dimension_numbers<[2], [2], [1], [1], [0, 0, 0, 1, 1, 1], [0], [0]>} : vector<1x128x16xbf16>, vector<1x128x16xbf16>, vector<1x128x128xf32> -> vector<1x128x128xf32>
    "tpu.trace_stop"() : () -> ()
    %c0_67 = arith.constant 0 : index
    %c7 = arith.constant 7 : index
    %c0_68 = arith.constant 0 : index
    %c0_69 = arith.constant 0 : index
    %195 = vector.load %arg2[%c0_67, %c7, %c0_68, %c0_69] : memref<1x8x128x128xbf16, #tpu.memory_space<vmem>>, vector<1x1x128x128xbf16>
    %196 = vector.shape_cast %195 : vector<1x1x128x128xbf16> to vector<1x128x128xbf16>
    %197 = arith.extf %196 : vector<1x128x128xbf16> to vector<1x128x128xf32>
    %198 = arith.addf %194, %197 : vector<1x128x128xf32>
    %cst_70 = arith.constant dense<0xFF800000> : vector<1x128xf32>
    %199 = vector.multi_reduction <maximumf>, %198, %cst_70 [2] : vector<1x128x128xf32> to vector<1x128xf32>
    %200 = vector.shape_cast %199 : vector<1x128xf32> to vector<1x128x1xf32>
    %201 = vector.broadcast %200 : vector<1x128x1xf32> to vector<1x128x128xf32>
    %202 = arith.subf %198, %201 : vector<1x128x128xf32>
    %203 = math.exp %202 : vector<1x128x128xf32>
    %cst_71 = arith.constant dense<0.000000e+00> : vector<1x128xf32>
    %204 = vector.multi_reduction <add>, %203, %cst_71 [2] : vector<1x128x128xf32> to vector<1x128xf32>
    %205 = vector.shape_cast %204 : vector<1x128xf32> to vector<1x128x1xf32>
    %206 = vector.broadcast %205 : vector<1x128x1xf32> to vector<1x128x128xf32>
    %207 = arith.divf %203, %206 : vector<1x128x128xf32>
    %208 = arith.truncf %207 : vector<1x128x128xf32> to vector<1x128x128xbf16>
    "tpu.trace_start"() <{level = 10 : i32, message = "tqk,tkd->tqd"}> : () -> ()
    %cst_72 = arith.constant dense<0.000000e+00> : vector<1x128x16xf32>
    %209 = tpu.matmul %208, %193, %cst_72 {dimension_numbers = #tpu.dot_dimension_numbers<[2], [1], [1], [2], [0, 0, 0, 1, 1, 2], [0], [0]>} : vector<1x128x128xbf16>, vector<1x128x16xbf16>, vector<1x128x16xf32> -> vector<1x128x16xf32>
    "tpu.trace_stop"() : () -> ()
    %210 = vector.shape_cast %209 : vector<1x128x16xf32> to vector<128x16xf32>
    %211 = arith.truncf %210 : vector<128x16xf32> to vector<128x16xbf16>
    %212 = tpu.concatenate %43, %67, %91, %115, %139, %163, %187, %211 in 1 : vector<128x16xbf16>, vector<128x16xbf16>, vector<128x16xbf16>, vector<128x16xbf16>, vector<128x16xbf16>, vector<128x16xbf16>, vector<128x16xbf16>, vector<128x16xbf16> -> vector<128x128xbf16>
    %c0_73 = arith.constant 0 : index
    %c0_74 = arith.constant 0 : index
    %213 = vector.load %arg12[%c0_73, %c0_74] : memref<128x128xbf16, #tpu.memory_space<vmem>>, vector<128x128xbf16>
    tpu.vector_store %arg12[%c0_73, %c0_74], %212 {strides = array<i32>} : memref<128x128xbf16, #tpu.memory_space<vmem>>, vector<128x128xbf16>,
    %c0_75 = arith.constant 0 : index
    %c0_76 = arith.constant 0 : index
    %214 = vector.load %arg12[%c0_75, %c0_76] : memref<128x128xbf16, #tpu.memory_space<vmem>>, vector<128x128xbf16>
    %c0_77 = arith.constant 0 : index
    %c0_78 = arith.constant 0 : index
    %215 = vector.load %arg9[%c0_77, %c0_78] : memref<128x128xbf16, #tpu.memory_space<vmem>>, vector<128x128xbf16>
    %cst_79 = arith.constant dense<0.000000e+00> : vector<128x128xf32>
    %216 = tpu.matmul %214, %215, %cst_79 {dimension_numbers = #tpu.dot_dimension_numbers<[1], [0], [0], [1], [0, 0, 1, 1], [], []>} : vector<128x128xbf16>, vector<128x128xbf16>, vector<128x128xf32> -> vector<128x128xf32>
    %c0_80 = arith.constant 0 : index
    %c0_81 = arith.constant 0 : index
    %217 = vector.load %arg10[%c0_80, %c0_81] : memref<1x128xf32, #tpu.memory_space<vmem>>, vector<1x128xf32>
    %218 = vector.broadcast %217 : vector<1x128xf32> to vector<128x128xf32>
    %219 = arith.addf %216, %218 : vector<128x128xf32>
    %220 = vector.shape_cast %219 : vector<128x128xf32> to vector<8x16x128xf32>
    %c0_82 = arith.constant 0 : index
    %c0_83 = arith.constant 0 : index
    %c0_84 = arith.constant 0 : index
    %221 = vector.load %arg11[%c0_82, %c0_83, %c0_84] : memref<8x16x128xf32, #tpu.memory_space<vmem>>, vector<8x16x128xf32>
    tpu.vector_store %arg11[%c0_82, %c0_83, %c0_84], %220 {strides = array<i32>} : memref<8x16x128xf32, #tpu.memory_space<vmem>>, vector<8x16x128xf32>,
    return
  }
  func.func @transform_0(%arg0: i32) -> (i32, i32, i32) {
    %c0_i32 = arith.constant 0 : i32
    %c0_i32_0 = arith.constant 0 : i32
    %c0_i32_1 = arith.constant 0 : i32
    return %arg0, %c0_i32, %c0_i32_0 : i32, i32, i32
  }
  func.func @transform_1(%arg0: i32) -> (i32, i32, i32, i32) {
    %c0_i32 = arith.constant 0 : i32
    %c0_i32_0 = arith.constant 0 : i32
    %c0_i32_1 = arith.constant 0 : i32
    %c0_i32_2 = arith.constant 0 : i32
    return %arg0, %c0_i32, %c0_i32_0, %c0_i32_1 : i32, i32, i32, i32
  }
  func.func @transform_2(%arg0: i32) -> (i32, i32) {
    %c0_i32 = arith.constant 0 : i32
    %c0_i32_0 = arith.constant 0 : i32
    %c0_i32_1 = arith.constant 0 : i32
    return %c0_i32, %c0_i32_0 : i32, i32
  }
  func.func @transform_3(%arg0: i32) -> (i32, i32) {
    %c0_i32 = arith.constant 0 : i32
    %c0_i32_0 = arith.constant 0 : i32
    %c0_i32_1 = arith.constant 0 : i32
    return %c0_i32, %c0_i32_0 : i32, i32
  }
  func.func @transform_4(%arg0: i32) -> (i32, i32) {
    %c0_i32 = arith.constant 0 : i32
    %c0_i32_0 = arith.constant 0 : i32
    %c0_i32_1 = arith.constant 0 : i32
    return %c0_i32, %c0_i32_0 : i32, i32
  }
  func.func @transform_5(%arg0: i32) -> (i32, i32) {
    %c0_i32 = arith.constant 0 : i32
    %c0_i32_0 = arith.constant 0 : i32
    %c0_i32_1 = arith.constant 0 : i32
    return %c0_i32, %c0_i32_0 : i32, i32
  }
  func.func @transform_6(%arg0: i32) -> (i32, i32) {
    %c0_i32 = arith.constant 0 : i32
    %c0_i32_0 = arith.constant 0 : i32
    %c0_i32_1 = arith.constant 0 : i32
    return %c0_i32, %c0_i32_0 : i32, i32
  }
  func.func @transform_7(%arg0: i32) -> (i32, i32) {
    %c0_i32 = arith.constant 0 : i32
    %c0_i32_0 = arith.constant 0 : i32
    %c0_i32_1 = arith.constant 0 : i32
    return %c0_i32, %c0_i32_0 : i32, i32
  }
  func.func @transform_8(%arg0: i32) -> (i32, i32) {
    %c0_i32 = arith.constant 0 : i32
    %c0_i32_0 = arith.constant 0 : i32
    %c0_i32_1 = arith.constant 0 : i32
    return %c0_i32, %c0_i32_0 : i32, i32
  }
  func.func @transform_9(%arg0: i32) -> (i32, i32) {
    %c0_i32 = arith.constant 0 : i32
    %c0_i32_0 = arith.constant 0 : i32
    %c0_i32_1 = arith.constant 0 : i32
    return %c0_i32, %c0_i32_0 : i32, i32
  }
  func.func @transform_10(%arg0: i32) -> (i32, i32, i32) {
    %c0_i32 = arith.constant 0 : i32
    %c0_i32_0 = arith.constant 0 : i32
    %c0_i32_1 = arith.constant 0 : i32
    return %arg0, %c0_i32, %c0_i32_0 : i32, i32, i32
  }
}

</mosaic_0001>

<llo_original>
// kernel: tpu_custom_call.1
$region0: #{tpu_custom_call.1}
  #allocation0 [shape = 'u32[]', space=smem, size = 0x4, offset = 0x4, fixed_abs, tag = 'smem constant byte address 0x4 - core index']
  #allocation1 [shape = 'u32[144,128]{1,0:T(1,128)}', space=vmem, size = 0x12000, scoped, tag = 'internal scratch']
  #allocation2 [shape = 'bf16[128,128]{1,0:T(16,128)(2,1)}', space=vmem, size = 0x8000, scoped, tag = 'scratch operand']
  %s0 = inlined_call_operand.hbm [shape: bf16[32,16,128], index: 0, kind: input, shape index: {}]
  %s1 = inlined_call_operand.hbm [shape: bf16[4,8,128,128], index: 1, kind: input, shape index: {}]
  %s2 = inlined_call_operand.hbm [shape: bf16[128,128], index: 2, kind: input, shape index: {}]
  %s3 = inlined_call_operand.hbm [shape: bf16[128,128], index: 3, kind: input, shape index: {}]
  %s4 = inlined_call_operand.hbm [shape: bf16[128,128], index: 4, kind: input, shape index: {}]
  %s5 = inlined_call_operand.vmem [shape: f32[1,128], index: 5, kind: input, shape index: {}]
  %s6 = inlined_call_operand.vmem [shape: f32[1,128], index: 6, kind: input, shape index: {}]
  %s7 = inlined_call_operand.vmem [shape: f32[1,128], index: 7, kind: input, shape index: {}]
  %s8 = inlined_call_operand.hbm [shape: bf16[128,128], index: 8, kind: input, shape index: {}]
  %s9 = inlined_call_operand.vmem [shape: f32[1,128], index: 9, kind: input, shape index: {}]
  %s10 = inlined_call_operand.hbm [shape: f32[32,16,128], index: 10, kind: output, shape index: {}]
  %s11 = sld [smem:[#allocation0]]
  $region97: #{tpu_custom_call.1} parent=0
    _
  %s13 = ssub.s32 1, %s11
  %s14 = scalar_select 0, %s13, %s11
  $region1: #{tpu_custom_call.1} parent=0
    #allocation3 [shape = 'u8[65536]{0}', space=vmem, size = 0x10000, scoped, tag = 'input window, operand 0']
    #allocation4 [shape = 's32[2]{0}', space=sflag, size = 0x8, scoped, tag = 'scoped memory for tpu_custom_call.1']
    #allocation5 [shape = 's32[2]{0}', space=sflag, size = 0x8, scoped, tag = 'scoped memory for tpu_custom_call.1']
    #allocation6 [shape = 'u8[524288]{0}', space=vmem, size = 0x80000, scoped, tag = 'input window, operand 1']
    #allocation7 [shape = 's32[2]{0}', space=sflag, size = 0x8, scoped, tag = 'scoped memory for tpu_custom_call.1']
    #allocation8 [shape = 'u8[32768]{0}', space=vmem, size = 0x8000, scoped, tag = 'input window, operand 2, single buffered']
    #allocation9 [shape = 'u8[32768]{0}', space=vmem, size = 0x8000, scoped, tag = 'input window, operand 3, single buffered']
    #allocation10 [shape = 's32[1]{0}', space=sflag, size = 0x4, scoped, tag = 'scoped memory for tpu_custom_call.1']
    #allocation11 [shape = 'u8[32768]{0}', space=vmem, size = 0x8000, scoped, tag = 'input window, operand 4, single buffered']
    #allocation12 [shape = 'u8[32768]{0}', space=vmem, size = 0x8000, scoped, tag = 'input window, operand 8, single buffered']
    #allocation13 [shape = 's32[1]{0}', space=sflag, size = 0x4, scoped, tag = 'scoped memory for tpu_custom_call.1']
    #allocation14 [shape = 'u8[131072]{0}', space=vmem, size = 0x20000, scoped, tag = 'output window, operand 0']
    %15 = vsyncpa [#allocation4], 0
    %s16 = scalar_lea.sflag [#allocation4], 1
    %17 = vsyncpa %s16, 0
    %18 = vsyncpa [#allocation7], 0
    %s19 = scalar_lea.sflag [#allocation7], 1
    %20 = vsyncpa %s19, 0
    %21 = vsyncpa [#allocation10], 0
    %22 = vsyncpa [#allocation13], 0
    %23 = vsyncpa [#allocation5], 0
    %s24 = scalar_lea.sflag [#allocation5], 1
    %25 = vsyncpa %s24, 0
    loop: start=0, step=1, limit=6
    $region2: #{tpu_custom_call.1} parent=1 // loop_pre_header
      _
    $region3: #{tpu_custom_call.1} parent=1 // loop_header
      %s27 = sphi 0, %s31
      %p28 = scmp.ge.s32.totalorder %s27, 6
      %s37 = sphi 0, %s39
      %s40 = sphi 0, %s37
      %s41 = sphi 0, %s40
      %s57 = sphi 0, %s41
      %s63 = sphi 0, %s65
      %s66 = sphi 0, %s63
      %s67 = sphi 0, %s66
      %s83 = sphi 0, %s67
      %s87 = sphi 0, %s87
      %s89 = sphi 0, %s87
      %s90 = sphi 0, %s89
      %s104 = sphi 0, %s90
      %s108 = sphi 0, %s108
      %s110 = sphi 0, %s108
      %s111 = sphi 0, %s110
      %s125 = sphi 0, %s111
      %s129 = sphi 0, %s129
      %s131 = sphi 0, %s129
      %s132 = sphi 0, %s131
      %s146 = sphi 0, %s132
      %s150 = sphi 0, %s150
      %s152 = sphi 0, %s150
      %s153 = sphi 0, %s152
      %s167 = sphi 0, %s153
      %s171 = sphi 0, %s171
      %s173 = sphi 0, %s171
      %s174 = sphi 0, %s173
      %s188 = sphi 0, %s174
      %s192 = sphi 0, %s192
      %s194 = sphi 0, %s192
      %s195 = sphi 0, %s194
      %s209 = sphi 0, %s195
      %s213 = sphi 0, %s213
      %s215 = sphi 0, %s213
      %s216 = sphi 0, %s215
      %s230 = sphi 0, %s216
      %s234 = sphi 0, %s234
      %s236 = sphi 0, %s234
      %s237 = sphi 0, %s236
      %s251 = sphi 0, %s237
      %s257 = sphi 0, %s259
      %s260 = sphi 0, %s257
      %s261 = sphi 0, %s260
      %s277 = sphi 0, %s261
    $region4: #{tpu_custom_call.1} parent=1 // loop_header_branch
      %30 = sbr.rel (%p28) target = $region8
    $region5: #{tpu_custom_call.1} parent=1 // loop_body
      %s32 = ssub.s32 %s27, 1
      %s33 = ssub.s32 %s27, 2
      %s34 = sadd.s32 %s27, 1
      %s35 = ssub.s32 %s27, %s34
      %p36 = scmp.eq.s32.totalorder %s35, 0
      %s38 = sadd.s32 %s37, 1
      %s39 = scalar_select %p36, %s37, %s38
      %p42 = pneg %p36
      %p43 = scmp.eq.s32.totalorder %s27, 3
      %p44 = por %p42, %p43
      %p45 = scmp.ne.s32.totalorder %s37, %s40
      %p46 = scmp.eq.s32.totalorder %s27, 0
      %p47 = por %p45, %p46
      %p48 = scmp.ne.s32.totalorder %s37, %s40
      %p49 = scmp.eq.s32.totalorder %s32, 3
      %p50 = por %p48, %p49
      %p51 = scmp.ne.s32.totalorder %s40, %s41
      %p52 = scmp.eq.s32.totalorder %s32, 0
      %p53 = por %p51, %p52
      %p54 = scmp.ne.s32.totalorder %s40, %s41
      %p55 = scmp.eq.s32.totalorder %s33, 3
      %p56 = por %p54, %p55
      %p58 = scmp.ne.s32.totalorder %s41, %s57
      %p59 = scmp.eq.s32.totalorder %s33, 0
      %p60 = por %p58, %p59
      %s61 = ssub.s32 %s27, %s34
      %p62 = scmp.eq.s32.totalorder %s61, 0
      %s64 = sadd.s32 %s63, 1
      %s65 = scalar_select %p62, %s63, %s64
      %p68 = pneg %p62
      %p69 = scmp.eq.s32.totalorder %s27, 3
      %p70 = por %p68, %p69
      %p71 = scmp.ne.s32.totalorder %s63, %s66
      %p72 = scmp.eq.s32.totalorder %s27, 0
      %p73 = por %p71, %p72
      %p74 = scmp.ne.s32.totalorder %s63, %s66
      %p75 = scmp.eq.s32.totalorder %s32, 3
      %p76 = por %p74, %p75
      %p77 = scmp.ne.s32.totalorder %s66, %s67
      %p78 = scmp.eq.s32.totalorder %s32, 0
      %p79 = por %p77, %p78
      %p80 = scmp.ne.s32.totalorder %s66, %s67
      %p81 = scmp.eq.s32.totalorder %s33, 3
      %p82 = por %p80, %p81
      %p84 = scmp.ne.s32.totalorder %s67, %s83
      %p85 = scmp.eq.s32.totalorder %s33, 0
      %p86 = por %p84, %p85
      %s88 = sadd.s32 %s87, 1
      %p91 = scmp.eq.s32.totalorder %s27, 3
      %p92 = scmp.ne.s32.totalorder %s87, %s89
      %p93 = scmp.eq.s32.totalorder %s27, 0
      %p94 = por %p92, %p93
      %p95 = scmp.ne.s32.totalorder %s87, %s89
      %p96 = scmp.eq.s32.totalorder %s32, 3
      %p97 = por %p95, %p96
      %p98 = scmp.ne.s32.totalorder %s89, %s90
      %p99 = scmp.eq.s32.totalorder %s32, 0
      %p100 = por %p98, %p99
      %p101 = scmp.ne.s32.totalorder %s89, %s90
      %p102 = scmp.eq.s32.totalorder %s33, 3
      %p103 = por %p101, %p102
      %p105 = scmp.ne.s32.totalorder %s90, %s104
      %p106 = scmp.eq.s32.totalorder %s33, 0
      %p107 = por %p105, %p106
      %s109 = sadd.s32 %s108, 1
      %p112 = scmp.eq.s32.totalorder %s27, 3
      %p113 = scmp.ne.s32.totalorder %s108, %s110
      %p114 = scmp.eq.s32.totalorder %s27, 0
      %p115 = por %p113, %p114
      %p116 = scmp.ne.s32.totalorder %s108, %s110
      %p117 = scmp.eq.s32.totalorder %s32, 3
      %p118 = por %p116, %p117
      %p119 = scmp.ne.s32.totalorder %s110, %s111
      %p120 = scmp.eq.s32.totalorder %s32, 0
      %p121 = por %p119, %p120
      %p122 = scmp.ne.s32.totalorder %s110, %s111
      %p123 = scmp.eq.s32.totalorder %s33, 3
      %p124 = por %p122, %p123
      %p126 = scmp.ne.s32.totalorder %s111, %s125
      %p127 = scmp.eq.s32.totalorder %s33, 0
      %p128 = por %p126, %p127
      %s130 = sadd.s32 %s129, 1
      %p133 = scmp.eq.s32.totalorder %s27, 3
      %p134 = scmp.ne.s32.totalorder %s129, %s131
      %p135 = scmp.eq.s32.totalorder %s27, 0
      %p136 = por %p134, %p135
      %p137 = scmp.ne.s32.totalorder %s129, %s131
      %p138 = scmp.eq.s32.totalorder %s32, 3
      %p139 = por %p137, %p138
      %p140 = scmp.ne.s32.totalorder %s131, %s132
      %p141 = scmp.eq.s32.totalorder %s32, 0
      %p142 = por %p140, %p141
      %p143 = scmp.ne.s32.totalorder %s131, %s132
      %p144 = scmp.eq.s32.totalorder %s33, 3
      %p145 = por %p143, %p144
      %p147 = scmp.ne.s32.totalorder %s132, %s146
      %p148 = scmp.eq.s32.totalorder %s33, 0
      %p149 = por %p147, %p148
      %s151 = sadd.s32 %s150, 1
      %p154 = scmp.eq.s32.totalorder %s27, 3
      %p155 = scmp.ne.s32.totalorder %s150, %s152
      %p156 = scmp.eq.s32.totalorder %s27, 0
      %p157 = por %p155, %p156
      %p158 = scmp.ne.s32.totalorder %s150, %s152
      %p159 = scmp.eq.s32.totalorder %s32, 3
      %p160 = por %p158, %p159
      %p161 = scmp.ne.s32.totalorder %s152, %s153
      %p162 = scmp.eq.s32.totalorder %s32, 0
      %p163 = por %p161, %p162
      %p164 = scmp.ne.s32.totalorder %s152, %s153
      %p165 = scmp.eq.s32.totalorder %s33, 3
      %p166 = por %p164, %p165
      %p168 = scmp.ne.s32.totalorder %s153, %s167
      %p169 = scmp.eq.s32.totalorder %s33, 0
      %p170 = por %p168, %p169
      %s172 = sadd.s32 %s171, 1
      %p175 = scmp.eq.s32.totalorder %s27, 3
      %p176 = scmp.ne.s32.totalorder %s171, %s173
      %p177 = scmp.eq.s32.totalorder %s27, 0
      %p178 = por %p176, %p177
      %p179 = scmp.ne.s32.totalorder %s171, %s173
      %p180 = scmp.eq.s32.totalorder %s32, 3
      %p181 = por %p179, %p180
      %p182 = scmp.ne.s32.totalorder %s173, %s174
      %p183 = scmp.eq.s32.totalorder %s32, 0
      %p184 = por %p182, %p183
      %p185 = scmp.ne.s32.totalorder %s173, %s174
      %p186 = scmp.eq.s32.totalorder %s33, 3
      %p187 = por %p185, %p186
      %p189 = scmp.ne.s32.totalorder %s174, %s188
      %p190 = scmp.eq.s32.totalorder %s33, 0
      %p191 = por %p189, %p190
      %s193 = sadd.s32 %s192, 1
      %p196 = scmp.eq.s32.totalorder %s27, 3
      %p197 = scmp.ne.s32.totalorder %s192, %s194
      %p198 = scmp.eq.s32.totalorder %s27, 0
      %p199 = por %p197, %p198
      %p200 = scmp.ne.s32.totalorder %s192, %s194
      %p201 = scmp.eq.s32.totalorder %s32, 3
      %p202 = por %p200, %p201
      %p203 = scmp.ne.s32.totalorder %s194, %s195
      %p204 = scmp.eq.s32.totalorder %s32, 0
      %p205 = por %p203, %p204
      %p206 = scmp.ne.s32.totalorder %s194, %s195
      %p207 = scmp.eq.s32.totalorder %s33, 3
      %p208 = por %p206, %p207
      %p210 = scmp.ne.s32.totalorder %s195, %s209
      %p211 = scmp.eq.s32.totalorder %s33, 0
      %p212 = por %p210, %p211
      %s214 = sadd.s32 %s213, 1
      %p217 = scmp.eq.s32.totalorder %s27, 3
      %p218 = scmp.ne.s32.totalorder %s213, %s215
      %p219 = scmp.eq.s32.totalorder %s27, 0
      %p220 = por %p218, %p219
      %p221 = scmp.ne.s32.totalorder %s213, %s215
      %p222 = scmp.eq.s32.totalorder %s32, 3
      %p223 = por %p221, %p222
      %p224 = scmp.ne.s32.totalorder %s215, %s216
      %p225 = scmp.eq.s32.totalorder %s32, 0
      %p226 = por %p224, %p225
      %p227 = scmp.ne.s32.totalorder %s215, %s216
      %p228 = scmp.eq.s32.totalorder %s33, 3
      %p229 = por %p227, %p228
      %p231 = scmp.ne.s32.totalorder %s216, %s230
      %p232 = scmp.eq.s32.totalorder %s33, 0
      %p233 = por %p231, %p232
      %s235 = sadd.s32 %s234, 1
      %p238 = scmp.eq.s32.totalorder %s27, 3
      %p239 = scmp.ne.s32.totalorder %s234, %s236
      %p240 = scmp.eq.s32.totalorder %s27, 0
      %p241 = por %p239, %p240
      %p242 = scmp.ne.s32.totalorder %s234, %s236
      %p243 = scmp.eq.s32.totalorder %s32, 3
      %p244 = por %p242, %p243
      %p245 = scmp.ne.s32.totalorder %s236, %s237
      %p246 = scmp.eq.s32.totalorder %s32, 0
      %p247 = por %p245, %p246
      %p248 = scmp.ne.s32.totalorder %s236, %s237
      %p249 = scmp.eq.s32.totalorder %s33, 3
      %p250 = por %p248, %p249
      %p252 = scmp.ne.s32.totalorder %s237, %s251
      %p253 = scmp.eq.s32.totalorder %s33, 0
      %p254 = por %p252, %p253
      %s255 = ssub.s32 %s27, %s34
      %p256 = scmp.eq.s32.totalorder %s255, 0
      %s258 = sadd.s32 %s257, 1
      %s259 = scalar_select %p256, %s257, %s258
      %p262 = pneg %p256
      %p263 = scmp.eq.s32.totalorder %s27, 3
      %p264 = por %p262, %p263
      %p265 = scmp.ne.s32.totalorder %s257, %s260
      %p266 = scmp.eq.s32.totalorder %s27, 0
      %p267 = por %p265, %p266
      %p268 = scmp.ne.s32.totalorder %s257, %s260
      %p269 = scmp.eq.s32.totalorder %s32, 3
      %p270 = por %p268, %p269
      %p271 = scmp.ne.s32.totalorder %s260, %s261
      %p272 = scmp.eq.s32.totalorder %s32, 0
      %p273 = por %p271, %p272
      %p274 = scmp.ne.s32.totalorder %s260, %s261
      %p275 = scmp.eq.s32.totalorder %s33, 3
      %p276 = por %p274, %p275
      %p278 = scmp.ne.s32.totalorder %s261, %s277
      %p279 = scmp.eq.s32.totalorder %s33, 0
      %p280 = por %p278, %p279
      %p281 = scmp.le.s32.totalorder 1, %s27
      %p282 = scmp.lt.s32.totalorder %s27, 5
      %p283 = pnand %p281, %p282
      %p284 = pneg %p283
      // Predicated region
      $region9: #{tpu_custom_call.1} parent=5 // pred_check
        _
      $region10: #{tpu_custom_call.1} parent=5 // pred_check_branch
        %286 = sbr.rel (%p283) target = $region12
      $region11: #{tpu_custom_call.1} parent=5 // pred_region
        %s287 = ssub.s32 %s27, 1
        // Predicated region
        $region13: #{tpu_custom_call.1} parent=11 // pred_check
          %p288 = pneg %p100
        $region14: #{tpu_custom_call.1} parent=11 // pred_check_branch
          %290 = sbr.rel (%p288) target = $region16
        $region15: #{tpu_custom_call.1} parent=11 // pred_region
          %s292 = ssub.s32 1024, 1024
          %293 = vsyncadd [#allocation7], %s292
          %s294 = sshll.u32 [#allocation8], 4
          %s295 = int_to_ptr.vmem [resolvable:$true] %s294
          %300 = dma.hbm_to_vmem [thread:$0]  %s2, 1024, %s295, [#allocation7], 64, 64, 4
        $region16: #{tpu_custom_call.1} parent=11 // pred_fallthru
          _
        // Predicated region
        $region17: #{tpu_custom_call.1} parent=11 // pred_check
          %p301 = pneg %p121
        $region18: #{tpu_custom_call.1} parent=11 // pred_check_branch
          %303 = sbr.rel (%p301) target = $region20
        $region19: #{tpu_custom_call.1} parent=11 // pred_region
          %s305 = ssub.s32 1024, 1024
          %306 = vsyncadd [#allocation10], %s305
          %s307 = sshll.u32 [#allocation9], 4
          %s308 = int_to_ptr.vmem [resolvable:$true] %s307
          %313 = dma.hbm_to_vmem [thread:$0]  %s3, 1024, %s308, [#allocation10], 64, 64, 4
        $region20: #{tpu_custom_call.1} parent=11 // pred_fallthru
          _
        // Predicated region
        $region21: #{tpu_custom_call.1} parent=11 // pred_check
          %p314 = pneg %p142
        $region22: #{tpu_custom_call.1} parent=11 // pred_check_branch
          %316 = sbr.rel (%p314) target = $region24
        $region23: #{tpu_custom_call.1} parent=11 // pred_region
          %s318 = ssub.s32 1024, 1024
          %319 = vsyncadd [#allocation10], %s318
          %s320 = sshll.u32 [#allocation11], 4
          %s321 = int_to_ptr.vmem [resolvable:$true] %s320
          %326 = dma.hbm_to_vmem [thread:$0]  %s4, 1024, %s321, [#allocation10], 64, 64, 4
        $region24: #{tpu_custom_call.1} parent=11 // pred_fallthru
          _
        // Predicated region
        $region25: #{tpu_custom_call.1} parent=11 // pred_check
          %p327 = pneg %p163
        $region26: #{tpu_custom_call.1} parent=11 // pred_check_branch
          %329 = sbr.rel (%p327) target = $region28
        $region27: #{tpu_custom_call.1} parent=11 // pred_region
          _
        $region28: #{tpu_custom_call.1} parent=11 // pred_fallthru
          _
        // Predicated region
        $region29: #{tpu_custom_call.1} parent=11 // pred_check
          %p330 = pneg %p184
        $region30: #{tpu_custom_call.1} parent=11 // pred_check_branch
          %332 = sbr.rel (%p330) target = $region32
        $region31: #{tpu_custom_call.1} parent=11 // pred_region
          _
        $region32: #{tpu_custom_call.1} parent=11 // pred_fallthru
          _
        // Predicated region
        $region33: #{tpu_custom_call.1} parent=11 // pred_check
          %p333 = pneg %p205
        $region34: #{tpu_custom_call.1} parent=11 // pred_check_branch
          %335 = sbr.rel (%p333) target = $region36
        $region35: #{tpu_custom_call.1} parent=11 // pred_region
          _
        $region36: #{tpu_custom_call.1} parent=11 // pred_fallthru
          _
        // Predicated region
        $region37: #{tpu_custom_call.1} parent=11 // pred_check
          %p336 = pneg %p226
        $region38: #{tpu_custom_call.1} parent=11 // pred_check_branch
          %338 = sbr.rel (%p336) target = $region40
        $region39: #{tpu_custom_call.1} parent=11 // pred_region
          %s340 = ssub.s32 1024, 1024
          %341 = vsyncadd [#allocation13], %s340
          %s342 = sshll.u32 [#allocation12], 4
          %s343 = int_to_ptr.vmem [resolvable:$true] %s342
          %348 = dma.hbm_to_vmem [thread:$0]  %s8, 1024, %s343, [#allocation13], 64, 64, 4
        $region40: #{tpu_custom_call.1} parent=11 // pred_fallthru
          _
        // Predicated region
        $region41: #{tpu_custom_call.1} parent=11 // pred_check
          %p349 = pneg %p247
        $region42: #{tpu_custom_call.1} parent=11 // pred_check_branch
          %351 = sbr.rel (%p349) target = $region44
        $region43: #{tpu_custom_call.1} parent=11 // pred_region
          _
        $region44: #{tpu_custom_call.1} parent=11 // pred_fallthru
          _
      $region12: #{tpu_custom_call.1} parent=5 // pred_fallthru
        _
      %p352 = scmp.lt.s32.totalorder %s27, 4
      // Predicated region
      $region45: #{tpu_custom_call.1} parent=5 // pred_check
        %p353 = pneg %p352
      $region46: #{tpu_custom_call.1} parent=5 // pred_check_branch
        %355 = sbr.rel (%p353) target = $region48
      $region47: #{tpu_custom_call.1} parent=5 // pred_region
        // Predicated region
        $region49: #{tpu_custom_call.1} parent=47 // pred_check
          %p356 = pneg %p47
        $region50: #{tpu_custom_call.1} parent=47 // pred_check_branch
          %358 = sbr.rel (%p356) target = $region52
        $region51: #{tpu_custom_call.1} parent=47 // pred_region
          %s359 = sand.u32 %s37, 1
          %s360 = scalar_lea.sflag [#allocation4], %s359
          %s361 = sand.u32 %s37, 1
          %s362 = smul.addr %s361, 64
          %s363 = scalar_lea.vmem [#allocation3], %s362
          %s364 = smul.u32 8, %s27
          %s366 = ssub.s32 1024, 1024
          %367 = vsyncadd %s360, %s366
          %s368 = smul.addr %s364, 2
          %s369 = smul.addr %s368, 64
          %s370 = scalar_lea.hbm %s0, %s369
          %s371 = sshll.u32 %s363, 4
          %s372 = int_to_ptr.vmem [resolvable:$true] %s371
          %377 = dma.hbm_to_vmem [thread:$0]  %s370, 1024, %s372, %s360, 64, 64, 4
        $region52: #{tpu_custom_call.1} parent=47 // pred_fallthru
          _
        // Predicated region
        $region53: #{tpu_custom_call.1} parent=47 // pred_check
          %p378 = pneg %p73
        $region54: #{tpu_custom_call.1} parent=47 // pred_check_branch
          %380 = sbr.rel (%p378) target = $region56
        $region55: #{tpu_custom_call.1} parent=47 // pred_region
          %s381 = sand.u32 %s27, 1
          %s382 = scalar_lea.sflag [#allocation7], %s381
          %s383 = sand.u32 %s63, 1
          %s384 = smul.addr %s383, 512
          %s385 = scalar_lea.vmem [#allocation6], %s384
          %s387 = ssub.s32 8192, 8192
          %388 = vsyncadd %s382, %s387
          %s389 = smul.addr %s27, 128
          %s390 = smul.addr %s389, 64
          %s391 = scalar_lea.hbm %s1, %s390
          %s392 = sshll.u32 %s385, 4
          %s393 = int_to_ptr.vmem [resolvable:$true] %s392
          %398 = dma.hbm_to_vmem [thread:$0]  %s391, 8192, %s393, %s382, 64, 64, 4
        $region56: #{tpu_custom_call.1} parent=47 // pred_fallthru
          _
      $region48: #{tpu_custom_call.1} parent=5 // pred_fallthru
        _
      %p399 = scmp.le.s32.totalorder 1, %s27
      %p400 = scmp.lt.s32.totalorder %s27, 5
      %p401 = pnand %p399, %p400
      %p402 = pneg %p401
      // Predicated region
      $region57: #{tpu_custom_call.1} parent=5 // pred_check
        _
      $region58: #{tpu_custom_call.1} parent=5 // pred_check_branch
        %404 = sbr.rel (%p401) target = $region60
      $region59: #{tpu_custom_call.1} parent=5 // pred_region
        %s405 = ssub.s32 %s27, 1
        %s406 = sand.u32 %s40, 1
        %s407 = scalar_lea.sflag [#allocation4], %s406
        %s408 = sand.u32 %s40, 1
        %s409 = smul.addr %s408, 64
        %s410 = scalar_lea.vmem [#allocation3], %s409
        // Predicated region
        $region61: #{tpu_custom_call.1} parent=59 // pred_check
          %p411 = pneg %p53
        $region62: #{tpu_custom_call.1} parent=59 // pred_check_branch
          %413 = sbr.rel (%p411) target = $region64
        $region63: #{tpu_custom_call.1} parent=59 // pred_region
          %414 = dma.done %s407, 1024
        $region64: #{tpu_custom_call.1} parent=59 // pred_fallthru
          _
        %s415 = sand.u32 %s32, 1
        %s416 = scalar_lea.sflag [#allocation7], %s415
        %s417 = sand.u32 %s66, 1
        %s418 = smul.addr %s417, 512
        %s419 = scalar_lea.vmem [#allocation6], %s418
        // Predicated region
        $region65: #{tpu_custom_call.1} parent=59 // pred_check
          %p420 = pneg %p79
        $region66: #{tpu_custom_call.1} parent=59 // pred_check_branch
          %422 = sbr.rel (%p420) target = $region68
        $region67: #{tpu_custom_call.1} parent=59 // pred_region
          %423 = dma.done %s416, 8192
        $region68: #{tpu_custom_call.1} parent=59 // pred_fallthru
          _
        // Predicated region
        $region69: #{tpu_custom_call.1} parent=59 // pred_check
          %p424 = pneg %p100
        $region70: #{tpu_custom_call.1} parent=59 // pred_check_branch
          %426 = sbr.rel (%p424) target = $region72
        $region71: #{tpu_custom_call.1} parent=59 // pred_region
          %427 = dma.done [#allocation7], 1024
        $region72: #{tpu_custom_call.1} parent=59 // pred_fallthru
          _
        // Predicated region
        $region73: #{tpu_custom_call.1} parent=59 // pred_check
          %p428 = pneg %p121
        $region74: #{tpu_custom_call.1} parent=59 // pred_check_branch
          %430 = sbr.rel (%p428) target = $region76
        $region75: #{tpu_custom_call.1} parent=59 // pred_region
          %431 = dma.done [#allocation10], 1024
        $region76: #{tpu_custom_call.1} parent=59 // pred_fallthru
          _
        // Predicated region
        $region77: #{tpu_custom_call.1} parent=59 // pred_check
          %p432 = pneg %p142
        $region78: #{tpu_custom_call.1} parent=59 // pred_check_branch
          %434 = sbr.rel (%p432) target = $region80
        $region79: #{tpu_custom_call.1} parent=59 // pred_region
          %435 = dma.done [#allocation10], 1024
        $region80: #{tpu_custom_call.1} parent=59 // pred_fallthru
          _
        // Predicated region
        $region81: #{tpu_custom_call.1} parent=59 // pred_check
          %p436 = pneg %p226
        $region82: #{tpu_custom_call.1} parent=59 // pred_check_branch
          %438 = sbr.rel (%p436) target = $region84
        $region83: #{tpu_custom_call.1} parent=59 // pred_region
          %439 = dma.done [#allocation13], 1024
        $region84: #{tpu_custom_call.1} parent=59 // pred_fallthru
          _
        %s440 = sand.u32 %s40, 1
        %s441 = scalar_lea.sflag [#allocation4], %s440
        %s442 = sand.u32 %s40, 1
        %s443 = smul.addr %s442, 64
        %s444 = scalar_lea.vmem [#allocation3], %s443
        %p445 = pneg %p53
        %p446 = pneg %p50
        %s447 = sand.u32 %s32, 1
        %s448 = scalar_lea.sflag [#allocation7], %s447
        %s449 = sand.u32 %s66, 1
        %s450 = smul.addr %s449, 512
        %s451 = scalar_lea.vmem [#allocation6], %s450
        %p452 = pneg %p79
        %p453 = pneg %p76
        %p454 = pneg %p100
        %p455 = pneg %p97
        %p456 = pneg %p121
        %p457 = pneg %p118
        %p458 = pneg %p142
        %p459 = pneg %p139
        %p460 = pneg %p163
        %p461 = pneg %p160
        %p462 = pneg %p184
        %p463 = pneg %p181
        %p464 = pneg %p205
        %p465 = pneg %p202
        %p466 = pneg %p226
        %p467 = pneg %p223
        %p468 = pneg %p247
        %p469 = pneg %p244
        %p470 = pneg %p273
        %p471 = pneg %p270
        %s472 = sand.u32 %s260, 1
        %s473 = scalar_lea.sflag [#allocation5], %s472
        %s474 = sand.u32 %s260, 1
        %s475 = smul.addr %s474, 128
        %s476 = scalar_lea.vmem [#allocation14], %s475
        %s477 = smul.u32 8, %s32
        %s478 = smul.u32 8, %s32
        %v480 = vld [vmem:[%s410] sm:$0xf]
        %v481 = vld [vmem:[%s410 + $0x4] sm:$0xf]
        %v482 = vld [vmem:[%s410 + $0x8] sm:$0xf]
        %v483 = vld [vmem:[%s410 + $0xc] sm:$0xf]
        %v484 = vld [vmem:[%s410 + $0x10] sm:$0xf]
        %v485 = vld [vmem:[%s410 + $0x14] sm:$0xf]
        %v486 = vld [vmem:[%s410 + $0x18] sm:$0xf]
        %v487 = vld [vmem:[%s410 + $0x1c] sm:$0xf]
        %v488 = vld [vmem:[%s410 + $0x20] sm:$0xf]
        %v489 = vld [vmem:[%s410 + $0x24] sm:$0xf]
        %v490 = vld [vmem:[%s410 + $0x28] sm:$0xf]
        %v491 = vld [vmem:[%s410 + $0x2c] sm:$0xf]
        %v492 = vld [vmem:[%s410 + $0x30] sm:$0xf]
        %v493 = vld [vmem:[%s410 + $0x34] sm:$0xf]
        %v494 = vld [vmem:[%s410 + $0x38] sm:$0xf]
        %v495 = vld [vmem:[%s410 + $0x3c] sm:$0xf]
        %v496 = vld [vmem:[#allocation8] sm:$0xf]
        %v497 = vld [vmem:[#allocation8 + $0x4] sm:$0xf]
        %v498 = vld [vmem:[#allocation8 + $0x8] sm:$0xf]
        %v499 = vld [vmem:[#allocation8 + $0xc] sm:$0xf]
        %v500 = vld [vmem:[#allocation8 + $0x10] sm:$0xf]
        %v501 = vld [vmem:[#allocation8 + $0x14] sm:$0xf]
        %v502 = vld [vmem:[#allocation8 + $0x18] sm:$0xf]
        %v503 = vld [vmem:[#allocation8 + $0x1c] sm:$0xf]
        %v504 = vld [vmem:[#allocation8 + $0x20] sm:$0xf]
        %v505 = vld [vmem:[#allocation8 + $0x24] sm:$0xf]
        %v506 = vld [vmem:[#allocation8 + $0x28] sm:$0xf]
        %v507 = vld [vmem:[#allocation8 + $0x2c] sm:$0xf]
        %v508 = vld [vmem:[#allocation8 + $0x30] sm:$0xf]
        %v509 = vld [vmem:[#allocation8 + $0x34] sm:$0xf]
        %v510 = vld [vmem:[#allocation8 + $0x38] sm:$0xf]
        %v511 = vld [vmem:[#allocation8 + $0x3c] sm:$0xf]
        %v512 = vld [vmem:[%s5] sm:$0x1]
        %v514 = vlaneseq
        %v515 = vshrl.u32 %v514, 7
        %v516 = vsub.s32 0, %v515
        %v517 = vrot.slane %v512, %v516
        %v535 = vunpack.c.l.b16 %v480
        %v536 = vunpack.c.l.b16 %v481
        %v537 = vunpack.c.l.b16 %v482
        %v538 = vunpack.c.l.b16 %v483
        %v539 = vunpack.c.l.b16 %v484
        %v540 = vunpack.c.l.b16 %v485
        %v541 = vunpack.c.l.b16 %v486
        %v542 = vunpack.c.l.b16 %v487
        %v543 = vunpack.c.l.b16 %v488
        %v544 = vunpack.c.l.b16 %v489
        %v545 = vunpack.c.l.b16 %v490
        %v546 = vunpack.c.l.b16 %v491
        %v547 = vunpack.c.l.b16 %v492
        %v548 = vunpack.c.l.b16 %v493
        %v549 = vunpack.c.l.b16 %v494
        %v550 = vunpack.c.l.b16 %v495
        %v551 = vpack.c.b16 %v536, %v535
        %v552 = vpack.c.b16 %v538, %v537
        %v553 = vpack.c.b16 %v540, %v539
        %v554 = vpack.c.b16 %v542, %v541
        %v555 = vpack.c.b16 %v544, %v543
        %v556 = vpack.c.b16 %v546, %v545
        %v557 = vpack.c.b16 %v548, %v547
        %v558 = vpack.c.b16 %v550, %v549
        %v583 = vunpack.c.l.b16 %v496
        %v584 = vunpack.c.l.b16 %v497
        %v585 = vunpack.c.l.b16 %v498
        %v586 = vunpack.c.l.b16 %v499
        %v587 = vunpack.c.l.b16 %v500
        %v588 = vunpack.c.l.b16 %v501
        %v589 = vunpack.c.l.b16 %v502
        %v590 = vunpack.c.l.b16 %v503
        %v591 = vunpack.c.l.b16 %v504
        %v592 = vunpack.c.l.b16 %v505
        %v593 = vunpack.c.l.b16 %v506
        %v594 = vunpack.c.l.b16 %v507
        %v595 = vunpack.c.l.b16 %v508
        %v596 = vunpack.c.l.b16 %v509
        %v597 = vunpack.c.l.b16 %v510
        %v598 = vunpack.c.l.b16 %v511
        %v599 = vpack.c.b16 %v584, %v583
        %v600 = vpack.c.b16 %v586, %v585
        %v601 = vpack.c.b16 %v588, %v587
        %v602 = vpack.c.b16 %v590, %v589
        %v603 = vpack.c.b16 %v592, %v591
        %v604 = vpack.c.b16 %v594, %v593
        %v605 = vpack.c.b16 %v596, %v595
        %v606 = vpack.c.b16 %v598, %v597
        %615 = vmatprep.subr.bf16.mxu0 0
        %616 = vmatpush1.bf16.msra.mxu0 %v599
        %617 = vmatprep.subr.bf16.mxu0 0
        %618 = vmatpush1.bf16.msra.mxu0 %v600
        %619 = vmatprep.subr.bf16.mxu0 0
        %620 = vmatpush1.bf16.msra.mxu0 %v601
        %621 = vmatprep.subr.bf16.mxu0 0
        %622 = vmatpush1.bf16.msra.mxu0 %v602
        %623 = vmatprep.subr.bf16.mxu0 0
        %624 = vmatpush1.bf16.msra.mxu0 %v603
        %625 = vmatprep.subr.bf16.mxu0 0
        %626 = vmatpush1.bf16.msra.mxu0 %v604
        %627 = vmatprep.subr.bf16.mxu0 0
        %628 = vmatpush1.bf16.msra.mxu0 %v605
        %629 = vmatprep.subr.bf16.mxu0 0
        %630 = vmatpush1.bf16.msra.mxu0 %v606
        %631 = vmatprep.subr.bf16.mxu0 0
        %632 = vmatpush1.bf16.msra.mxu0 0
        %633 = vmatprep.subr.bf16.mxu0 0
        %634 = vmatpush1.bf16.msra.mxu0 0
        %635 = vmatprep.subr.bf16.mxu0 0
        %636 = vmatpush1.bf16.msra.mxu0 0
        %637 = vmatprep.subr.bf16.mxu0 0
        %638 = vmatpush1.bf16.msra.mxu0 0
        %639 = vmatprep.subr.bf16.mxu0 0
        %640 = vmatpush1.bf16.msra.mxu0 0
        %641 = vmatprep.subr.bf16.mxu0 0
        %642 = vmatpush1.bf16.msra.mxu0 0
        %643 = vmatprep.subr.bf16.mxu0 0
        %644 = vmatpush1.bf16.msra.mxu0 0
        %645 = vmatprep.subr.bf16.mxu0 0
        %646 = vmatpush1.bf16.msra.mxu0 0
        %647 = vmatprep.mubr.bf16.mxu0 0
        %648 = vmatmul.mubr.bf16.gmra.mrb[0].mxu0 %v551
        %v649 = vpop.f32.mrb[0].mxu0
        %v650 = vadd.f32 %v517, %v649
        %v651 = vpop.f32.mrb[0].mxu0
        %v652 = vpop.f32.mrb[0].mxu0
        %v653 = vadd.f32 %v517, %v652
        %v654 = vpop.f32.mrb[0].mxu0
        %655 = vmatprep.mubr.bf16.mxu0 0
        %656 = vmatmul.mubr.bf16.gmra.mrb[0].mxu0 %v552
        %v657 = vpop.f32.mrb[0].mxu0
        %v658 = vadd.f32 %v517, %v657
        %v659 = vpop.f32.mrb[0].mxu0
        %v660 = vpop.f32.mrb[0].mxu0
        %v661 = vadd.f32 %v517, %v660
        %v662 = vpop.f32.mrb[0].mxu0
        %663 = vmatprep.mubr.bf16.mxu0 0
        %664 = vmatmul.mubr.bf16.gmra.mrb[0].mxu0 %v553
        %v665 = vpop.f32.mrb[0].mxu0
        %v666 = vadd.f32 %v517, %v665
        %v667 = vpop.f32.mrb[0].mxu0
        %v668 = vpop.f32.mrb[0].mxu0
        %v669 = vadd.f32 %v517, %v668
        %v670 = vpop.f32.mrb[0].mxu0
        %671 = vmatprep.mubr.bf16.mxu0 0
        %672 = vmatmul.mubr.bf16.gmra.mrb[0].mxu0 %v554
        %v673 = vpop.f32.mrb[0].mxu0
        %v674 = vadd.f32 %v517, %v673
        %v675 = vpop.f32.mrb[0].mxu0
        %v676 = vpop.f32.mrb[0].mxu0
        %v677 = vadd.f32 %v517, %v676
        %v678 = vpop.f32.mrb[0].mxu0
        %679 = vmatprep.mubr.bf16.mxu0 0
        %680 = vmatmul.mubr.bf16.gmra.mrb[0].mxu0 %v555
        %v681 = vpop.f32.mrb[0].mxu0
        %v682 = vadd.f32 %v517, %v681
        %v683 = vpop.f32.mrb[0].mxu0
        %v684 = vpop.f32.mrb[0].mxu0
        %v685 = vadd.f32 %v517, %v684
        %v686 = vpop.f32.mrb[0].mxu0
        %687 = vmatprep.mubr.bf16.mxu0 0
        %688 = vmatmul.mubr.bf16.gmra.mrb[0].mxu0 %v556
        %v689 = vpop.f32.mrb[0].mxu0
        %v690 = vadd.f32 %v517, %v689
        %v691 = vpop.f32.mrb[0].mxu0
        %v692 = vpop.f32.mrb[0].mxu0
        %v693 = vadd.f32 %v517, %v692
        %v694 = vpop.f32.mrb[0].mxu0
        %695 = vmatprep.mubr.bf16.mxu0 0
        %696 = vmatmul.mubr.bf16.gmra.mrb[0].mxu0 %v557
        %v697 = vpop.f32.mrb[0].mxu0
        %v698 = vadd.f32 %v517, %v697
        %v699 = vpop.f32.mrb[0].mxu0
        %v700 = vpop.f32.mrb[0].mxu0
        %v701 = vadd.f32 %v517, %v700
        %v702 = vpop.f32.mrb[0].mxu0
        %703 = vmatprep.mubr.bf16.mxu0 0
        %704 = vmatmul.mubr.bf16.gmra.mrb[0].mxu0 %v558
        %v705 = vpop.f32.mrb[0].mxu0
        %v706 = vadd.f32 %v517, %v705
        %v707 = vpop.f32.mrb[0].mxu0
        %v708 = vpop.f32.mrb[0].mxu0
        %v709 = vadd.f32 %v517, %v708
        %v710 = vpop.f32.mrb[0].mxu0
        %711 = vdwg.mxu0
        %v712 = vpack.c.bf16 %v653, %v650
        %v713 = vpack.c.bf16 %v661, %v658
        %v714 = vpack.c.bf16 %v669, %v666
        %v715 = vpack.c.bf16 %v677, %v674
        %v716 = vpack.c.bf16 %v685, %v682
        %v717 = vpack.c.bf16 %v693, %v690
        %v718 = vpack.c.bf16 %v701, %v698
        %v719 = vpack.c.bf16 %v709, %v706
        %v720 = vld [vmem:[#allocation9] sm:$0xf]
        %v721 = vld [vmem:[#allocation9 + $0x4] sm:$0xf]
        %v722 = vld [vmem:[#allocation9 + $0x8] sm:$0xf]
        %v723 = vld [vmem:[#allocation9 + $0xc] sm:$0xf]
        %v724 = vld [vmem:[#allocation9 + $0x10] sm:$0xf]
        %v725 = vld [vmem:[#allocation9 + $0x14] sm:$0xf]
        %v726 = vld [vmem:[#allocation9 + $0x18] sm:$0xf]
        %v727 = vld [vmem:[#allocation9 + $0x1c] sm:$0xf]
        %v728 = vld [vmem:[#allocation9 + $0x20] sm:$0xf]
        %v729 = vld [vmem:[#allocation9 + $0x24] sm:$0xf]
        %v730 = vld [vmem:[#allocation9 + $0x28] sm:$0xf]
        %v731 = vld [vmem:[#allocation9 + $0x2c] sm:$0xf]
        %v732 = vld [vmem:[#allocation9 + $0x30] sm:$0xf]
        %v733 = vld [vmem:[#allocation9 + $0x34] sm:$0xf]
        %v734 = vld [vmem:[#allocation9 + $0x38] sm:$0xf]
        %v735 = vld [vmem:[#allocation9 + $0x3c] sm:$0xf]
        %v736 = vld [vmem:[%s6] sm:$0x1]
        %v738 = vlaneseq
        %v739 = vshrl.u32 %v738, 7
        %v740 = vsub.s32 0, %v739
        %v741 = vrot.slane %v736, %v740
        %v759 = vunpack.c.l.b16 %v720
        %v760 = vunpack.c.l.b16 %v721
        %v761 = vunpack.c.l.b16 %v722
        %v762 = vunpack.c.l.b16 %v723
        %v763 = vunpack.c.l.b16 %v724
        %v764 = vunpack.c.l.b16 %v725
        %v765 = vunpack.c.l.b16 %v726
        %v766 = vunpack.c.l.b16 %v727
        %v767 = vunpack.c.l.b16 %v728
        %v768 = vunpack.c.l.b16 %v729
        %v769 = vunpack.c.l.b16 %v730
        %v770 = vunpack.c.l.b16 %v731
        %v771 = vunpack.c.l.b16 %v732
        %v772 = vunpack.c.l.b16 %v733
        %v773 = vunpack.c.l.b16 %v734
        %v774 = vunpack.c.l.b16 %v735
        %v775 = vpack.c.b16 %v760, %v759
        %v776 = vpack.c.b16 %v762, %v761
        %v777 = vpack.c.b16 %v764, %v763
        %v778 = vpack.c.b16 %v766, %v765
        %v779 = vpack.c.b16 %v768, %v767
        %v780 = vpack.c.b16 %v770, %v769
        %v781 = vpack.c.b16 %v772, %v771
        %v782 = vpack.c.b16 %v774, %v773
        %791 = vmatprep.subr.bf16.mxu0 0
        %792 = vmatpush1.bf16.msra.mxu0 %v775
        %793 = vmatprep.subr.bf16.mxu0 0
        %794 = vmatpush1.bf16.msra.mxu0 %v776
        %795 = vmatprep.subr.bf16.mxu0 0
        %796 = vmatpush1.bf16.msra.mxu0 %v777
        %797 = vmatprep.subr.bf16.mxu0 0
        %798 = vmatpush1.bf16.msra.mxu0 %v778
        %799 = vmatprep.subr.bf16.mxu0 0
        %800 = vmatpush1.bf16.msra.mxu0 %v779
        %801 = vmatprep.subr.bf16.mxu0 0
        %802 = vmatpush1.bf16.msra.mxu0 %v780
        %803 = vmatprep.subr.bf16.mxu0 0
        %804 = vmatpush1.bf16.msra.mxu0 %v781
        %805 = vmatprep.subr.bf16.mxu0 0
        %806 = vmatpush1.bf16.msra.mxu0 %v782
        %807 = vmatprep.subr.bf16.mxu0 0
        %808 = vmatpush1.bf16.msra.mxu0 0
        %809 = vmatprep.subr.bf16.mxu0 0
        %810 = vmatpush1.bf16.msra.mxu0 0
        %811 = vmatprep.subr.bf16.mxu0 0
        %812 = vmatpush1.bf16.msra.mxu0 0
        %813 = vmatprep.subr.bf16.mxu0 0
        %814 = vmatpush1.bf16.msra.mxu0 0
        %815 = vmatprep.subr.bf16.mxu0 0
        %816 = vmatpush1.bf16.msra.mxu0 0
        %817 = vmatprep.subr.bf16.mxu0 0
        %818 = vmatpush1.bf16.msra.mxu0 0
        %819 = vmatprep.subr.bf16.mxu0 0
        %820 = vmatpush1.bf16.msra.mxu0 0
        %821 = vmatprep.subr.bf16.mxu0 0
        %822 = vmatpush1.bf16.msra.mxu0 0
        %823 = vmatprep.mubr.bf16.mxu0 0
        %824 = vmatmul.mubr.bf16.gmra.mrb[0].mxu0 %v551
        %v825 = vpop.f32.mrb[0].mxu0
        %v826 = vadd.f32 %v741, %v825
        %v827 = vpop.f32.mrb[0].mxu0
        %v828 = vpop.f32.mrb[0].mxu0
        %v829 = vadd.f32 %v741, %v828
        %v830 = vpop.f32.mrb[0].mxu0
        %831 = vmatprep.mubr.bf16.mxu0 0
        %832 = vmatmul.mubr.bf16.gmra.mrb[0].mxu0 %v552
        %v833 = vpop.f32.mrb[0].mxu0
        %v834 = vadd.f32 %v741, %v833
        %v835 = vpop.f32.mrb[0].mxu0
        %v836 = vpop.f32.mrb[0].mxu0
        %v837 = vadd.f32 %v741, %v836
        %v838 = vpop.f32.mrb[0].mxu0
        %839 = vmatprep.mubr.bf16.mxu0 0
        %840 = vmatmul.mubr.bf16.gmra.mrb[0].mxu0 %v553
        %v841 = vpop.f32.mrb[0].mxu0
        %v842 = vadd.f32 %v741, %v841
        %v843 = vpop.f32.mrb[0].mxu0
        %v844 = vpop.f32.mrb[0].mxu0
        %v845 = vadd.f32 %v741, %v844
        %v846 = vpop.f32.mrb[0].mxu0
        %847 = vmatprep.mubr.bf16.mxu0 0
        %848 = vmatmul.mubr.bf16.gmra.mrb[0].mxu0 %v554
        %v849 = vpop.f32.mrb[0].mxu0
        %v850 = vadd.f32 %v741, %v849
        %v851 = vpop.f32.mrb[0].mxu0
        %v852 = vpop.f32.mrb[0].mxu0
        %v853 = vadd.f32 %v741, %v852
        %v854 = vpop.f32.mrb[0].mxu0
        %855 = vmatprep.mubr.bf16.mxu0 0
        %856 = vmatmul.mubr.bf16.gmra.mrb[0].mxu0 %v555
        %v857 = vpop.f32.mrb[0].mxu0
        %v858 = vadd.f32 %v741, %v857
        %v859 = vpop.f32.mrb[0].mxu0
        %v860 = vpop.f32.mrb[0].mxu0
        %v861 = vadd.f32 %v741, %v860
        %v862 = vpop.f32.mrb[0].mxu0
        %863 = vmatprep.mubr.bf16.mxu0 0
        %864 = vmatmul.mubr.bf16.gmra.mrb[0].mxu0 %v556
        %v865 = vpop.f32.mrb[0].mxu0
        %v866 = vadd.f32 %v741, %v865
        %v867 = vpop.f32.mrb[0].mxu0
        %v868 = vpop.f32.mrb[0].mxu0
        %v869 = vadd.f32 %v741, %v868
        %v870 = vpop.f32.mrb[0].mxu0
        %871 = vmatprep.mubr.bf16.mxu0 0
        %872 = vmatmul.mubr.bf16.gmra.mrb[0].mxu0 %v557
        %v873 = vpop.f32.mrb[0].mxu0
        %v874 = vadd.f32 %v741, %v873
        %v875 = vpop.f32.mrb[0].mxu0
        %v876 = vpop.f32.mrb[0].mxu0
        %v877 = vadd.f32 %v741, %v876
        %v878 = vpop.f32.mrb[0].mxu0
        %879 = vmatprep.mubr.bf16.mxu0 0
        %880 = vmatmul.mubr.bf16.gmra.mrb[0].mxu0 %v558
        %v881 = vpop.f32.mrb[0].mxu0
        %v882 = vadd.f32 %v741, %v881
        %v883 = vpop.f32.mrb[0].mxu0
        %v884 = vpop.f32.mrb[0].mxu0
        %v885 = vadd.f32 %v741, %v884
        %v886 = vpop.f32.mrb[0].mxu0
        %887 = vdwg.mxu0
        %v888 = vpack.c.bf16 %v829, %v826
        %v889 = vpack.c.bf16 %v837, %v834
        %v890 = vpack.c.bf16 %v845, %v842
        %v891 = vpack.c.bf16 %v853, %v850
        %v892 = vpack.c.bf16 %v861, %v858
        %v893 = vpack.c.bf16 %v869, %v866
        %v894 = vpack.c.bf16 %v877, %v874
        %v895 = vpack.c.bf16 %v885, %v882
        %v896 = vld [vmem:[#allocation11] sm:$0xf]
        %v897 = vld [vmem:[#allocation11 + $0x4] sm:$0xf]
        %v898 = vld [vmem:[#allocation11 + $0x8] sm:$0xf]
        %v899 = vld [vmem:[#allocation11 + $0xc] sm:$0xf]
        %v900 = vld [vmem:[#allocation11 + $0x10] sm:$0xf]
        %v901 = vld [vmem:[#allocation11 + $0x14] sm:$0xf]
        %v902 = vld [vmem:[#allocation11 + $0x18] sm:$0xf]
        %v903 = vld [vmem:[#allocation11 + $0x1c] sm:$0xf]
        %v904 = vld [vmem:[#allocation11 + $0x20] sm:$0xf]
        %v905 = vld [vmem:[#allocation11 + $0x24] sm:$0xf]
        %v906 = vld [vmem:[#allocation11 + $0x28] sm:$0xf]
        %v907 = vld [vmem:[#allocation11 + $0x2c] sm:$0xf]
        %v908 = vld [vmem:[#allocation11 + $0x30] sm:$0xf]
        %v909 = vld [vmem:[#allocation11 + $0x34] sm:$0xf]
        %v910 = vld [vmem:[#allocation11 + $0x38] sm:$0xf]
        %v911 = vld [vmem:[#allocation11 + $0x3c] sm:$0xf]
        %v912 = vld [vmem:[%s7] sm:$0x1]
        %v914 = vlaneseq
        %v915 = vshrl.u32 %v914, 7
        %v916 = vsub.s32 0, %v915
        %v917 = vrot.slane %v912, %v916
        %v935 = vunpack.c.l.b16 %v896
        %v936 = vunpack.c.l.b16 %v897
        %v937 = vunpack.c.l.b16 %v898
        %v938 = vunpack.c.l.b16 %v899
        %v939 = vunpack.c.l.b16 %v900
        %v940 = vunpack.c.l.b16 %v901
        %v941 = vunpack.c.l.b16 %v902
        %v942 = vunpack.c.l.b16 %v903
        %v943 = vunpack.c.l.b16 %v904
        %v944 = vunpack.c.l.b16 %v905
        %v945 = vunpack.c.l.b16 %v906
        %v946 = vunpack.c.l.b16 %v907
        %v947 = vunpack.c.l.b16 %v908
        %v948 = vunpack.c.l.b16 %v909
        %v949 = vunpack.c.l.b16 %v910
        %v950 = vunpack.c.l.b16 %v911
        %v951 = vpack.c.b16 %v936, %v935
        %v952 = vpack.c.b16 %v938, %v937
        %v953 = vpack.c.b16 %v940, %v939
        %v954 = vpack.c.b16 %v942, %v941
        %v955 = vpack.c.b16 %v944, %v943
        %v956 = vpack.c.b16 %v946, %v945
        %v957 = vpack.c.b16 %v948, %v947
        %v958 = vpack.c.b16 %v950, %v949
        %967 = vmatprep.subr.bf16.mxu0 0
        %968 = vmatpush1.bf16.msra.mxu0 %v951
        %969 = vmatprep.subr.bf16.mxu0 0
        %970 = vmatpush1.bf16.msra.mxu0 %v952
        %971 = vmatprep.subr.bf16.mxu0 0
        %972 = vmatpush1.bf16.msra.mxu0 %v953
        %973 = vmatprep.subr.bf16.mxu0 0
        %974 = vmatpush1.bf16.msra.mxu0 %v954
        %975 = vmatprep.subr.bf16.mxu0 0
        %976 = vmatpush1.bf16.msra.mxu0 %v955
        %977 = vmatprep.subr.bf16.mxu0 0
        %978 = vmatpush1.bf16.msra.mxu0 %v956
        %979 = vmatprep.subr.bf16.mxu0 0
        %980 = vmatpush1.bf16.msra.mxu0 %v957
        %981 = vmatprep.subr.bf16.mxu0 0
        %982 = vmatpush1.bf16.msra.mxu0 %v958
        %983 = vmatprep.subr.bf16.mxu0 0
        %984 = vmatpush1.bf16.msra.mxu0 0
        %985 = vmatprep.subr.bf16.mxu0 0
        %986 = vmatpush1.bf16.msra.mxu0 0
        %987 = vmatprep.subr.bf16.mxu0 0
        %988 = vmatpush1.bf16.msra.mxu0 0
        %989 = vmatprep.subr.bf16.mxu0 0
        %990 = vmatpush1.bf16.msra.mxu0 0
        %991 = vmatprep.subr.bf16.mxu0 0
        %992 = vmatpush1.bf16.msra.mxu0 0
        %993 = vmatprep.subr.bf16.mxu0 0
        %994 = vmatpush1.bf16.msra.mxu0 0
        %995 = vmatprep.subr.bf16.mxu0 0
        %996 = vmatpush1.bf16.msra.mxu0 0
        %997 = vmatprep.subr.bf16.mxu0 0
        %998 = vmatpush1.bf16.msra.mxu0 0
        %999 = vmatprep.mubr.bf16.mxu0 0
        %1000 = vmatmul.mubr.bf16.gmra.mrb[0].mxu0 %v551
        %v1001 = vpop.f32.mrb[0].mxu0
        %v1002 = vadd.f32 %v917, %v1001
        %v1003 = vpop.f32.mrb[0].mxu0
        %v1004 = vpop.f32.mrb[0].mxu0
        %v1005 = vadd.f32 %v917, %v1004
        %v1006 = vpop.f32.mrb[0].mxu0
        %1007 = vmatprep.mubr.bf16.mxu0 0
        %1008 = vmatmul.mubr.bf16.gmra.mrb[0].mxu0 %v552
        %v1009 = vpop.f32.mrb[0].mxu0
        %v1010 = vadd.f32 %v917, %v1009
        %v1011 = vpop.f32.mrb[0].mxu0
        %v1012 = vpop.f32.mrb[0].mxu0
        %v1013 = vadd.f32 %v917, %v1012
        %v1014 = vpop.f32.mrb[0].mxu0
        %1015 = vmatprep.mubr.bf16.mxu0 0
        %1016 = vmatmul.mubr.bf16.gmra.mrb[0].mxu0 %v553
        %v1017 = vpop.f32.mrb[0].mxu0
        %v1018 = vadd.f32 %v917, %v1017
        %v1019 = vpop.f32.mrb[0].mxu0
        %v1020 = vpop.f32.mrb[0].mxu0
        %v1021 = vadd.f32 %v917, %v1020
        %v1022 = vpop.f32.mrb[0].mxu0
        %1023 = vmatprep.mubr.bf16.mxu0 0
        %1024 = vmatmul.mubr.bf16.gmra.mrb[0].mxu0 %v554
        %v1025 = vpop.f32.mrb[0].mxu0
        %v1026 = vadd.f32 %v917, %v1025
        %v1027 = vpop.f32.mrb[0].mxu0
        %v1028 = vpop.f32.mrb[0].mxu0
        %v1029 = vadd.f32 %v917, %v1028
        %v1030 = vpop.f32.mrb[0].mxu0
        %1031 = vmatprep.mubr.bf16.mxu0 0
        %1032 = vmatmul.mubr.bf16.gmra.mrb[0].mxu0 %v555
        %v1033 = vpop.f32.mrb[0].mxu0
        %v1034 = vadd.f32 %v917, %v1033
        %v1035 = vpop.f32.mrb[0].mxu0
        %v1036 = vpop.f32.mrb[0].mxu0
        %v1037 = vadd.f32 %v917, %v1036
        %v1038 = vpop.f32.mrb[0].mxu0
        %1039 = vmatprep.mubr.bf16.mxu0 0
        %1040 = vmatmul.mubr.bf16.gmra.mrb[0].mxu0 %v556
        %v1041 = vpop.f32.mrb[0].mxu0
        %v1042 = vadd.f32 %v917, %v1041
        %v1043 = vpop.f32.mrb[0].mxu0
        %v1044 = vpop.f32.mrb[0].mxu0
        %v1045 = vadd.f32 %v917, %v1044
        %v1046 = vpop.f32.mrb[0].mxu0
        %1047 = vmatprep.mubr.bf16.mxu0 0
        %1048 = vmatmul.mubr.bf16.gmra.mrb[0].mxu0 %v557
        %v1049 = vpop.f32.mrb[0].mxu0
        %v1050 = vadd.f32 %v917, %v1049
        %v1051 = vpop.f32.mrb[0].mxu0
        %v1052 = vpop.f32.mrb[0].mxu0
        %v1053 = vadd.f32 %v917, %v1052
        %v1054 = vpop.f32.mrb[0].mxu0
        %1055 = vmatprep.mubr.bf16.mxu0 0
        %1056 = vmatmul.mubr.bf16.gmra.mrb[0].mxu0 %v558
        %v1057 = vpop.f32.mrb[0].mxu0
        %v1058 = vadd.f32 %v917, %v1057
        %v1059 = vpop.f32.mrb[0].mxu0
        %v1060 = vpop.f32.mrb[0].mxu0
        %v1061 = vadd.f32 %v917, %v1060
        %v1062 = vpop.f32.mrb[0].mxu0
        %1063 = vdwg.mxu0
        %v1064 = vpack.c.bf16 %v1005, %v1002
        %v1065 = vpack.c.bf16 %v1013, %v1010
        %v1066 = vpack.c.bf16 %v1021, %v1018
        %v1067 = vpack.c.bf16 %v1029, %v1026
        %v1068 = vpack.c.bf16 %v1037, %v1034
        %v1069 = vpack.c.bf16 %v1045, %v1042
        %v1070 = vpack.c.bf16 %v1053, %v1050
        %v1071 = vpack.c.bf16 %v1061, %v1058
        %v1072 = vld [vmem:[%s419] sm:$0xf]
        %v1073 = vld [vmem:[%s419 + $0x4] sm:$0xf]
        %v1074 = vld [vmem:[%s419 + $0x8] sm:$0xf]
        %v1075 = vld [vmem:[%s419 + $0xc] sm:$0xf]
        %v1076 = vld [vmem:[%s419 + $0x10] sm:$0xf]
        %v1077 = vld [vmem:[%s419 + $0x14] sm:$0xf]
        %v1078 = vld [vmem:[%s419 + $0x18] sm:$0xf]
        %v1079 = vld [vmem:[%s419 + $0x1c] sm:$0xf]
        %v1080 = vld [vmem:[%s419 + $0x20] sm:$0xf]
        %v1081 = vld [vmem:[%s419 + $0x24] sm:$0xf]
        %v1082 = vld [vmem:[%s419 + $0x28] sm:$0xf]
        %v1083 = vld [vmem:[%s419 + $0x2c] sm:$0xf]
        %v1084 = vld [vmem:[%s419 + $0x30] sm:$0xf]
        %v1085 = vld [vmem:[%s419 + $0x34] sm:$0xf]
        %v1086 = vld [vmem:[%s419 + $0x38] sm:$0xf]
        %v1087 = vld [vmem:[%s419 + $0x3c] sm:$0xf]
        %v1088 = vunpack.c.l.bf16 %v1072
        %v1089 = vunpack.c.l.bf16 %v1073
        %v1090 = vunpack.c.l.bf16 %v1074
        %v1091 = vunpack.c.l.bf16 %v1075
        %v1092 = vunpack.c.l.bf16 %v1076
        %v1093 = vunpack.c.l.bf16 %v1077
        %v1094 = vunpack.c.l.bf16 %v1078
        %v1095 = vunpack.c.l.bf16 %v1079
        %v1096 = vunpack.c.l.bf16 %v1080
        %v1097 = vunpack.c.l.bf16 %v1081
        %v1098 = vunpack.c.l.bf16 %v1082
        %v1099 = vunpack.c.l.bf16 %v1083
        %v1100 = vunpack.c.l.bf16 %v1084
        %v1101 = vunpack.c.l.bf16 %v1085
        %v1102 = vunpack.c.l.bf16 %v1086
        %v1103 = vunpack.c.l.bf16 %v1087
        %vm1104 = vcmask 130048
        %v1106 = vsel %vm1104, %v712, 0
        %v1109 = vsel %vm1104, %v713, 0
        %v1112 = vsel %vm1104, %v714, 0
        %v1115 = vsel %vm1104, %v715, 0
        %v1118 = vsel %vm1104, %v716, 0
        %v1121 = vsel %vm1104, %v717, 0
        %v1124 = vsel %vm1104, %v718, 0
        %v1127 = vsel %vm1104, %v719, 0
        %v1130 = vsel %vm1104, %v888, 0
        %v1133 = vsel %vm1104, %v889, 0
        %v1136 = vsel %vm1104, %v890, 0
        %v1139 = vsel %vm1104, %v891, 0
        %v1142 = vsel %vm1104, %v892, 0
        %v1145 = vsel %vm1104, %v893, 0
        %v1148 = vsel %vm1104, %v894, 0
        %v1151 = vsel %vm1104, %v895, 0
        %1153 = vmatprep.subr.bf16.mxu0 0
        %1154 = vmatpush1.bf16.xpose.msra.mxu0 %v1130
        %1155 = vmatprep.subr.bf16.mxu0 0
        %1156 = vmatpush1.bf16.xpose.msra.mxu0 %v1133
        %1157 = vmatprep.subr.bf16.mxu0 0
        %1158 = vmatpush1.bf16.xpose.msra.mxu0 %v1136
        %1159 = vmatprep.subr.bf16.mxu0 0
        %1160 = vmatpush1.bf16.xpose.msra.mxu0 %v1139
        %1161 = vmatprep.subr.bf16.mxu0 0
        %1162 = vmatpush1.bf16.xpose.msra.mxu0 %v1142
        %1163 = vmatprep.subr.bf16.mxu0 0
        %1164 = vmatpush1.bf16.xpose.msra.mxu0 %v1145
        %1165 = vmatprep.subr.bf16.mxu0 0
        %1166 = vmatpush1.bf16.xpose.msra.mxu0 %v1148
        %1167 = vmatprep.subr.bf16.mxu0 0
        %1168 = vmatpush1.bf16.xpose.msra.mxu0 %v1151
        %1169 = vmatprep.subr.bf16.mxu0 0
        %1170 = vmatpush1.bf16.xpose.msra.mxu0 0
        %1171 = vmatprep.subr.bf16.mxu0 0
        %1172 = vmatpush1.bf16.xpose.msra.mxu0 0
        %1173 = vmatprep.subr.bf16.mxu0 0
        %1174 = vmatpush1.bf16.xpose.msra.mxu0 0
        %1175 = vmatprep.subr.bf16.mxu0 0
        %1176 = vmatpush1.bf16.xpose.msra.mxu0 0
        %1177 = vmatprep.subr.bf16.mxu0 0
        %1178 = vmatpush1.bf16.xpose.msra.mxu0 0
        %1179 = vmatprep.subr.bf16.mxu0 0
        %1180 = vmatpush1.bf16.xpose.msra.mxu0 0
        %1181 = vmatprep.subr.bf16.mxu0 0
        %1182 = vmatpush1.bf16.xpose.msra.mxu0 0
        %1183 = vmatprep.subr.bf16.mxu0 0
        %1184 = vmatpush1.bf16.xpose.msra.mxu0 0
        %1185 = vmatprep.mubr.bf16.mxu0 0
        %1186 = vmatmul.mubr.bf16.gmra.mrb[0].mxu0 %v1106
        %v1187 = vpop.f32.mrb[0].mxu0
        %v1188 = vadd.f32 %v1088, %v1187
        %v1189 = vpop.f32.mrb[0].mxu0
        %v1190 = vpop.f32.mrb[0].mxu0
        %v1191 = vadd.f32 %v1089, %v1190
        %v1192 = vpop.f32.mrb[0].mxu0
        %1193 = vmatprep.mubr.bf16.mxu0 0
        %1194 = vmatmul.mubr.bf16.gmra.mrb[0].mxu0 %v1109
        %v1195 = vpop.f32.mrb[0].mxu0
        %v1196 = vadd.f32 %v1090, %v1195
        %v1197 = vpop.f32.mrb[0].mxu0
        %v1198 = vpop.f32.mrb[0].mxu0
        %v1199 = vadd.f32 %v1091, %v1198
        %v1200 = vpop.f32.mrb[0].mxu0
        %1201 = vmatprep.mubr.bf16.mxu0 0
        %1202 = vmatmul.mubr.bf16.gmra.mrb[0].mxu0 %v1112
        %v1203 = vpop.f32.mrb[0].mxu0
        %v1204 = vadd.f32 %v1092, %v1203
        %v1205 = vpop.f32.mrb[0].mxu0
        %v1206 = vpop.f32.mrb[0].mxu0
        %v1207 = vadd.f32 %v1093, %v1206
        %v1208 = vpop.f32.mrb[0].mxu0
        %1209 = vmatprep.mubr.bf16.mxu0 0
        %1210 = vmatmul.mubr.bf16.gmra.mrb[0].mxu0 %v1115
        %v1211 = vpop.f32.mrb[0].mxu0
        %v1212 = vadd.f32 %v1094, %v1211
        %v1213 = vpop.f32.mrb[0].mxu0
        %v1214 = vpop.f32.mrb[0].mxu0
        %v1215 = vadd.f32 %v1095, %v1214
        %v1216 = vpop.f32.mrb[0].mxu0
        %1217 = vmatprep.mubr.bf16.mxu0 0
        %1218 = vmatmul.mubr.bf16.gmra.mrb[0].mxu0 %v1118
        %v1219 = vpop.f32.mrb[0].mxu0
        %v1220 = vadd.f32 %v1096, %v1219
        %v1221 = vpop.f32.mrb[0].mxu0
        %v1222 = vpop.f32.mrb[0].mxu0
        %v1223 = vadd.f32 %v1097, %v1222
        %v1224 = vpop.f32.mrb[0].mxu0
        %1225 = vmatprep.mubr.bf16.mxu0 0
        %1226 = vmatmul.mubr.bf16.gmra.mrb[0].mxu0 %v1121
        %v1227 = vpop.f32.mrb[0].mxu0
        %v1228 = vadd.f32 %v1098, %v1227
        %v1229 = vpop.f32.mrb[0].mxu0
        %v1230 = vpop.f32.mrb[0].mxu0
        %v1231 = vadd.f32 %v1099, %v1230
        %v1232 = vpop.f32.mrb[0].mxu0
        %1233 = vmatprep.mubr.bf16.mxu0 0
        %1234 = vmatmul.mubr.bf16.gmra.mrb[0].mxu0 %v1124
        %v1235 = vpop.f32.mrb[0].mxu0
        %v1236 = vadd.f32 %v1100, %v1235
        %v1237 = vpop.f32.mrb[0].mxu0
        %v1238 = vpop.f32.mrb[0].mxu0
        %v1239 = vadd.f32 %v1101, %v1238
        %v1240 = vpop.f32.mrb[0].mxu0
        %1241 = vmatprep.mubr.bf16.mxu0 0
        %1242 = vmatmul.mubr.bf16.gmra.mrb[0].mxu0 %v1127
        %v1243 = vpop.f32.mrb[0].mxu0
        %v1244 = vadd.f32 %v1102, %v1243
        %v1245 = vpop.f32.mrb[0].mxu0
        %v1246 = vpop.f32.mrb[0].mxu0
        %v1247 = vadd.f32 %v1103, %v1246
        %v1248 = vpop.f32.mrb[0].mxu0
        %1249 = vdwg.mxu0
        %1250 = vmax.xlane.f32.xlu0 %v1188
        %v1251 = vpop.xlane.xlu0 %1250
        %1252 = vmax.xlane.f32.xlu0 %v1191
        %v1253 = vpop.xlane.xlu0 %1252
        %1254 = vmax.xlane.f32.xlu0 %v1196
        %v1255 = vpop.xlane.xlu0 %1254
        %1256 = vmax.xlane.f32.xlu0 %v1199
        %v1257 = vpop.xlane.xlu0 %1256
        %1258 = vmax.xlane.f32.xlu0 %v1204
        %v1259 = vpop.xlane.xlu0 %1258
        %1260 = vmax.xlane.f32.xlu0 %v1207
        %v1261 = vpop.xlane.xlu0 %1260
        %1262 = vmax.xlane.f32.xlu0 %v1212
        %v1263 = vpop.xlane.xlu0 %1262
        %1264 = vmax.xlane.f32.xlu0 %v1215
        %v1265 = vpop.xlane.xlu0 %1264
        %1266 = vmax.xlane.f32.xlu0 %v1220
        %v1267 = vpop.xlane.xlu0 %1266
        %1268 = vmax.xlane.f32.xlu0 %v1223
        %v1269 = vpop.xlane.xlu0 %1268
        %1270 = vmax.xlane.f32.xlu0 %v1228
        %v1271 = vpop.xlane.xlu0 %1270
        %1272 = vmax.xlane.f32.xlu0 %v1231
        %v1273 = vpop.xlane.xlu0 %1272
        %1274 = vmax.xlane.f32.xlu0 %v1236
        %v1275 = vpop.xlane.xlu0 %1274
        %1276 = vmax.xlane.f32.xlu0 %v1239
        %v1277 = vpop.xlane.xlu0 %1276
        %1278 = vmax.xlane.f32.xlu0 %v1244
        %v1279 = vpop.xlane.xlu0 %1278
        %1280 = vmax.xlane.f32.xlu0 %v1247
        %v1281 = vpop.xlane.xlu0 %1280
        %v1282 = vsub.f32 %v1188, %v1251
        %v1283 = vsub.f32 %v1191, %v1253
        %v1284 = vsub.f32 %v1196, %v1255
        %v1285 = vsub.f32 %v1199, %v1257
        %v1286 = vsub.f32 %v1204, %v1259
        %v1287 = vsub.f32 %v1207, %v1261
        %v1288 = vsub.f32 %v1212, %v1263
        %v1289 = vsub.f32 %v1215, %v1265
        %v1290 = vsub.f32 %v1220, %v1267
        %v1291 = vsub.f32 %v1223, %v1269
        %v1292 = vsub.f32 %v1228, %v1271
        %v1293 = vsub.f32 %v1231, %v1273
        %v1294 = vsub.f32 %v1236, %v1275
        %v1295 = vsub.f32 %v1239, %v1277
        %v1296 = vsub.f32 %v1244, %v1279
        %v1297 = vsub.f32 %v1247, %v1281
        %v1298 = vmul.f32 %v1282, 1.442695
        %v1299 = vpow.pop %v1298
        %v1300 = vmul.f32 %v1283, 1.442695
        %v1301 = vpow.pop %v1300
        %v1302 = vmul.f32 %v1284, 1.442695
        %v1303 = vpow.pop %v1302
        %v1304 = vmul.f32 %v1285, 1.442695
        %v1305 = vpow.pop %v1304
        %v1306 = vmul.f32 %v1286, 1.442695
        %v1307 = vpow.pop %v1306
        %v1308 = vmul.f32 %v1287, 1.442695
        %v1309 = vpow.pop %v1308
        %v1310 = vmul.f32 %v1288, 1.442695
        %v1311 = vpow.pop %v1310
        %v1312 = vmul.f32 %v1289, 1.442695
        %v1313 = vpow.pop %v1312
        %v1314 = vmul.f32 %v1290, 1.442695
        %v1315 = vpow.pop %v1314
        %v1316 = vmul.f32 %v1291, 1.442695
        %v1317 = vpow.pop %v1316
        %v1318 = vmul.f32 %v1292, 1.442695
        %v1319 = vpow.pop %v1318
        %v1320 = vmul.f32 %v1293, 1.442695
        %v1321 = vpow.pop %v1320
        %v1322 = vmul.f32 %v1294, 1.442695
        %v1323 = vpow.pop %v1322
        %v1324 = vmul.f32 %v1295, 1.442695
        %v1325 = vpow.pop %v1324
        %v1326 = vmul.f32 %v1296, 1.442695
        %v1327 = vpow.pop %v1326
        %v1328 = vmul.f32 %v1297, 1.442695
        %v1329 = vpow.pop %v1328
        %1330 = vadd.xlane.f32.xlu0 %v1299
        %v1331 = vpop.xlane.xlu0 %1330
        %1332 = vadd.xlane.f32.xlu0 %v1301
        %v1333 = vpop.xlane.xlu0 %1332
        %1334 = vadd.xlane.f32.xlu0 %v1303
        %v1335 = vpop.xlane.xlu0 %1334
        %1336 = vadd.xlane.f32.xlu0 %v1305
        %v1337 = vpop.xlane.xlu0 %1336
        %1338 = vadd.xlane.f32.xlu0 %v1307
        %v1339 = vpop.xlane.xlu0 %1338
        %1340 = vadd.xlane.f32.xlu0 %v1309
        %v1341 = vpop.xlane.xlu0 %1340
        %1342 = vadd.xlane.f32.xlu0 %v1311
        %v1343 = vpop.xlane.xlu0 %1342
        %1344 = vadd.xlane.f32.xlu0 %v1313
        %v1345 = vpop.xlane.xlu0 %1344
        %1346 = vadd.xlane.f32.xlu0 %v1315
        %v1347 = vpop.xlane.xlu0 %1346
        %1348 = vadd.xlane.f32.xlu0 %v1317
        %v1349 = vpop.xlane.xlu0 %1348
        %1350 = vadd.xlane.f32.xlu0 %v1319
        %v1351 = vpop.xlane.xlu0 %1350
        %1352 = vadd.xlane.f32.xlu0 %v1321
        %v1353 = vpop.xlane.xlu0 %1352
        %1354 = vadd.xlane.f32.xlu0 %v1323
        %v1355 = vpop.xlane.xlu0 %1354
        %1356 = vadd.xlane.f32.xlu0 %v1325
        %v1357 = vpop.xlane.xlu0 %1356
        %1358 = vadd.xlane.f32.xlu0 %v1327
        %v1359 = vpop.xlane.xlu0 %1358
        %1360 = vadd.xlane.f32.xlu0 %v1329
        %v1361 = vpop.xlane.xlu0 %1360
        %v1362 = vrcp.pop %v1331
        %v1363 = vmul.f32 %v1299, %v1362
        %v1364 = vrcp.pop %v1333
        %v1365 = vmul.f32 %v1301, %v1364
        %v1366 = vrcp.pop %v1335
        %v1367 = vmul.f32 %v1303, %v1366
        %v1368 = vrcp.pop %v1337
        %v1369 = vmul.f32 %v1305, %v1368
        %v1370 = vrcp.pop %v1339
        %v1371 = vmul.f32 %v1307, %v1370
        %v1372 = vrcp.pop %v1341
        %v1373 = vmul.f32 %v1309, %v1372
        %v1374 = vrcp.pop %v1343
        %v1375 = vmul.f32 %v1311, %v1374
        %v1376 = vrcp.pop %v1345
        %v1377 = vmul.f32 %v1313, %v1376
        %v1378 = vrcp.pop %v1347
        %v1379 = vmul.f32 %v1315, %v1378
        %v1380 = vrcp.pop %v1349
        %v1381 = vmul.f32 %v1317, %v1380
        %v1382 = vrcp.pop %v1351
        %v1383 = vmul.f32 %v1319, %v1382
        %v1384 = vrcp.pop %v1353
        %v1385 = vmul.f32 %v1321, %v1384
        %v1386 = vrcp.pop %v1355
        %v1387 = vmul.f32 %v1323, %v1386
        %v1388 = vrcp.pop %v1357
        %v1389 = vmul.f32 %v1325, %v1388
        %v1390 = vrcp.pop %v1359
        %v1391 = vmul.f32 %v1327, %v1390
        %v1392 = vrcp.pop %v1361
        %v1393 = vmul.f32 %v1329, %v1392
        %v1394 = vpack.c.bf16 %v1365, %v1363
        %v1395 = vpack.c.bf16 %v1369, %v1367
        %v1396 = vpack.c.bf16 %v1373, %v1371
        %v1397 = vpack.c.bf16 %v1377, %v1375
        %v1398 = vpack.c.bf16 %v1381, %v1379
        %v1399 = vpack.c.bf16 %v1385, %v1383
        %v1400 = vpack.c.bf16 %v1389, %v1387
        %v1401 = vpack.c.bf16 %v1393, %v1391
        %1402 = vmatprep.subr.bf16.mxu0 0
        %1403 = vmatpush1.bf16.msra.mxu0 %v1064
        %1404 = vmatprep.subr.bf16.mxu0 0
        %1405 = vmatpush1.bf16.msra.mxu0 %v1065
        %1406 = vmatprep.subr.bf16.mxu0 0
        %1407 = vmatpush1.bf16.msra.mxu0 %v1066
        %1408 = vmatprep.subr.bf16.mxu0 0
        %1409 = vmatpush1.bf16.msra.mxu0 %v1067
        %1410 = vmatprep.subr.bf16.mxu0 0
        %1411 = vmatpush1.bf16.msra.mxu0 %v1068
        %1412 = vmatprep.subr.bf16.mxu0 0
        %1413 = vmatpush1.bf16.msra.mxu0 %v1069
        %1414 = vmatprep.subr.bf16.mxu0 0
        %1415 = vmatpush1.bf16.msra.mxu0 %v1070
        %1416 = vmatprep.subr.bf16.mxu0 0
        %1417 = vmatpush1.bf16.msra.mxu0 %v1071
        %1418 = vmatprep.subr.bf16.mxu0 0
        %1419 = vmatpush1.bf16.msra.mxu0 0
        %1420 = vmatprep.subr.bf16.mxu0 0
        %1421 = vmatpush1.bf16.msra.mxu0 0
        %1422 = vmatprep.subr.bf16.mxu0 0
        %1423 = vmatpush1.bf16.msra.mxu0 0
        %1424 = vmatprep.subr.bf16.mxu0 0
        %1425 = vmatpush1.bf16.msra.mxu0 0
        %1426 = vmatprep.subr.bf16.mxu0 0
        %1427 = vmatpush1.bf16.msra.mxu0 0
        %1428 = vmatprep.subr.bf16.mxu0 0
        %1429 = vmatpush1.bf16.msra.mxu0 0
        %1430 = vmatprep.subr.bf16.mxu0 0
        %1431 = vmatpush1.bf16.msra.mxu0 0
        %1432 = vmatprep.subr.bf16.mxu0 0
        %1433 = vmatpush1.bf16.msra.mxu0 0
        %1434 = vmatprep.mubr.bf16.mxu0 0
        %1435 = vmatmul.mubr.bf16.gmra.mrb[0].mxu0 %v1394
        %v1436 = vpop.f32.mrb[0].mxu0
        %v1437 = vadd.f32 0.0, %v1436
        %v1438 = vpop.f32.mrb[0].mxu0
        %v1439 = vpop.f32.mrb[0].mxu0
        %v1440 = vadd.f32 0.0, %v1439
        %v1441 = vpop.f32.mrb[0].mxu0
        %1442 = vmatprep.mubr.bf16.mxu0 0
        %1443 = vmatmul.mubr.bf16.gmra.mrb[0].mxu0 %v1395
        %v1444 = vpop.f32.mrb[0].mxu0
        %v1445 = vadd.f32 0.0, %v1444
        %v1446 = vpop.f32.mrb[0].mxu0
        %v1447 = vpop.f32.mrb[0].mxu0
        %v1448 = vadd.f32 0.0, %v1447
        %v1449 = vpop.f32.mrb[0].mxu0
        %1450 = vmatprep.mubr.bf16.mxu0 0
        %1451 = vmatmul.mubr.bf16.gmra.mrb[0].mxu0 %v1396
        %v1452 = vpop.f32.mrb[0].mxu0
        %v1453 = vadd.f32 0.0, %v1452
        %v1454 = vpop.f32.mrb[0].mxu0
        %v1455 = vpop.f32.mrb[0].mxu0
        %v1456 = vadd.f32 0.0, %v1455
        %v1457 = vpop.f32.mrb[0].mxu0
        %1458 = vmatprep.mubr.bf16.mxu0 0
        %1459 = vmatmul.mubr.bf16.gmra.mrb[0].mxu0 %v1397
        %v1460 = vpop.f32.mrb[0].mxu0
        %v1461 = vadd.f32 0.0, %v1460
        %v1462 = vpop.f32.mrb[0].mxu0
        %v1463 = vpop.f32.mrb[0].mxu0
        %v1464 = vadd.f32 0.0, %v1463
        %v1465 = vpop.f32.mrb[0].mxu0
        %1466 = vmatprep.mubr.bf16.mxu0 0
        %1467 = vmatmul.mubr.bf16.gmra.mrb[0].mxu0 %v1398
        %v1468 = vpop.f32.mrb[0].mxu0
        %v1469 = vadd.f32 0.0, %v1468
        %v1470 = vpop.f32.mrb[0].mxu0
        %v1471 = vpop.f32.mrb[0].mxu0
        %v1472 = vadd.f32 0.0, %v1471
        %v1473 = vpop.f32.mrb[0].mxu0
        %1474 = vmatprep.mubr.bf16.mxu0 0
        %1475 = vmatmul.mubr.bf16.gmra.mrb[0].mxu0 %v1399
        %v1476 = vpop.f32.mrb[0].mxu0
        %v1477 = vadd.f32 0.0, %v1476
        %v1478 = vpop.f32.mrb[0].mxu0
        %v1479 = vpop.f32.mrb[0].mxu0
        %v1480 = vadd.f32 0.0, %v1479
        %v1481 = vpop.f32.mrb[0].mxu0
        %1482 = vmatprep.mubr.bf16.mxu0 0
        %1483 = vmatmul.mubr.bf16.gmra.mrb[0].mxu0 %v1400
        %v1484 = vpop.f32.mrb[0].mxu0
        %v1485 = vadd.f32 0.0, %v1484
        %v1486 = vpop.f32.mrb[0].mxu0
        %v1487 = vpop.f32.mrb[0].mxu0
        %v1488 = vadd.f32 0.0, %v1487
        %v1489 = vpop.f32.mrb[0].mxu0
        %1490 = vmatprep.mubr.bf16.mxu0 0
        %1491 = vmatmul.mubr.bf16.gmra.mrb[0].mxu0 %v1401
        %v1492 = vpop.f32.mrb[0].mxu0
        %v1493 = vadd.f32 0.0, %v1492
        %v1494 = vpop.f32.mrb[0].mxu0
        %v1495 = vpop.f32.mrb[0].mxu0
        %v1496 = vadd.f32 0.0, %v1495
        %v1497 = vpop.f32.mrb[0].mxu0
        %1498 = vdwg.mxu0
        %v1499 = vpack.c.bf16 %v1440, %v1437
        %v1500 = vpack.c.bf16 %v1448, %v1445
        %v1501 = vpack.c.bf16 %v1456, %v1453
        %v1502 = vpack.c.bf16 %v1464, %v1461
        %v1503 = vpack.c.bf16 %v1472, %v1469
        %v1504 = vpack.c.bf16 %v1480, %v1477
        %v1505 = vpack.c.bf16 %v1488, %v1485
        %v1506 = vpack.c.bf16 %v1496, %v1493
        %s1507 = scalar_lea.vmem %s419, 64 [#allocation6]
        %v1508 = vld [vmem:[%s1507] sm:$0xf]
        %v1509 = vld [vmem:[%s1507 + $0x4] sm:$0xf]
        %v1510 = vld [vmem:[%s1507 + $0x8] sm:$0xf]
        %v1511 = vld [vmem:[%s1507 + $0xc] sm:$0xf]
        %v1512 = vld [vmem:[%s1507 + $0x10] sm:$0xf]
        %v1513 = vld [vmem:[%s1507 + $0x14] sm:$0xf]
        %v1514 = vld [vmem:[%s1507 + $0x18] sm:$0xf]
        %v1515 = vld [vmem:[%s1507 + $0x1c] sm:$0xf]
        %v1516 = vld [vmem:[%s1507 + $0x20] sm:$0xf]
        %v1517 = vld [vmem:[%s1507 + $0x24] sm:$0xf]
        %v1518 = vld [vmem:[%s1507 + $0x28] sm:$0xf]
        %v1519 = vld [vmem:[%s1507 + $0x2c] sm:$0xf]
        %v1520 = vld [vmem:[%s1507 + $0x30] sm:$0xf]
        %v1521 = vld [vmem:[%s1507 + $0x34] sm:$0xf]
        %v1522 = vld [vmem:[%s1507 + $0x38] sm:$0xf]
        %v1523 = vld [vmem:[%s1507 + $0x3c] sm:$0xf]
        %v1524 = vunpack.c.l.bf16 %v1508
        %v1525 = vunpack.c.l.bf16 %v1509
        %v1526 = vunpack.c.l.bf16 %v1510
        %v1527 = vunpack.c.l.bf16 %v1511
        %v1528 = vunpack.c.l.bf16 %v1512
        %v1529 = vunpack.c.l.bf16 %v1513
        %v1530 = vunpack.c.l.bf16 %v1514
        %v1531 = vunpack.c.l.bf16 %v1515
        %v1532 = vunpack.c.l.bf16 %v1516
        %v1533 = vunpack.c.l.bf16 %v1517
        %v1534 = vunpack.c.l.bf16 %v1518
        %v1535 = vunpack.c.l.bf16 %v1519
        %v1536 = vunpack.c.l.bf16 %v1520
        %v1537 = vunpack.c.l.bf16 %v1521
        %v1538 = vunpack.c.l.bf16 %v1522
        %v1539 = vunpack.c.l.bf16 %v1523
        %1548 = vrot.lane.b32.xlu0 %v712, 112
        %v1549 = vpop.permute.xlu0 %1548
        %1550 = vrot.lane.b32.xlu0 %v713, 112
        %v1551 = vpop.permute.xlu0 %1550
        %1552 = vrot.lane.b32.xlu0 %v714, 112
        %v1553 = vpop.permute.xlu0 %1552
        %1554 = vrot.lane.b32.xlu0 %v715, 112
        %v1555 = vpop.permute.xlu0 %1554
        %1556 = vrot.lane.b32.xlu0 %v716, 112
        %v1557 = vpop.permute.xlu0 %1556
        %1558 = vrot.lane.b32.xlu0 %v717, 112
        %v1559 = vpop.permute.xlu0 %1558
        %1560 = vrot.lane.b32.xlu0 %v718, 112
        %v1561 = vpop.permute.xlu0 %1560
        %1562 = vrot.lane.b32.xlu0 %v719, 112
        %v1563 = vpop.permute.xlu0 %1562
        %1572 = vrot.lane.b32.xlu0 %v888, 112
        %v1573 = vpop.permute.xlu0 %1572
        %1574 = vrot.lane.b32.xlu0 %v889, 112
        %v1575 = vpop.permute.xlu0 %1574
        %1576 = vrot.lane.b32.xlu0 %v890, 112
        %v1577 = vpop.permute.xlu0 %1576
        %1578 = vrot.lane.b32.xlu0 %v891, 112
        %v1579 = vpop.permute.xlu0 %1578
        %1580 = vrot.lane.b32.xlu0 %v892, 112
        %v1581 = vpop.permute.xlu0 %1580
        %1582 = vrot.lane.b32.xlu0 %v893, 112
        %v1583 = vpop.permute.xlu0 %1582
        %1584 = vrot.lane.b32.xlu0 %v894, 112
        %v1585 = vpop.permute.xlu0 %1584
        %1586 = vrot.lane.b32.xlu0 %v895, 112
        %v1587 = vpop.permute.xlu0 %1586
        %v1589 = vsel %vm1104, %v1549, 0
        %v1592 = vsel %vm1104, %v1551, 0
        %v1595 = vsel %vm1104, %v1553, 0
        %v1598 = vsel %vm1104, %v1555, 0
        %v1601 = vsel %vm1104, %v1557, 0
        %v1604 = vsel %vm1104, %v1559, 0
        %v1607 = vsel %vm1104, %v1561, 0
        %v1610 = vsel %vm1104, %v1563, 0
        %v1613 = vsel %vm1104, %v1573, 0
        %v1616 = vsel %vm1104, %v1575, 0
        %v1619 = vsel %vm1104, %v1577, 0
        %v1622 = vsel %vm1104, %v1579, 0
        %v1625 = vsel %vm1104, %v1581, 0
        %v1628 = vsel %vm1104, %v1583, 0
        %v1631 = vsel %vm1104, %v1585, 0
        %v1634 = vsel %vm1104, %v1587, 0
        %1636 = vmatprep.subr.bf16.mxu0 0
        %1637 = vmatpush1.bf16.xpose.msra.mxu0 %v1613
        %1638 = vmatprep.subr.bf16.mxu0 0
        %1639 = vmatpush1.bf16.xpose.msra.mxu0 %v1616
        %1640 = vmatprep.subr.bf16.mxu0 0
        %1641 = vmatpush1.bf16.xpose.msra.mxu0 %v1619
        %1642 = vmatprep.subr.bf16.mxu0 0
        %1643 = vmatpush1.bf16.xpose.msra.mxu0 %v1622
        %1644 = vmatprep.subr.bf16.mxu0 0
        %1645 = vmatpush1.bf16.xpose.msra.mxu0 %v1625
        %1646 = vmatprep.subr.bf16.mxu0 0
        %1647 = vmatpush1.bf16.xpose.msra.mxu0 %v1628
        %1648 = vmatprep.subr.bf16.mxu0 0
        %1649 = vmatpush1.bf16.xpose.msra.mxu0 %v1631
        %1650 = vmatprep.subr.bf16.mxu0 0
        %1651 = vmatpush1.bf16.xpose.msra.mxu0 %v1634
        %1652 = vmatprep.subr.bf16.mxu0 0
        %1653 = vmatpush1.bf16.xpose.msra.mxu0 0
        %1654 = vmatprep.subr.bf16.mxu0 0
        %1655 = vmatpush1.bf16.xpose.msra.mxu0 0
        %1656 = vmatprep.subr.bf16.mxu0 0
        %1657 = vmatpush1.bf16.xpose.msra.mxu0 0
        %1658 = vmatprep.subr.bf16.mxu0 0
        %1659 = vmatpush1.bf16.xpose.msra.mxu0 0
        %1660 = vmatprep.subr.bf16.mxu0 0
        %1661 = vmatpush1.bf16.xpose.msra.mxu0 0
        %1662 = vmatprep.subr.bf16.mxu0 0
        %1663 = vmatpush1.bf16.xpose.msra.mxu0 0
        %1664 = vmatprep.subr.bf16.mxu0 0
        %1665 = vmatpush1.bf16.xpose.msra.mxu0 0
        %1666 = vmatprep.subr.bf16.mxu0 0
        %1667 = vmatpush1.bf16.xpose.msra.mxu0 0
        %1668 = vmatprep.mubr.bf16.mxu0 0
        %1669 = vmatmul.mubr.bf16.gmra.mrb[0].mxu0 %v1589
        %v1670 = vpop.f32.mrb[0].mxu0
        %v1671 = vadd.f32 %v1524, %v1670
        %v1672 = vpop.f32.mrb[0].mxu0
        %v1673 = vpop.f32.mrb[0].mxu0
        %v1674 = vadd.f32 %v1525, %v1673
        %v1675 = vpop.f32.mrb[0].mxu0
        %1676 = vmatprep.mubr.bf16.mxu0 0
        %1677 = vmatmul.mubr.bf16.gmra.mrb[0].mxu0 %v1592
        %v1678 = vpop.f32.mrb[0].mxu0
        %v1679 = vadd.f32 %v1526, %v1678
        %v1680 = vpop.f32.mrb[0].mxu0
        %v1681 = vpop.f32.mrb[0].mxu0
        %v1682 = vadd.f32 %v1527, %v1681
        %v1683 = vpop.f32.mrb[0].mxu0
        %1684 = vmatprep.mubr.bf16.mxu0 0
        %1685 = vmatmul.mubr.bf16.gmra.mrb[0].mxu0 %v1595
        %v1686 = vpop.f32.mrb[0].mxu0
        %v1687 = vadd.f32 %v1528, %v1686
        %v1688 = vpop.f32.mrb[0].mxu0
        %v1689 = vpop.f32.mrb[0].mxu0
        %v1690 = vadd.f32 %v1529, %v1689
        %v1691 = vpop.f32.mrb[0].mxu0
        %1692 = vmatprep.mubr.bf16.mxu0 0
        %1693 = vmatmul.mubr.bf16.gmra.mrb[0].mxu0 %v1598
        %v1694 = vpop.f32.mrb[0].mxu0
        %v1695 = vadd.f32 %v1530, %v1694
        %v1696 = vpop.f32.mrb[0].mxu0
        %v1697 = vpop.f32.mrb[0].mxu0
        %v1698 = vadd.f32 %v1531, %v1697
        %v1699 = vpop.f32.mrb[0].mxu0
        %1700 = vmatprep.mubr.bf16.mxu0 0
        %1701 = vmatmul.mubr.bf16.gmra.mrb[0].mxu0 %v1601
        %v1702 = vpop.f32.mrb[0].mxu0
        %v1703 = vadd.f32 %v1532, %v1702
        %v1704 = vpop.f32.mrb[0].mxu0
        %v1705 = vpop.f32.mrb[0].mxu0
        %v1706 = vadd.f32 %v1533, %v1705
        %v1707 = vpop.f32.mrb[0].mxu0
        %1708 = vmatprep.mubr.bf16.mxu0 0
        %1709 = vmatmul.mubr.bf16.gmra.mrb[0].mxu0 %v1604
        %v1710 = vpop.f32.mrb[0].mxu0
        %v1711 = vadd.f32 %v1534, %v1710
        %v1712 = vpop.f32.mrb[0].mxu0
        %v1713 = vpop.f32.mrb[0].mxu0
        %v1714 = vadd.f32 %v1535, %v1713
        %v1715 = vpop.f32.mrb[0].mxu0
        %1716 = vmatprep.mubr.bf16.mxu0 0
        %1717 = vmatmul.mubr.bf16.gmra.mrb[0].mxu0 %v1607
        %v1718 = vpop.f32.mrb[0].mxu0
        %v1719 = vadd.f32 %v1536, %v1718
        %v1720 = vpop.f32.mrb[0].mxu0
        %v1721 = vpop.f32.mrb[0].mxu0
        %v1722 = vadd.f32 %v1537, %v1721
        %v1723 = vpop.f32.mrb[0].mxu0
        %1724 = vmatprep.mubr.bf16.mxu0 0
        %1725 = vmatmul.mubr.bf16.gmra.mrb[0].mxu0 %v1610
        %v1726 = vpop.f32.mrb[0].mxu0
        %v1727 = vadd.f32 %v1538, %v1726
        %v1728 = vpop.f32.mrb[0].mxu0
        %v1729 = vpop.f32.mrb[0].mxu0
        %v1730 = vadd.f32 %v1539, %v1729
        %v1731 = vpop.f32.mrb[0].mxu0
        %1732 = vdwg.mxu0
        %1733 = vmax.xlane.f32.xlu0 %v1671
        %v1734 = vpop.xlane.xlu0 %1733
        %1735 = vmax.xlane.f32.xlu0 %v1674
        %v1736 = vpop.xlane.xlu0 %1735
        %1737 = vmax.xlane.f32.xlu0 %v1679
        %v1738 = vpop.xlane.xlu0 %1737
        %1739 = vmax.xlane.f32.xlu0 %v1682
        %v1740 = vpop.xlane.xlu0 %1739
        %1741 = vmax.xlane.f32.xlu0 %v1687
        %v1742 = vpop.xlane.xlu0 %1741
        %1743 = vmax.xlane.f32.xlu0 %v1690
        %v1744 = vpop.xlane.xlu0 %1743
        %1745 = vmax.xlane.f32.xlu0 %v1695
        %v1746 = vpop.xlane.xlu0 %1745
        %1747 = vmax.xlane.f32.xlu0 %v1698
        %v1748 = vpop.xlane.xlu0 %1747
        %1749 = vmax.xlane.f32.xlu0 %v1703
        %v1750 = vpop.xlane.xlu0 %1749
        %1751 = vmax.xlane.f32.xlu0 %v1706
        %v1752 = vpop.xlane.xlu0 %1751
        %1753 = vmax.xlane.f32.xlu0 %v1711
        %v1754 = vpop.xlane.xlu0 %1753
        %1755 = vmax.xlane.f32.xlu0 %v1714
        %v1756 = vpop.xlane.xlu0 %1755
        %1757 = vmax.xlane.f32.xlu0 %v1719
        %v1758 = vpop.xlane.xlu0 %1757
        %1759 = vmax.xlane.f32.xlu0 %v1722
        %v1760 = vpop.xlane.xlu0 %1759
        %1761 = vmax.xlane.f32.xlu0 %v1727
        %v1762 = vpop.xlane.xlu0 %1761
        %1763 = vmax.xlane.f32.xlu0 %v1730
        %v1764 = vpop.xlane.xlu0 %1763
        %v1765 = vsub.f32 %v1671, %v1734
        %v1766 = vsub.f32 %v1674, %v1736
        %v1767 = vsub.f32 %v1679, %v1738
        %v1768 = vsub.f32 %v1682, %v1740
        %v1769 = vsub.f32 %v1687, %v1742
        %v1770 = vsub.f32 %v1690, %v1744
        %v1771 = vsub.f32 %v1695, %v1746
        %v1772 = vsub.f32 %v1698, %v1748
        %v1773 = vsub.f32 %v1703, %v1750
        %v1774 = vsub.f32 %v1706, %v1752
        %v1775 = vsub.f32 %v1711, %v1754
        %v1776 = vsub.f32 %v1714, %v1756
        %v1777 = vsub.f32 %v1719, %v1758
        %v1778 = vsub.f32 %v1722, %v1760
        %v1779 = vsub.f32 %v1727, %v1762
        %v1780 = vsub.f32 %v1730, %v1764
        %v1781 = vmul.f32 %v1765, 1.442695
        %v1782 = vpow.pop %v1781
        %v1783 = vmul.f32 %v1766, 1.442695
        %v1784 = vpow.pop %v1783
        %v1785 = vmul.f32 %v1767, 1.442695
        %v1786 = vpow.pop %v1785
        %v1787 = vmul.f32 %v1768, 1.442695
        %v1788 = vpow.pop %v1787
        %v1789 = vmul.f32 %v1769, 1.442695
        %v1790 = vpow.pop %v1789
        %v1791 = vmul.f32 %v1770, 1.442695
        %v1792 = vpow.pop %v1791
        %v1793 = vmul.f32 %v1771, 1.442695
        %v1794 = vpow.pop %v1793
        %v1795 = vmul.f32 %v1772, 1.442695
        %v1796 = vpow.pop %v1795
        %v1797 = vmul.f32 %v1773, 1.442695
        %v1798 = vpow.pop %v1797
        %v1799 = vmul.f32 %v1774, 1.442695
        %v1800 = vpow.pop %v1799
        %v1801 = vmul.f32 %v1775, 1.442695
        %v1802 = vpow.pop %v1801
        %v1803 = vmul.f32 %v1776, 1.442695
        %v1804 = vpow.pop %v1803
        %v1805 = vmul.f32 %v1777, 1.442695
        %v1806 = vpow.pop %v1805
        %v1807 = vmul.f32 %v1778, 1.442695
        %v1808 = vpow.pop %v1807
        %v1809 = vmul.f32 %v1779, 1.442695
        %v1810 = vpow.pop %v1809
        %v1811 = vmul.f32 %v1780, 1.442695
        %v1812 = vpow.pop %v1811
        %1813 = vadd.xlane.f32.xlu0 %v1782
        %v1814 = vpop.xlane.xlu0 %1813
        %1815 = vadd.xlane.f32.xlu0 %v1784
        %v1816 = vpop.xlane.xlu0 %1815
        %1817 = vadd.xlane.f32.xlu0 %v1786
        %v1818 = vpop.xlane.xlu0 %1817
        %1819 = vadd.xlane.f32.xlu0 %v1788
        %v1820 = vpop.xlane.xlu0 %1819
        %1821 = vadd.xlane.f32.xlu0 %v1790
        %v1822 = vpop.xlane.xlu0 %1821
        %1823 = vadd.xlane.f32.xlu0 %v1792
        %v1824 = vpop.xlane.xlu0 %1823
        %1825 = vadd.xlane.f32.xlu0 %v1794
        %v1826 = vpop.xlane.xlu0 %1825
        %1827 = vadd.xlane.f32.xlu0 %v1796
        %v1828 = vpop.xlane.xlu0 %1827
        %1829 = vadd.xlane.f32.xlu0 %v1798
        %v1830 = vpop.xlane.xlu0 %1829
        %1831 = vadd.xlane.f32.xlu0 %v1800
        %v1832 = vpop.xlane.xlu0 %1831
        %1833 = vadd.xlane.f32.xlu0 %v1802
        %v1834 = vpop.xlane.xlu0 %1833
        %1835 = vadd.xlane.f32.xlu0 %v1804
        %v1836 = vpop.xlane.xlu0 %1835
        %1837 = vadd.xlane.f32.xlu0 %v1806
        %v1838 = vpop.xlane.xlu0 %1837
        %1839 = vadd.xlane.f32.xlu0 %v1808
        %v1840 = vpop.xlane.xlu0 %1839
        %1841 = vadd.xlane.f32.xlu0 %v1810
        %v1842 = vpop.xlane.xlu0 %1841
        %1843 = vadd.xlane.f32.xlu0 %v1812
        %v1844 = vpop.xlane.xlu0 %1843
        %v1845 = vrcp.pop %v1814
        %v1846 = vmul.f32 %v1782, %v1845
        %v1847 = vrcp.pop %v1816
        %v1848 = vmul.f32 %v1784, %v1847
        %v1849 = vrcp.pop %v1818
        %v1850 = vmul.f32 %v1786, %v1849
        %v1851 = vrcp.pop %v1820
        %v1852 = vmul.f32 %v1788, %v1851
        %v1853 = vrcp.pop %v1822
        %v1854 = vmul.f32 %v1790, %v1853
        %v1855 = vrcp.pop %v1824
        %v1856 = vmul.f32 %v1792, %v1855
        %v1857 = vrcp.pop %v1826
        %v1858 = vmul.f32 %v1794, %v1857
        %v1859 = vrcp.pop %v1828
        %v1860 = vmul.f32 %v1796, %v1859
        %v1861 = vrcp.pop %v1830
        %v1862 = vmul.f32 %v1798, %v1861
        %v1863 = vrcp.pop %v1832
        %v1864 = vmul.f32 %v1800, %v1863
        %v1865 = vrcp.pop %v1834
        %v1866 = vmul.f32 %v1802, %v1865
        %v1867 = vrcp.pop %v1836
        %v1868 = vmul.f32 %v1804, %v1867
        %v1869 = vrcp.pop %v1838
        %v1870 = vmul.f32 %v1806, %v1869
        %v1871 = vrcp.pop %v1840
        %v1872 = vmul.f32 %v1808, %v1871
        %v1873 = vrcp.pop %v1842
        %v1874 = vmul.f32 %v1810, %v1873
        %v1875 = vrcp.pop %v1844
        %v1876 = vmul.f32 %v1812, %v1875
        %v1877 = vpack.c.bf16 %v1848, %v1846
        %v1878 = vpack.c.bf16 %v1852, %v1850
        %v1879 = vpack.c.bf16 %v1856, %v1854
        %v1880 = vpack.c.bf16 %v1860, %v1858
        %v1881 = vpack.c.bf16 %v1864, %v1862
        %v1882 = vpack.c.bf16 %v1868, %v1866
        %v1883 = vpack.c.bf16 %v1872, %v1870
        %v1884 = vpack.c.bf16 %v1876, %v1874
        %1893 = vrot.lane.b32.xlu0 %v1064, 112
        %v1894 = vpop.permute.xlu0 %1893
        %1895 = vrot.lane.b32.xlu0 %v1065, 112
        %v1896 = vpop.permute.xlu0 %1895
        %1897 = vrot.lane.b32.xlu0 %v1066, 112
        %v1898 = vpop.permute.xlu0 %1897
        %1899 = vrot.lane.b32.xlu0 %v1067, 112
        %v1900 = vpop.permute.xlu0 %1899
        %1901 = vrot.lane.b32.xlu0 %v1068, 112
        %v1902 = vpop.permute.xlu0 %1901
        %1903 = vrot.lane.b32.xlu0 %v1069, 112
        %v1904 = vpop.permute.xlu0 %1903
        %1905 = vrot.lane.b32.xlu0 %v1070, 112
        %v1906 = vpop.permute.xlu0 %1905
        %1907 = vrot.lane.b32.xlu0 %v1071, 112
        %v1908 = vpop.permute.xlu0 %1907
        %1917 = vmatprep.subr.bf16.mxu0 0
        %1918 = vmatpush1.bf16.msra.mxu0 %v1894
        %1919 = vmatprep.subr.bf16.mxu0 0
        %1920 = vmatpush1.bf16.msra.mxu0 %v1896
        %1921 = vmatprep.subr.bf16.mxu0 0
        %1922 = vmatpush1.bf16.msra.mxu0 %v1898
        %1923 = vmatprep.subr.bf16.mxu0 0
        %1924 = vmatpush1.bf16.msra.mxu0 %v1900
        %1925 = vmatprep.subr.bf16.mxu0 0
        %1926 = vmatpush1.bf16.msra.mxu0 %v1902
        %1927 = vmatprep.subr.bf16.mxu0 0
        %1928 = vmatpush1.bf16.msra.mxu0 %v1904
        %1929 = vmatprep.subr.bf16.mxu0 0
        %1930 = vmatpush1.bf16.msra.mxu0 %v1906
        %1931 = vmatprep.subr.bf16.mxu0 0
        %1932 = vmatpush1.bf16.msra.mxu0 %v1908
        %1933 = vmatprep.subr.bf16.mxu0 0
        %1934 = vmatpush1.bf16.msra.mxu0 0
        %1935 = vmatprep.subr.bf16.mxu0 0
        %1936 = vmatpush1.bf16.msra.mxu0 0
        %1937 = vmatprep.subr.bf16.mxu0 0
        %1938 = vmatpush1.bf16.msra.mxu0 0
        %1939 = vmatprep.subr.bf16.mxu0 0
        %1940 = vmatpush1.bf16.msra.mxu0 0
        %1941 = vmatprep.subr.bf16.mxu0 0
        %1942 = vmatpush1.bf16.msra.mxu0 0
        %1943 = vmatprep.subr.bf16.mxu0 0
        %1944 = vmatpush1.bf16.msra.mxu0 0
        %1945 = vmatprep.subr.bf16.mxu0 0
        %1946 = vmatpush1.bf16.msra.mxu0 0
        %1947 = vmatprep.subr.bf16.mxu0 0
        %1948 = vmatpush1.bf16.msra.mxu0 0
        %1949 = vmatprep.mubr.bf16.mxu0 0
        %1950 = vmatmul.mubr.bf16.gmra.mrb[0].mxu0 %v1877
        %v1951 = vpop.f32.mrb[0].mxu0
        %v1952 = vadd.f32 0.0, %v1951
        %v1953 = vpop.f32.mrb[0].mxu0
        %v1954 = vpop.f32.mrb[0].mxu0
        %v1955 = vadd.f32 0.0, %v1954
        %v1956 = vpop.f32.mrb[0].mxu0
        %1957 = vmatprep.mubr.bf16.mxu0 0
        %1958 = vmatmul.mubr.bf16.gmra.mrb[0].mxu0 %v1878
        %v1959 = vpop.f32.mrb[0].mxu0
        %v1960 = vadd.f32 0.0, %v1959
        %v1961 = vpop.f32.mrb[0].mxu0
        %v1962 = vpop.f32.mrb[0].mxu0
        %v1963 = vadd.f32 0.0, %v1962
        %v1964 = vpop.f32.mrb[0].mxu0
        %1965 = vmatprep.mubr.bf16.mxu0 0
        %1966 = vmatmul.mubr.bf16.gmra.mrb[0].mxu0 %v1879
        %v1967 = vpop.f32.mrb[0].mxu0
        %v1968 = vadd.f32 0.0, %v1967
        %v1969 = vpop.f32.mrb[0].mxu0
        %v1970 = vpop.f32.mrb[0].mxu0
        %v1971 = vadd.f32 0.0, %v1970
        %v1972 = vpop.f32.mrb[0].mxu0
        %1973 = vmatprep.mubr.bf16.mxu0 0
        %1974 = vmatmul.mubr.bf16.gmra.mrb[0].mxu0 %v1880
        %v1975 = vpop.f32.mrb[0].mxu0
        %v1976 = vadd.f32 0.0, %v1975
        %v1977 = vpop.f32.mrb[0].mxu0
        %v1978 = vpop.f32.mrb[0].mxu0
        %v1979 = vadd.f32 0.0, %v1978
        %v1980 = vpop.f32.mrb[0].mxu0
        %1981 = vmatprep.mubr.bf16.mxu0 0
        %1982 = vmatmul.mubr.bf16.gmra.mrb[0].mxu0 %v1881
        %v1983 = vpop.f32.mrb[0].mxu0
        %v1984 = vadd.f32 0.0, %v1983
        %v1985 = vpop.f32.mrb[0].mxu0
        %v1986 = vpop.f32.mrb[0].mxu0
        %v1987 = vadd.f32 0.0, %v1986
        %v1988 = vpop.f32.mrb[0].mxu0
        %1989 = vmatprep.mubr.bf16.mxu0 0
        %1990 = vmatmul.mubr.bf16.gmra.mrb[0].mxu0 %v1882
        %v1991 = vpop.f32.mrb[0].mxu0
        %v1992 = vadd.f32 0.0, %v1991
        %v1993 = vpop.f32.mrb[0].mxu0
        %v1994 = vpop.f32.mrb[0].mxu0
        %v1995 = vadd.f32 0.0, %v1994
        %v1996 = vpop.f32.mrb[0].mxu0
        %1997 = vmatprep.mubr.bf16.mxu0 0
        %1998 = vmatmul.mubr.bf16.gmra.mrb[0].mxu0 %v1883
        %v1999 = vpop.f32.mrb[0].mxu0
        %v2000 = vadd.f32 0.0, %v1999
        %v2001 = vpop.f32.mrb[0].mxu0
        %v2002 = vpop.f32.mrb[0].mxu0
        %v2003 = vadd.f32 0.0, %v2002
        %v2004 = vpop.f32.mrb[0].mxu0
        %2005 = vmatprep.mubr.bf16.mxu0 0
        %2006 = vmatmul.mubr.bf16.gmra.mrb[0].mxu0 %v1884
        %v2007 = vpop.f32.mrb[0].mxu0
        %v2008 = vadd.f32 0.0, %v2007
        %v2009 = vpop.f32.mrb[0].mxu0
        %v2010 = vpop.f32.mrb[0].mxu0
        %v2011 = vadd.f32 0.0, %v2010
        %v2012 = vpop.f32.mrb[0].mxu0
        %2013 = vdwg.mxu0
        %v2014 = vpack.c.bf16 %v1955, %v1952
        %v2015 = vpack.c.bf16 %v1963, %v1960
        %v2016 = vpack.c.bf16 %v1971, %v1968
        %v2017 = vpack.c.bf16 %v1979, %v1976
        %v2018 = vpack.c.bf16 %v1987, %v1984
        %v2019 = vpack.c.bf16 %v1995, %v1992
        %v2020 = vpack.c.bf16 %v2003, %v2000
        %v2021 = vpack.c.bf16 %v2011, %v2008
        %s2022 = scalar_lea.vmem %s419, 128 [#allocation6]
        %v2023 = vld [vmem:[%s2022] sm:$0xf]
        %v2024 = vld [vmem:[%s2022 + $0x4] sm:$0xf]
        %v2025 = vld [vmem:[%s2022 + $0x8] sm:$0xf]
        %v2026 = vld [vmem:[%s2022 + $0xc] sm:$0xf]
        %v2027 = vld [vmem:[%s2022 + $0x10] sm:$0xf]
        %v2028 = vld [vmem:[%s2022 + $0x14] sm:$0xf]
        %v2029 = vld [vmem:[%s2022 + $0x18] sm:$0xf]
        %v2030 = vld [vmem:[%s2022 + $0x1c] sm:$0xf]
        %v2031 = vld [vmem:[%s2022 + $0x20] sm:$0xf]
        %v2032 = vld [vmem:[%s2022 + $0x24] sm:$0xf]
        %v2033 = vld [vmem:[%s2022 + $0x28] sm:$0xf]
        %v2034 = vld [vmem:[%s2022 + $0x2c] sm:$0xf]
        %v2035 = vld [vmem:[%s2022 + $0x30] sm:$0xf]
        %v2036 = vld [vmem:[%s2022 + $0x34] sm:$0xf]
        %v2037 = vld [vmem:[%s2022 + $0x38] sm:$0xf]
        %v2038 = vld [vmem:[%s2022 + $0x3c] sm:$0xf]
        %v2039 = vunpack.c.l.bf16 %v2023
        %v2040 = vunpack.c.l.bf16 %v2024
        %v2041 = vunpack.c.l.bf16 %v2025
        %v2042 = vunpack.c.l.bf16 %v2026
        %v2043 = vunpack.c.l.bf16 %v2027
        %v2044 = vunpack.c.l.bf16 %v2028
        %v2045 = vunpack.c.l.bf16 %v2029
        %v2046 = vunpack.c.l.bf16 %v2030
        %v2047 = vunpack.c.l.bf16 %v2031
        %v2048 = vunpack.c.l.bf16 %v2032
        %v2049 = vunpack.c.l.bf16 %v2033
        %v2050 = vunpack.c.l.bf16 %v2034
        %v2051 = vunpack.c.l.bf16 %v2035
        %v2052 = vunpack.c.l.bf16 %v2036
        %v2053 = vunpack.c.l.bf16 %v2037
        %v2054 = vunpack.c.l.bf16 %v2038
        %2055 = vrot.lane.b32.xlu0 %v712, 96
        %v2056 = vpop.permute.xlu0 %2055
        %2057 = vrot.lane.b32.xlu0 %v713, 96
        %v2058 = vpop.permute.xlu0 %2057
        %2059 = vrot.lane.b32.xlu0 %v714, 96
        %v2060 = vpop.permute.xlu0 %2059
        %2061 = vrot.lane.b32.xlu0 %v715, 96
        %v2062 = vpop.permute.xlu0 %2061
        %2063 = vrot.lane.b32.xlu0 %v716, 96
        %v2064 = vpop.permute.xlu0 %2063
        %2065 = vrot.lane.b32.xlu0 %v717, 96
        %v2066 = vpop.permute.xlu0 %2065
        %2067 = vrot.lane.b32.xlu0 %v718, 96
        %v2068 = vpop.permute.xlu0 %2067
        %2069 = vrot.lane.b32.xlu0 %v719, 96
        %v2070 = vpop.permute.xlu0 %2069
        %2071 = vrot.lane.b32.xlu0 %v888, 96
        %v2072 = vpop.permute.xlu0 %2071
        %2073 = vrot.lane.b32.xlu0 %v889, 96
        %v2074 = vpop.permute.xlu0 %2073
        %2075 = vrot.lane.b32.xlu0 %v890, 96
        %v2076 = vpop.permute.xlu0 %2075
        %2077 = vrot.lane.b32.xlu0 %v891, 96
        %v2078 = vpop.permute.xlu0 %2077
        %2079 = vrot.lane.b32.xlu0 %v892, 96
        %v2080 = vpop.permute.xlu0 %2079
        %2081 = vrot.lane.b32.xlu0 %v893, 96
        %v2082 = vpop.permute.xlu0 %2081
        %2083 = vrot.lane.b32.xlu0 %v894, 96
        %v2084 = vpop.permute.xlu0 %2083
        %2085 = vrot.lane.b32.xlu0 %v895, 96
        %v2086 = vpop.permute.xlu0 %2085
        %v2088 = vsel %vm1104, %v2056, 0
        %v2091 = vsel %vm1104, %v2058, 0
        %v2094 = vsel %vm1104, %v2060, 0
        %v2097 = vsel %vm1104, %v2062, 0
        %v2100 = vsel %vm1104, %v2064, 0
        %v2103 = vsel %vm1104, %v2066, 0
        %v2106 = vsel %vm1104, %v2068, 0
        %v2109 = vsel %vm1104, %v2070, 0
        %v2112 = vsel %vm1104, %v2072, 0
        %v2115 = vsel %vm1104, %v2074, 0
        %v2118 = vsel %vm1104, %v2076, 0
        %v2121 = vsel %vm1104, %v2078, 0
        %v2124 = vsel %vm1104, %v2080, 0
        %v2127 = vsel %vm1104, %v2082, 0
        %v2130 = vsel %vm1104, %v2084, 0
        %v2133 = vsel %vm1104, %v2086, 0
        %2135 = vmatprep.subr.bf16.mxu0 0
        %2136 = vmatpush1.bf16.xpose.msra.mxu0 %v2112
        %2137 = vmatprep.subr.bf16.mxu0 0
        %2138 = vmatpush1.bf16.xpose.msra.mxu0 %v2115
        %2139 = vmatprep.subr.bf16.mxu0 0
        %2140 = vmatpush1.bf16.xpose.msra.mxu0 %v2118
        %2141 = vmatprep.subr.bf16.mxu0 0
        %2142 = vmatpush1.bf16.xpose.msra.mxu0 %v2121
        %2143 = vmatprep.subr.bf16.mxu0 0
        %2144 = vmatpush1.bf16.xpose.msra.mxu0 %v2124
        %2145 = vmatprep.subr.bf16.mxu0 0
        %2146 = vmatpush1.bf16.xpose.msra.mxu0 %v2127
        %2147 = vmatprep.subr.bf16.mxu0 0
        %2148 = vmatpush1.bf16.xpose.msra.mxu0 %v2130
        %2149 = vmatprep.subr.bf16.mxu0 0
        %2150 = vmatpush1.bf16.xpose.msra.mxu0 %v2133
        %2151 = vmatprep.subr.bf16.mxu0 0
        %2152 = vmatpush1.bf16.xpose.msra.mxu0 0
        %2153 = vmatprep.subr.bf16.mxu0 0
        %2154 = vmatpush1.bf16.xpose.msra.mxu0 0
        %2155 = vmatprep.subr.bf16.mxu0 0
        %2156 = vmatpush1.bf16.xpose.msra.mxu0 0
        %2157 = vmatprep.subr.bf16.mxu0 0
        %2158 = vmatpush1.bf16.xpose.msra.mxu0 0
        %2159 = vmatprep.subr.bf16.mxu0 0
        %2160 = vmatpush1.bf16.xpose.msra.mxu0 0
        %2161 = vmatprep.subr.bf16.mxu0 0
        %2162 = vmatpush1.bf16.xpose.msra.mxu0 0
        %2163 = vmatprep.subr.bf16.mxu0 0
        %2164 = vmatpush1.bf16.xpose.msra.mxu0 0
        %2165 = vmatprep.subr.bf16.mxu0 0
        %2166 = vmatpush1.bf16.xpose.msra.mxu0 0
        %2167 = vmatprep.mubr.bf16.mxu0 0
        %2168 = vmatmul.mubr.bf16.gmra.mrb[0].mxu0 %v2088
        %v2169 = vpop.f32.mrb[0].mxu0
        %v2170 = vadd.f32 %v2039, %v2169
        %v2171 = vpop.f32.mrb[0].mxu0
        %v2172 = vpop.f32.mrb[0].mxu0
        %v2173 = vadd.f32 %v2040, %v2172
        %v2174 = vpop.f32.mrb[0].mxu0
        %2175 = vmatprep.mubr.bf16.mxu0 0
        %2176 = vmatmul.mubr.bf16.gmra.mrb[0].mxu0 %v2091
        %v2177 = vpop.f32.mrb[0].mxu0
        %v2178 = vadd.f32 %v2041, %v2177
        %v2179 = vpop.f32.mrb[0].mxu0
        %v2180 = vpop.f32.mrb[0].mxu0
        %v2181 = vadd.f32 %v2042, %v2180
        %v2182 = vpop.f32.mrb[0].mxu0
        %2183 = vmatprep.mubr.bf16.mxu0 0
        %2184 = vmatmul.mubr.bf16.gmra.mrb[0].mxu0 %v2094
        %v2185 = vpop.f32.mrb[0].mxu0
        %v2186 = vadd.f32 %v2043, %v2185
        %v2187 = vpop.f32.mrb[0].mxu0
        %v2188 = vpop.f32.mrb[0].mxu0
        %v2189 = vadd.f32 %v2044, %v2188
        %v2190 = vpop.f32.mrb[0].mxu0
        %2191 = vmatprep.mubr.bf16.mxu0 0
        %2192 = vmatmul.mubr.bf16.gmra.mrb[0].mxu0 %v2097
        %v2193 = vpop.f32.mrb[0].mxu0
        %v2194 = vadd.f32 %v2045, %v2193
        %v2195 = vpop.f32.mrb[0].mxu0
        %v2196 = vpop.f32.mrb[0].mxu0
        %v2197 = vadd.f32 %v2046, %v2196
        %v2198 = vpop.f32.mrb[0].mxu0
        %2199 = vmatprep.mubr.bf16.mxu0 0
        %2200 = vmatmul.mubr.bf16.gmra.mrb[0].mxu0 %v2100
        %v2201 = vpop.f32.mrb[0].mxu0
        %v2202 = vadd.f32 %v2047, %v2201
        %v2203 = vpop.f32.mrb[0].mxu0
        %v2204 = vpop.f32.mrb[0].mxu0
        %v2205 = vadd.f32 %v2048, %v2204
        %v2206 = vpop.f32.mrb[0].mxu0
        %2207 = vmatprep.mubr.bf16.mxu0 0
        %2208 = vmatmul.mubr.bf16.gmra.mrb[0].mxu0 %v2103
        %v2209 = vpop.f32.mrb[0].mxu0
        %v2210 = vadd.f32 %v2049, %v2209
        %v2211 = vpop.f32.mrb[0].mxu0
        %v2212 = vpop.f32.mrb[0].mxu0
        %v2213 = vadd.f32 %v2050, %v2212
        %v2214 = vpop.f32.mrb[0].mxu0
        %2215 = vmatprep.mubr.bf16.mxu0 0
        %2216 = vmatmul.mubr.bf16.gmra.mrb[0].mxu0 %v2106
        %v2217 = vpop.f32.mrb[0].mxu0
        %v2218 = vadd.f32 %v2051, %v2217
        %v2219 = vpop.f32.mrb[0].mxu0
        %v2220 = vpop.f32.mrb[0].mxu0
        %v2221 = vadd.f32 %v2052, %v2220
        %v2222 = vpop.f32.mrb[0].mxu0
        %2223 = vmatprep.mubr.bf16.mxu0 0
        %2224 = vmatmul.mubr.bf16.gmra.mrb[0].mxu0 %v2109
        %v2225 = vpop.f32.mrb[0].mxu0
        %v2226 = vadd.f32 %v2053, %v2225
        %v2227 = vpop.f32.mrb[0].mxu0
        %v2228 = vpop.f32.mrb[0].mxu0
        %v2229 = vadd.f32 %v2054, %v2228
        %v2230 = vpop.f32.mrb[0].mxu0
        %2231 = vdwg.mxu0
        %2232 = vmax.xlane.f32.xlu0 %v2170
        %v2233 = vpop.xlane.xlu0 %2232
        %2234 = vmax.xlane.f32.xlu0 %v2173
        %v2235 = vpop.xlane.xlu0 %2234
        %2236 = vmax.xlane.f32.xlu0 %v2178
        %v2237 = vpop.xlane.xlu0 %2236
        %2238 = vmax.xlane.f32.xlu0 %v2181
        %v2239 = vpop.xlane.xlu0 %2238
        %2240 = vmax.xlane.f32.xlu0 %v2186
        %v2241 = vpop.xlane.xlu0 %2240
        %2242 = vmax.xlane.f32.xlu0 %v2189
        %v2243 = vpop.xlane.xlu0 %2242
        %2244 = vmax.xlane.f32.xlu0 %v2194
        %v2245 = vpop.xlane.xlu0 %2244
        %2246 = vmax.xlane.f32.xlu0 %v2197
        %v2247 = vpop.xlane.xlu0 %2246
        %2248 = vmax.xlane.f32.xlu0 %v2202
        %v2249 = vpop.xlane.xlu0 %2248
        %2250 = vmax.xlane.f32.xlu0 %v2205
        %v2251 = vpop.xlane.xlu0 %2250
        %2252 = vmax.xlane.f32.xlu0 %v2210
        %v2253 = vpop.xlane.xlu0 %2252
        %2254 = vmax.xlane.f32.xlu0 %v2213
        %v2255 = vpop.xlane.xlu0 %2254
        %2256 = vmax.xlane.f32.xlu0 %v2218
        %v2257 = vpop.xlane.xlu0 %2256
        %2258 = vmax.xlane.f32.xlu0 %v2221
        %v2259 = vpop.xlane.xlu0 %2258
        %2260 = vmax.xlane.f32.xlu0 %v2226
        %v2261 = vpop.xlane.xlu0 %2260
        %2262 = vmax.xlane.f32.xlu0 %v2229
        %v2263 = vpop.xlane.xlu0 %2262
        %v2264 = vsub.f32 %v2170, %v2233
        %v2265 = vsub.f32 %v2173, %v2235
        %v2266 = vsub.f32 %v2178, %v2237
        %v2267 = vsub.f32 %v2181, %v2239
        %v2268 = vsub.f32 %v2186, %v2241
        %v2269 = vsub.f32 %v2189, %v2243
        %v2270 = vsub.f32 %v2194, %v2245
        %v2271 = vsub.f32 %v2197, %v2247
        %v2272 = vsub.f32 %v2202, %v2249
        %v2273 = vsub.f32 %v2205, %v2251
        %v2274 = vsub.f32 %v2210, %v2253
        %v2275 = vsub.f32 %v2213, %v2255
        %v2276 = vsub.f32 %v2218, %v2257
        %v2277 = vsub.f32 %v2221, %v2259
        %v2278 = vsub.f32 %v2226, %v2261
        %v2279 = vsub.f32 %v2229, %v2263
        %v2280 = vmul.f32 %v2264, 1.442695
        %v2281 = vpow.pop %v2280
        %v2282 = vmul.f32 %v2265, 1.442695
        %v2283 = vpow.pop %v2282
        %v2284 = vmul.f32 %v2266, 1.442695
        %v2285 = vpow.pop %v2284
        %v2286 = vmul.f32 %v2267, 1.442695
        %v2287 = vpow.pop %v2286
        %v2288 = vmul.f32 %v2268, 1.442695
        %v2289 = vpow.pop %v2288
        %v2290 = vmul.f32 %v2269, 1.442695
        %v2291 = vpow.pop %v2290
        %v2292 = vmul.f32 %v2270, 1.442695
        %v2293 = vpow.pop %v2292
        %v2294 = vmul.f32 %v2271, 1.442695
        %v2295 = vpow.pop %v2294
        %v2296 = vmul.f32 %v2272, 1.442695
        %v2297 = vpow.pop %v2296
        %v2298 = vmul.f32 %v2273, 1.442695
        %v2299 = vpow.pop %v2298
        %v2300 = vmul.f32 %v2274, 1.442695
        %v2301 = vpow.pop %v2300
        %v2302 = vmul.f32 %v2275, 1.442695
        %v2303 = vpow.pop %v2302
        %v2304 = vmul.f32 %v2276, 1.442695
        %v2305 = vpow.pop %v2304
        %v2306 = vmul.f32 %v2277, 1.442695
        %v2307 = vpow.pop %v2306
        %v2308 = vmul.f32 %v2278, 1.442695
        %v2309 = vpow.pop %v2308
        %v2310 = vmul.f32 %v2279, 1.442695
        %v2311 = vpow.pop %v2310
        %2312 = vadd.xlane.f32.xlu0 %v2281
        %v2313 = vpop.xlane.xlu0 %2312
        %2314 = vadd.xlane.f32.xlu0 %v2283
        %v2315 = vpop.xlane.xlu0 %2314
        %2316 = vadd.xlane.f32.xlu0 %v2285
        %v2317 = vpop.xlane.xlu0 %2316
        %2318 = vadd.xlane.f32.xlu0 %v2287
        %v2319 = vpop.xlane.xlu0 %2318
        %2320 = vadd.xlane.f32.xlu0 %v2289
        %v2321 = vpop.xlane.xlu0 %2320
        %2322 = vadd.xlane.f32.xlu0 %v2291
        %v2323 = vpop.xlane.xlu0 %2322
        %2324 = vadd.xlane.f32.xlu0 %v2293
        %v2325 = vpop.xlane.xlu0 %2324
        %2326 = vadd.xlane.f32.xlu0 %v2295
        %v2327 = vpop.xlane.xlu0 %2326
        %2328 = vadd.xlane.f32.xlu0 %v2297
        %v2329 = vpop.xlane.xlu0 %2328
        %2330 = vadd.xlane.f32.xlu0 %v2299
        %v2331 = vpop.xlane.xlu0 %2330
        %2332 = vadd.xlane.f32.xlu0 %v2301
        %v2333 = vpop.xlane.xlu0 %2332
        %2334 = vadd.xlane.f32.xlu0 %v2303
        %v2335 = vpop.xlane.xlu0 %2334
        %2336 = vadd.xlane.f32.xlu0 %v2305
        %v2337 = vpop.xlane.xlu0 %2336
        %2338 = vadd.xlane.f32.xlu0 %v2307
        %v2339 = vpop.xlane.xlu0 %2338
        %2340 = vadd.xlane.f32.xlu0 %v2309
        %v2341 = vpop.xlane.xlu0 %2340
        %2342 = vadd.xlane.f32.xlu0 %v2311
        %v2343 = vpop.xlane.xlu0 %2342
        %v2344 = vrcp.pop %v2313
        %v2345 = vmul.f32 %v2281, %v2344
        %v2346 = vrcp.pop %v2315
        %v2347 = vmul.f32 %v2283, %v2346
        %v2348 = vrcp.pop %v2317
        %v2349 = vmul.f32 %v2285, %v2348
        %v2350 = vrcp.pop %v2319
        %v2351 = vmul.f32 %v2287, %v2350
        %v2352 = vrcp.pop %v2321
        %v2353 = vmul.f32 %v2289, %v2352
        %v2354 = vrcp.pop %v2323
        %v2355 = vmul.f32 %v2291, %v2354
        %v2356 = vrcp.pop %v2325
        %v2357 = vmul.f32 %v2293, %v2356
        %v2358 = vrcp.pop %v2327
        %v2359 = vmul.f32 %v2295, %v2358
        %v2360 = vrcp.pop %v2329
        %v2361 = vmul.f32 %v2297, %v2360
        %v2362 = vrcp.pop %v2331
        %v2363 = vmul.f32 %v2299, %v2362
        %v2364 = vrcp.pop %v2333
        %v2365 = vmul.f32 %v2301, %v2364
        %v2366 = vrcp.pop %v2335
        %v2367 = vmul.f32 %v2303, %v2366
        %v2368 = vrcp.pop %v2337
        %v2369 = vmul.f32 %v2305, %v2368
        %v2370 = vrcp.pop %v2339
        %v2371 = vmul.f32 %v2307, %v2370
        %v2372 = vrcp.pop %v2341
        %v2373 = vmul.f32 %v2309, %v2372
        %v2374 = vrcp.pop %v2343
        %v2375 = vmul.f32 %v2311, %v2374
        %v2376 = vpack.c.bf16 %v2347, %v2345
        %v2377 = vpack.c.bf16 %v2351, %v2349
        %v2378 = vpack.c.bf16 %v2355, %v2353
        %v2379 = vpack.c.bf16 %v2359, %v2357
        %v2380 = vpack.c.bf16 %v2363, %v2361
        %v2381 = vpack.c.bf16 %v2367, %v2365
        %v2382 = vpack.c.bf16 %v2371, %v2369
        %v2383 = vpack.c.bf16 %v2375, %v2373
        %2384 = vrot.lane.b32.xlu0 %v1064, 96
        %v2385 = vpop.permute.xlu0 %2384
        %2386 = vrot.lane.b32.xlu0 %v1065, 96
        %v2387 = vpop.permute.xlu0 %2386
        %2388 = vrot.lane.b32.xlu0 %v1066, 96
        %v2389 = vpop.permute.xlu0 %2388
        %2390 = vrot.lane.b32.xlu0 %v1067, 96
        %v2391 = vpop.permute.xlu0 %2390
        %2392 = vrot.lane.b32.xlu0 %v1068, 96
        %v2393 = vpop.permute.xlu0 %2392
        %2394 = vrot.lane.b32.xlu0 %v1069, 96
        %v2395 = vpop.permute.xlu0 %2394
        %2396 = vrot.lane.b32.xlu0 %v1070, 96
        %v2397 = vpop.permute.xlu0 %2396
        %2398 = vrot.lane.b32.xlu0 %v1071, 96
        %v2399 = vpop.permute.xlu0 %2398
        %2408 = vmatprep.subr.bf16.mxu0 0
        %2409 = vmatpush1.bf16.msra.mxu0 %v2385
        %2410 = vmatprep.subr.bf16.mxu0 0
        %2411 = vmatpush1.bf16.msra.mxu0 %v2387
        %2412 = vmatprep.subr.bf16.mxu0 0
        %2413 = vmatpush1.bf16.msra.mxu0 %v2389
        %2414 = vmatprep.subr.bf16.mxu0 0
        %2415 = vmatpush1.bf16.msra.mxu0 %v2391
        %2416 = vmatprep.subr.bf16.mxu0 0
        %2417 = vmatpush1.bf16.msra.mxu0 %v2393
        %2418 = vmatprep.subr.bf16.mxu0 0
        %2419 = vmatpush1.bf16.msra.mxu0 %v2395
        %2420 = vmatprep.subr.bf16.mxu0 0
        %2421 = vmatpush1.bf16.msra.mxu0 %v2397
        %2422 = vmatprep.subr.bf16.mxu0 0
        %2423 = vmatpush1.bf16.msra.mxu0 %v2399
        %2424 = vmatprep.subr.bf16.mxu0 0
        %2425 = vmatpush1.bf16.msra.mxu0 0
        %2426 = vmatprep.subr.bf16.mxu0 0
        %2427 = vmatpush1.bf16.msra.mxu0 0
        %2428 = vmatprep.subr.bf16.mxu0 0
        %2429 = vmatpush1.bf16.msra.mxu0 0
        %2430 = vmatprep.subr.bf16.mxu0 0
        %2431 = vmatpush1.bf16.msra.mxu0 0
        %2432 = vmatprep.subr.bf16.mxu0 0
        %2433 = vmatpush1.bf16.msra.mxu0 0
        %2434 = vmatprep.subr.bf16.mxu0 0
        %2435 = vmatpush1.bf16.msra.mxu0 0
        %2436 = vmatprep.subr.bf16.mxu0 0
        %2437 = vmatpush1.bf16.msra.mxu0 0
        %2438 = vmatprep.subr.bf16.mxu0 0
        %2439 = vmatpush1.bf16.msra.mxu0 0
        %2440 = vmatprep.mubr.bf16.mxu0 0
        %2441 = vmatmul.mubr.bf16.gmra.mrb[0].mxu0 %v2376
        %v2442 = vpop.f32.mrb[0].mxu0
        %v2443 = vadd.f32 0.0, %v2442
        %v2444 = vpop.f32.mrb[0].mxu0
        %v2445 = vpop.f32.mrb[0].mxu0
        %v2446 = vadd.f32 0.0, %v2445
        %v2447 = vpop.f32.mrb[0].mxu0
        %2448 = vmatprep.mubr.bf16.mxu0 0
        %2449 = vmatmul.mubr.bf16.gmra.mrb[0].mxu0 %v2377
        %v2450 = vpop.f32.mrb[0].mxu0
        %v2451 = vadd.f32 0.0, %v2450
        %v2452 = vpop.f32.mrb[0].mxu0
        %v2453 = vpop.f32.mrb[0].mxu0
        %v2454 = vadd.f32 0.0, %v2453
        %v2455 = vpop.f32.mrb[0].mxu0
        %2456 = vmatprep.mubr.bf16.mxu0 0
        %2457 = vmatmul.mubr.bf16.gmra.mrb[0].mxu0 %v2378
        %v2458 = vpop.f32.mrb[0].mxu0
        %v2459 = vadd.f32 0.0, %v2458
        %v2460 = vpop.f32.mrb[0].mxu0
        %v2461 = vpop.f32.mrb[0].mxu0
        %v2462 = vadd.f32 0.0, %v2461
        %v2463 = vpop.f32.mrb[0].mxu0
        %2464 = vmatprep.mubr.bf16.mxu0 0
        %2465 = vmatmul.mubr.bf16.gmra.mrb[0].mxu0 %v2379
        %v2466 = vpop.f32.mrb[0].mxu0
        %v2467 = vadd.f32 0.0, %v2466
        %v2468 = vpop.f32.mrb[0].mxu0
        %v2469 = vpop.f32.mrb[0].mxu0
        %v2470 = vadd.f32 0.0, %v2469
        %v2471 = vpop.f32.mrb[0].mxu0
        %2472 = vmatprep.mubr.bf16.mxu0 0
        %2473 = vmatmul.mubr.bf16.gmra.mrb[0].mxu0 %v2380
        %v2474 = vpop.f32.mrb[0].mxu0
        %v2475 = vadd.f32 0.0, %v2474
        %v2476 = vpop.f32.mrb[0].mxu0
        %v2477 = vpop.f32.mrb[0].mxu0
        %v2478 = vadd.f32 0.0, %v2477
        %v2479 = vpop.f32.mrb[0].mxu0
        %2480 = vmatprep.mubr.bf16.mxu0 0
        %2481 = vmatmul.mubr.bf16.gmra.mrb[0].mxu0 %v2381
        %v2482 = vpop.f32.mrb[0].mxu0
        %v2483 = vadd.f32 0.0, %v2482
        %v2484 = vpop.f32.mrb[0].mxu0
        %v2485 = vpop.f32.mrb[0].mxu0
        %v2486 = vadd.f32 0.0, %v2485
        %v2487 = vpop.f32.mrb[0].mxu0
        %2488 = vmatprep.mubr.bf16.mxu0 0
        %2489 = vmatmul.mubr.bf16.gmra.mrb[0].mxu0 %v2382
        %v2490 = vpop.f32.mrb[0].mxu0
        %v2491 = vadd.f32 0.0, %v2490
        %v2492 = vpop.f32.mrb[0].mxu0
        %v2493 = vpop.f32.mrb[0].mxu0
        %v2494 = vadd.f32 0.0, %v2493
        %v2495 = vpop.f32.mrb[0].mxu0
        %2496 = vmatprep.mubr.bf16.mxu0 0
        %2497 = vmatmul.mubr.bf16.gmra.mrb[0].mxu0 %v2383
        %v2498 = vpop.f32.mrb[0].mxu0
        %v2499 = vadd.f32 0.0, %v2498
        %v2500 = vpop.f32.mrb[0].mxu0
        %v2501 = vpop.f32.mrb[0].mxu0
        %v2502 = vadd.f32 0.0, %v2501
        %v2503 = vpop.f32.mrb[0].mxu0
        %2504 = vdwg.mxu0
        %v2505 = vpack.c.bf16 %v2446, %v2443
        %v2506 = vpack.c.bf16 %v2454, %v2451
        %v2507 = vpack.c.bf16 %v2462, %v2459
        %v2508 = vpack.c.bf16 %v2470, %v2467
        %v2509 = vpack.c.bf16 %v2478, %v2475
        %v2510 = vpack.c.bf16 %v2486, %v2483
        %v2511 = vpack.c.bf16 %v2494, %v2491
        %v2512 = vpack.c.bf16 %v2502, %v2499
        %s2513 = scalar_lea.vmem %s419, 192 [#allocation6]
        %v2514 = vld [vmem:[%s2513] sm:$0xf]
        %v2515 = vld [vmem:[%s2513 + $0x4] sm:$0xf]
        %v2516 = vld [vmem:[%s2513 + $0x8] sm:$0xf]
        %v2517 = vld [vmem:[%s2513 + $0xc] sm:$0xf]
        %v2518 = vld [vmem:[%s2513 + $0x10] sm:$0xf]
        %v2519 = vld [vmem:[%s2513 + $0x14] sm:$0xf]
        %v2520 = vld [vmem:[%s2513 + $0x18] sm:$0xf]
        %v2521 = vld [vmem:[%s2513 + $0x1c] sm:$0xf]
        %v2522 = vld [vmem:[%s2513 + $0x20] sm:$0xf]
        %v2523 = vld [vmem:[%s2513 + $0x24] sm:$0xf]
        %v2524 = vld [vmem:[%s2513 + $0x28] sm:$0xf]
        %v2525 = vld [vmem:[%s2513 + $0x2c] sm:$0xf]
        %v2526 = vld [vmem:[%s2513 + $0x30] sm:$0xf]
        %v2527 = vld [vmem:[%s2513 + $0x34] sm:$0xf]
        %v2528 = vld [vmem:[%s2513 + $0x38] sm:$0xf]
        %v2529 = vld [vmem:[%s2513 + $0x3c] sm:$0xf]
        %v2530 = vunpack.c.l.bf16 %v2514
        %v2531 = vunpack.c.l.bf16 %v2515
        %v2532 = vunpack.c.l.bf16 %v2516
        %v2533 = vunpack.c.l.bf16 %v2517
        %v2534 = vunpack.c.l.bf16 %v2518
        %v2535 = vunpack.c.l.bf16 %v2519
        %v2536 = vunpack.c.l.bf16 %v2520
        %v2537 = vunpack.c.l.bf16 %v2521
        %v2538 = vunpack.c.l.bf16 %v2522
        %v2539 = vunpack.c.l.bf16 %v2523
        %v2540 = vunpack.c.l.bf16 %v2524
        %v2541 = vunpack.c.l.bf16 %v2525
        %v2542 = vunpack.c.l.bf16 %v2526
        %v2543 = vunpack.c.l.bf16 %v2527
        %v2544 = vunpack.c.l.bf16 %v2528
        %v2545 = vunpack.c.l.bf16 %v2529
        %2546 = vrot.lane.b32.xlu0 %v712, 80
        %v2547 = vpop.permute.xlu0 %2546
        %2548 = vrot.lane.b32.xlu0 %v713, 80
        %v2549 = vpop.permute.xlu0 %2548
        %2550 = vrot.lane.b32.xlu0 %v714, 80
        %v2551 = vpop.permute.xlu0 %2550
        %2552 = vrot.lane.b32.xlu0 %v715, 80
        %v2553 = vpop.permute.xlu0 %2552
        %2554 = vrot.lane.b32.xlu0 %v716, 80
        %v2555 = vpop.permute.xlu0 %2554
        %2556 = vrot.lane.b32.xlu0 %v717, 80
        %v2557 = vpop.permute.xlu0 %2556
        %2558 = vrot.lane.b32.xlu0 %v718, 80
        %v2559 = vpop.permute.xlu0 %2558
        %2560 = vrot.lane.b32.xlu0 %v719, 80
        %v2561 = vpop.permute.xlu0 %2560
        %2562 = vrot.lane.b32.xlu0 %v888, 80
        %v2563 = vpop.permute.xlu0 %2562
        %2564 = vrot.lane.b32.xlu0 %v889, 80
        %v2565 = vpop.permute.xlu0 %2564
        %2566 = vrot.lane.b32.xlu0 %v890, 80
        %v2567 = vpop.permute.xlu0 %2566
        %2568 = vrot.lane.b32.xlu0 %v891, 80
        %v2569 = vpop.permute.xlu0 %2568
        %2570 = vrot.lane.b32.xlu0 %v892, 80
        %v2571 = vpop.permute.xlu0 %2570
        %2572 = vrot.lane.b32.xlu0 %v893, 80
        %v2573 = vpop.permute.xlu0 %2572
        %2574 = vrot.lane.b32.xlu0 %v894, 80
        %v2575 = vpop.permute.xlu0 %2574
        %2576 = vrot.lane.b32.xlu0 %v895, 80
        %v2577 = vpop.permute.xlu0 %2576
        %v2579 = vsel %vm1104, %v2547, 0
        %v2582 = vsel %vm1104, %v2549, 0
        %v2585 = vsel %vm1104, %v2551, 0
        %v2588 = vsel %vm1104, %v2553, 0
        %v2591 = vsel %vm1104, %v2555, 0
        %v2594 = vsel %vm1104, %v2557, 0
        %v2597 = vsel %vm1104, %v2559, 0
        %v2600 = vsel %vm1104, %v2561, 0
        %v2603 = vsel %vm1104, %v2563, 0
        %v2606 = vsel %vm1104, %v2565, 0
        %v2609 = vsel %vm1104, %v2567, 0
        %v2612 = vsel %vm1104, %v2569, 0
        %v2615 = vsel %vm1104, %v2571, 0
        %v2618 = vsel %vm1104, %v2573, 0
        %v2621 = vsel %vm1104, %v2575, 0
        %v2624 = vsel %vm1104, %v2577, 0
        %2626 = vmatprep.subr.bf16.mxu0 0
        %2627 = vmatpush1.bf16.xpose.msra.mxu0 %v2603
        %2628 = vmatprep.subr.bf16.mxu0 0
        %2629 = vmatpush1.bf16.xpose.msra.mxu0 %v2606
        %2630 = vmatprep.subr.bf16.mxu0 0
        %2631 = vmatpush1.bf16.xpose.msra.mxu0 %v2609
        %2632 = vmatprep.subr.bf16.mxu0 0
        %2633 = vmatpush1.bf16.xpose.msra.mxu0 %v2612
        %2634 = vmatprep.subr.bf16.mxu0 0
        %2635 = vmatpush1.bf16.xpose.msra.mxu0 %v2615
        %2636 = vmatprep.subr.bf16.mxu0 0
        %2637 = vmatpush1.bf16.xpose.msra.mxu0 %v2618
        %2638 = vmatprep.subr.bf16.mxu0 0
        %2639 = vmatpush1.bf16.xpose.msra.mxu0 %v2621
        %2640 = vmatprep.subr.bf16.mxu0 0
        %2641 = vmatpush1.bf16.xpose.msra.mxu0 %v2624
        %2642 = vmatprep.subr.bf16.mxu0 0
        %2643 = vmatpush1.bf16.xpose.msra.mxu0 0
        %2644 = vmatprep.subr.bf16.mxu0 0
        %2645 = vmatpush1.bf16.xpose.msra.mxu0 0
        %2646 = vmatprep.subr.bf16.mxu0 0
        %2647 = vmatpush1.bf16.xpose.msra.mxu0 0
        %2648 = vmatprep.subr.bf16.mxu0 0
        %2649 = vmatpush1.bf16.xpose.msra.mxu0 0
        %2650 = vmatprep.subr.bf16.mxu0 0
        %2651 = vmatpush1.bf16.xpose.msra.mxu0 0
        %2652 = vmatprep.subr.bf16.mxu0 0
        %2653 = vmatpush1.bf16.xpose.msra.mxu0 0
        %2654 = vmatprep.subr.bf16.mxu0 0
        %2655 = vmatpush1.bf16.xpose.msra.mxu0 0
        %2656 = vmatprep.subr.bf16.mxu0 0
        %2657 = vmatpush1.bf16.xpose.msra.mxu0 0
        %2658 = vmatprep.mubr.bf16.mxu0 0
        %2659 = vmatmul.mubr.bf16.gmra.mrb[0].mxu0 %v2579
        %v2660 = vpop.f32.mrb[0].mxu0
        %v2661 = vadd.f32 %v2530, %v2660
        %v2662 = vpop.f32.mrb[0].mxu0
        %v2663 = vpop.f32.mrb[0].mxu0
        %v2664 = vadd.f32 %v2531, %v2663
        %v2665 = vpop.f32.mrb[0].mxu0
        %2666 = vmatprep.mubr.bf16.mxu0 0
        %2667 = vmatmul.mubr.bf16.gmra.mrb[0].mxu0 %v2582
        %v2668 = vpop.f32.mrb[0].mxu0
        %v2669 = vadd.f32 %v2532, %v2668
        %v2670 = vpop.f32.mrb[0].mxu0
        %v2671 = vpop.f32.mrb[0].mxu0
        %v2672 = vadd.f32 %v2533, %v2671
        %v2673 = vpop.f32.mrb[0].mxu0
        %2674 = vmatprep.mubr.bf16.mxu0 0
        %2675 = vmatmul.mubr.bf16.gmra.mrb[0].mxu0 %v2585
        %v2676 = vpop.f32.mrb[0].mxu0
        %v2677 = vadd.f32 %v2534, %v2676
        %v2678 = vpop.f32.mrb[0].mxu0
        %v2679 = vpop.f32.mrb[0].mxu0
        %v2680 = vadd.f32 %v2535, %v2679
        %v2681 = vpop.f32.mrb[0].mxu0
        %2682 = vmatprep.mubr.bf16.mxu0 0
        %2683 = vmatmul.mubr.bf16.gmra.mrb[0].mxu0 %v2588
        %v2684 = vpop.f32.mrb[0].mxu0
        %v2685 = vadd.f32 %v2536, %v2684
        %v2686 = vpop.f32.mrb[0].mxu0
        %v2687 = vpop.f32.mrb[0].mxu0
        %v2688 = vadd.f32 %v2537, %v2687
        %v2689 = vpop.f32.mrb[0].mxu0
        %2690 = vmatprep.mubr.bf16.mxu0 0
        %2691 = vmatmul.mubr.bf16.gmra.mrb[0].mxu0 %v2591
        %v2692 = vpop.f32.mrb[0].mxu0
        %v2693 = vadd.f32 %v2538, %v2692
        %v2694 = vpop.f32.mrb[0].mxu0
        %v2695 = vpop.f32.mrb[0].mxu0
        %v2696 = vadd.f32 %v2539, %v2695
        %v2697 = vpop.f32.mrb[0].mxu0
        %2698 = vmatprep.mubr.bf16.mxu0 0
        %2699 = vmatmul.mubr.bf16.gmra.mrb[0].mxu0 %v2594
        %v2700 = vpop.f32.mrb[0].mxu0
        %v2701 = vadd.f32 %v2540, %v2700
        %v2702 = vpop.f32.mrb[0].mxu0
        %v2703 = vpop.f32.mrb[0].mxu0
        %v2704 = vadd.f32 %v2541, %v2703
        %v2705 = vpop.f32.mrb[0].mxu0
        %2706 = vmatprep.mubr.bf16.mxu0 0
        %2707 = vmatmul.mubr.bf16.gmra.mrb[0].mxu0 %v2597
        %v2708 = vpop.f32.mrb[0].mxu0
        %v2709 = vadd.f32 %v2542, %v2708
        %v2710 = vpop.f32.mrb[0].mxu0
        %v2711 = vpop.f32.mrb[0].mxu0
        %v2712 = vadd.f32 %v2543, %v2711
        %v2713 = vpop.f32.mrb[0].mxu0
        %2714 = vmatprep.mubr.bf16.mxu0 0
        %2715 = vmatmul.mubr.bf16.gmra.mrb[0].mxu0 %v2600
        %v2716 = vpop.f32.mrb[0].mxu0
        %v2717 = vadd.f32 %v2544, %v2716
        %v2718 = vpop.f32.mrb[0].mxu0
        %v2719 = vpop.f32.mrb[0].mxu0
        %v2720 = vadd.f32 %v2545, %v2719
        %v2721 = vpop.f32.mrb[0].mxu0
        %2722 = vdwg.mxu0
        %2723 = vmax.xlane.f32.xlu0 %v2661
        %v2724 = vpop.xlane.xlu0 %2723
        %2725 = vmax.xlane.f32.xlu0 %v2664
        %v2726 = vpop.xlane.xlu0 %2725
        %2727 = vmax.xlane.f32.xlu0 %v2669
        %v2728 = vpop.xlane.xlu0 %2727
        %2729 = vmax.xlane.f32.xlu0 %v2672
        %v2730 = vpop.xlane.xlu0 %2729
        %2731 = vmax.xlane.f32.xlu0 %v2677
        %v2732 = vpop.xlane.xlu0 %2731
        %2733 = vmax.xlane.f32.xlu0 %v2680
        %v2734 = vpop.xlane.xlu0 %2733
        %2735 = vmax.xlane.f32.xlu0 %v2685
        %v2736 = vpop.xlane.xlu0 %2735
        %2737 = vmax.xlane.f32.xlu0 %v2688
        %v2738 = vpop.xlane.xlu0 %2737
        %2739 = vmax.xlane.f32.xlu0 %v2693
        %v2740 = vpop.xlane.xlu0 %2739
        %2741 = vmax.xlane.f32.xlu0 %v2696
        %v2742 = vpop.xlane.xlu0 %2741
        %2743 = vmax.xlane.f32.xlu0 %v2701
        %v2744 = vpop.xlane.xlu0 %2743
        %2745 = vmax.xlane.f32.xlu0 %v2704
        %v2746 = vpop.xlane.xlu0 %2745
        %2747 = vmax.xlane.f32.xlu0 %v2709
        %v2748 = vpop.xlane.xlu0 %2747
        %2749 = vmax.xlane.f32.xlu0 %v2712
        %v2750 = vpop.xlane.xlu0 %2749
        %2751 = vmax.xlane.f32.xlu0 %v2717
        %v2752 = vpop.xlane.xlu0 %2751
        %2753 = vmax.xlane.f32.xlu0 %v2720
        %v2754 = vpop.xlane.xlu0 %2753
        %v2755 = vsub.f32 %v2661, %v2724
        %v2756 = vsub.f32 %v2664, %v2726
        %v2757 = vsub.f32 %v2669, %v2728
        %v2758 = vsub.f32 %v2672, %v2730
        %v2759 = vsub.f32 %v2677, %v2732
        %v2760 = vsub.f32 %v2680, %v2734
        %v2761 = vsub.f32 %v2685, %v2736
        %v2762 = vsub.f32 %v2688, %v2738
        %v2763 = vsub.f32 %v2693, %v2740
        %v2764 = vsub.f32 %v2696, %v2742
        %v2765 = vsub.f32 %v2701, %v2744
        %v2766 = vsub.f32 %v2704, %v2746
        %v2767 = vsub.f32 %v2709, %v2748
        %v2768 = vsub.f32 %v2712, %v2750
        %v2769 = vsub.f32 %v2717, %v2752
        %v2770 = vsub.f32 %v2720, %v2754
        %v2771 = vmul.f32 %v2755, 1.442695
        %v2772 = vpow.pop %v2771
        %v2773 = vmul.f32 %v2756, 1.442695
        %v2774 = vpow.pop %v2773
        %v2775 = vmul.f32 %v2757, 1.442695
        %v2776 = vpow.pop %v2775
        %v2777 = vmul.f32 %v2758, 1.442695
        %v2778 = vpow.pop %v2777
        %v2779 = vmul.f32 %v2759, 1.442695
        %v2780 = vpow.pop %v2779
        %v2781 = vmul.f32 %v2760, 1.442695
        %v2782 = vpow.pop %v2781
        %v2783 = vmul.f32 %v2761, 1.442695
        %v2784 = vpow.pop %v2783
        %v2785 = vmul.f32 %v2762, 1.442695
        %v2786 = vpow.pop %v2785
        %v2787 = vmul.f32 %v2763, 1.442695
        %v2788 = vpow.pop %v2787
        %v2789 = vmul.f32 %v2764, 1.442695
        %v2790 = vpow.pop %v2789
        %v2791 = vmul.f32 %v2765, 1.442695
        %v2792 = vpow.pop %v2791
        %v2793 = vmul.f32 %v2766, 1.442695
        %v2794 = vpow.pop %v2793
        %v2795 = vmul.f32 %v2767, 1.442695
        %v2796 = vpow.pop %v2795
        %v2797 = vmul.f32 %v2768, 1.442695
        %v2798 = vpow.pop %v2797
        %v2799 = vmul.f32 %v2769, 1.442695
        %v2800 = vpow.pop %v2799
        %v2801 = vmul.f32 %v2770, 1.442695
        %v2802 = vpow.pop %v2801
        %2803 = vadd.xlane.f32.xlu0 %v2772
        %v2804 = vpop.xlane.xlu0 %2803
        %2805 = vadd.xlane.f32.xlu0 %v2774
        %v2806 = vpop.xlane.xlu0 %2805
        %2807 = vadd.xlane.f32.xlu0 %v2776
        %v2808 = vpop.xlane.xlu0 %2807
        %2809 = vadd.xlane.f32.xlu0 %v2778
        %v2810 = vpop.xlane.xlu0 %2809
        %2811 = vadd.xlane.f32.xlu0 %v2780
        %v2812 = vpop.xlane.xlu0 %2811
        %2813 = vadd.xlane.f32.xlu0 %v2782
        %v2814 = vpop.xlane.xlu0 %2813
        %2815 = vadd.xlane.f32.xlu0 %v2784
        %v2816 = vpop.xlane.xlu0 %2815
        %2817 = vadd.xlane.f32.xlu0 %v2786
        %v2818 = vpop.xlane.xlu0 %2817
        %2819 = vadd.xlane.f32.xlu0 %v2788
        %v2820 = vpop.xlane.xlu0 %2819
        %2821 = vadd.xlane.f32.xlu0 %v2790
        %v2822 = vpop.xlane.xlu0 %2821
        %2823 = vadd.xlane.f32.xlu0 %v2792
        %v2824 = vpop.xlane.xlu0 %2823
        %2825 = vadd.xlane.f32.xlu0 %v2794
        %v2826 = vpop.xlane.xlu0 %2825
        %2827 = vadd.xlane.f32.xlu0 %v2796
        %v2828 = vpop.xlane.xlu0 %2827
        %2829 = vadd.xlane.f32.xlu0 %v2798
        %v2830 = vpop.xlane.xlu0 %2829
        %2831 = vadd.xlane.f32.xlu0 %v2800
        %v2832 = vpop.xlane.xlu0 %2831
        %2833 = vadd.xlane.f32.xlu0 %v2802
        %v2834 = vpop.xlane.xlu0 %2833
        %v2835 = vrcp.pop %v2804
        %v2836 = vmul.f32 %v2772, %v2835
        %v2837 = vrcp.pop %v2806
        %v2838 = vmul.f32 %v2774, %v2837
        %v2839 = vrcp.pop %v2808
        %v2840 = vmul.f32 %v2776, %v2839
        %v2841 = vrcp.pop %v2810
        %v2842 = vmul.f32 %v2778, %v2841
        %v2843 = vrcp.pop %v2812
        %v2844 = vmul.f32 %v2780, %v2843
        %v2845 = vrcp.pop %v2814
        %v2846 = vmul.f32 %v2782, %v2845
        %v2847 = vrcp.pop %v2816
        %v2848 = vmul.f32 %v2784, %v2847
        %v2849 = vrcp.pop %v2818
        %v2850 = vmul.f32 %v2786, %v2849
        %v2851 = vrcp.pop %v2820
        %v2852 = vmul.f32 %v2788, %v2851
        %v2853 = vrcp.pop %v2822
        %v2854 = vmul.f32 %v2790, %v2853
        %v2855 = vrcp.pop %v2824
        %v2856 = vmul.f32 %v2792, %v2855
        %v2857 = vrcp.pop %v2826
        %v2858 = vmul.f32 %v2794, %v2857
        %v2859 = vrcp.pop %v2828
        %v2860 = vmul.f32 %v2796, %v2859
        %v2861 = vrcp.pop %v2830
        %v2862 = vmul.f32 %v2798, %v2861
        %v2863 = vrcp.pop %v2832
        %v2864 = vmul.f32 %v2800, %v2863
        %v2865 = vrcp.pop %v2834
        %v2866 = vmul.f32 %v2802, %v2865
        %v2867 = vpack.c.bf16 %v2838, %v2836
        %v2868 = vpack.c.bf16 %v2842, %v2840
        %v2869 = vpack.c.bf16 %v2846, %v2844
        %v2870 = vpack.c.bf16 %v2850, %v2848
        %v2871 = vpack.c.bf16 %v2854, %v2852
        %v2872 = vpack.c.bf16 %v2858, %v2856
        %v2873 = vpack.c.bf16 %v2862, %v2860
        %v2874 = vpack.c.bf16 %v2866, %v2864
        %2875 = vrot.lane.b32.xlu0 %v1064, 80
        %v2876 = vpop.permute.xlu0 %2875
        %2877 = vrot.lane.b32.xlu0 %v1065, 80
        %v2878 = vpop.permute.xlu0 %2877
        %2879 = vrot.lane.b32.xlu0 %v1066, 80
        %v2880 = vpop.permute.xlu0 %2879
        %2881 = vrot.lane.b32.xlu0 %v1067, 80
        %v2882 = vpop.permute.xlu0 %2881
        %2883 = vrot.lane.b32.xlu0 %v1068, 80
        %v2884 = vpop.permute.xlu0 %2883
        %2885 = vrot.lane.b32.xlu0 %v1069, 80
        %v2886 = vpop.permute.xlu0 %2885
        %2887 = vrot.lane.b32.xlu0 %v1070, 80
        %v2888 = vpop.permute.xlu0 %2887
        %2889 = vrot.lane.b32.xlu0 %v1071, 80
        %v2890 = vpop.permute.xlu0 %2889
        %2899 = vmatprep.subr.bf16.mxu0 0
        %2900 = vmatpush1.bf16.msra.mxu0 %v2876
        %2901 = vmatprep.subr.bf16.mxu0 0
        %2902 = vmatpush1.bf16.msra.mxu0 %v2878
        %2903 = vmatprep.subr.bf16.mxu0 0
        %2904 = vmatpush1.bf16.msra.mxu0 %v2880
        %2905 = vmatprep.subr.bf16.mxu0 0
        %2906 = vmatpush1.bf16.msra.mxu0 %v2882
        %2907 = vmatprep.subr.bf16.mxu0 0
        %2908 = vmatpush1.bf16.msra.mxu0 %v2884
        %2909 = vmatprep.subr.bf16.mxu0 0
        %2910 = vmatpush1.bf16.msra.mxu0 %v2886
        %2911 = vmatprep.subr.bf16.mxu0 0
        %2912 = vmatpush1.bf16.msra.mxu0 %v2888
        %2913 = vmatprep.subr.bf16.mxu0 0
        %2914 = vmatpush1.bf16.msra.mxu0 %v2890
        %2915 = vmatprep.subr.bf16.mxu0 0
        %2916 = vmatpush1.bf16.msra.mxu0 0
        %2917 = vmatprep.subr.bf16.mxu0 0
        %2918 = vmatpush1.bf16.msra.mxu0 0
        %2919 = vmatprep.subr.bf16.mxu0 0
        %2920 = vmatpush1.bf16.msra.mxu0 0
        %2921 = vmatprep.subr.bf16.mxu0 0
        %2922 = vmatpush1.bf16.msra.mxu0 0
        %2923 = vmatprep.subr.bf16.mxu0 0
        %2924 = vmatpush1.bf16.msra.mxu0 0
        %2925 = vmatprep.subr.bf16.mxu0 0
        %2926 = vmatpush1.bf16.msra.mxu0 0
        %2927 = vmatprep.subr.bf16.mxu0 0
        %2928 = vmatpush1.bf16.msra.mxu0 0
        %2929 = vmatprep.subr.bf16.mxu0 0
        %2930 = vmatpush1.bf16.msra.mxu0 0
        %2931 = vmatprep.mubr.bf16.mxu0 0
        %2932 = vmatmul.mubr.bf16.gmra.mrb[0].mxu0 %v2867
        %v2933 = vpop.f32.mrb[0].mxu0
        %v2934 = vadd.f32 0.0, %v2933
        %v2935 = vpop.f32.mrb[0].mxu0
        %v2936 = vpop.f32.mrb[0].mxu0
        %v2937 = vadd.f32 0.0, %v2936
        %v2938 = vpop.f32.mrb[0].mxu0
        %2939 = vmatprep.mubr.bf16.mxu0 0
        %2940 = vmatmul.mubr.bf16.gmra.mrb[0].mxu0 %v2868
        %v2941 = vpop.f32.mrb[0].mxu0
        %v2942 = vadd.f32 0.0, %v2941
        %v2943 = vpop.f32.mrb[0].mxu0
        %v2944 = vpop.f32.mrb[0].mxu0
        %v2945 = vadd.f32 0.0, %v2944
        %v2946 = vpop.f32.mrb[0].mxu0
        %2947 = vmatprep.mubr.bf16.mxu0 0
        %2948 = vmatmul.mubr.bf16.gmra.mrb[0].mxu0 %v2869
        %v2949 = vpop.f32.mrb[0].mxu0
        %v2950 = vadd.f32 0.0, %v2949
        %v2951 = vpop.f32.mrb[0].mxu0
        %v2952 = vpop.f32.mrb[0].mxu0
        %v2953 = vadd.f32 0.0, %v2952
        %v2954 = vpop.f32.mrb[0].mxu0
        %2955 = vmatprep.mubr.bf16.mxu0 0
        %2956 = vmatmul.mubr.bf16.gmra.mrb[0].mxu0 %v2870
        %v2957 = vpop.f32.mrb[0].mxu0
        %v2958 = vadd.f32 0.0, %v2957
        %v2959 = vpop.f32.mrb[0].mxu0
        %v2960 = vpop.f32.mrb[0].mxu0
        %v2961 = vadd.f32 0.0, %v2960
        %v2962 = vpop.f32.mrb[0].mxu0
        %2963 = vmatprep.mubr.bf16.mxu0 0
        %2964 = vmatmul.mubr.bf16.gmra.mrb[0].mxu0 %v2871
        %v2965 = vpop.f32.mrb[0].mxu0
        %v2966 = vadd.f32 0.0, %v2965
        %v2967 = vpop.f32.mrb[0].mxu0
        %v2968 = vpop.f32.mrb[0].mxu0
        %v2969 = vadd.f32 0.0, %v2968
        %v2970 = vpop.f32.mrb[0].mxu0
        %2971 = vmatprep.mubr.bf16.mxu0 0
        %2972 = vmatmul.mubr.bf16.gmra.mrb[0].mxu0 %v2872
        %v2973 = vpop.f32.mrb[0].mxu0
        %v2974 = vadd.f32 0.0, %v2973
        %v2975 = vpop.f32.mrb[0].mxu0
        %v2976 = vpop.f32.mrb[0].mxu0
        %v2977 = vadd.f32 0.0, %v2976
        %v2978 = vpop.f32.mrb[0].mxu0
        %2979 = vmatprep.mubr.bf16.mxu0 0
        %2980 = vmatmul.mubr.bf16.gmra.mrb[0].mxu0 %v2873
        %v2981 = vpop.f32.mrb[0].mxu0
        %v2982 = vadd.f32 0.0, %v2981
        %v2983 = vpop.f32.mrb[0].mxu0
        %v2984 = vpop.f32.mrb[0].mxu0
        %v2985 = vadd.f32 0.0, %v2984
        %v2986 = vpop.f32.mrb[0].mxu0
        %2987 = vmatprep.mubr.bf16.mxu0 0
        %2988 = vmatmul.mubr.bf16.gmra.mrb[0].mxu0 %v2874
        %v2989 = vpop.f32.mrb[0].mxu0
        %v2990 = vadd.f32 0.0, %v2989
        %v2991 = vpop.f32.mrb[0].mxu0
        %v2992 = vpop.f32.mrb[0].mxu0
        %v2993 = vadd.f32 0.0, %v2992
        %v2994 = vpop.f32.mrb[0].mxu0
        %2995 = vdwg.mxu0
        %v2996 = vpack.c.bf16 %v2937, %v2934
        %v2997 = vpack.c.bf16 %v2945, %v2942
        %v2998 = vpack.c.bf16 %v2953, %v2950
        %v2999 = vpack.c.bf16 %v2961, %v2958
        %v3000 = vpack.c.bf16 %v2969, %v2966
        %v3001 = vpack.c.bf16 %v2977, %v2974
        %v3002 = vpack.c.bf16 %v2985, %v2982
        %v3003 = vpack.c.bf16 %v2993, %v2990
        %s3004 = scalar_lea.vmem %s419, 256 [#allocation6]
        %v3005 = vld [vmem:[%s3004] sm:$0xf]
        %v3006 = vld [vmem:[%s3004 + $0x4] sm:$0xf]
        %v3007 = vld [vmem:[%s3004 + $0x8] sm:$0xf]
        %v3008 = vld [vmem:[%s3004 + $0xc] sm:$0xf]
        %v3009 = vld [vmem:[%s3004 + $0x10] sm:$0xf]
        %v3010 = vld [vmem:[%s3004 + $0x14] sm:$0xf]
        %v3011 = vld [vmem:[%s3004 + $0x18] sm:$0xf]
        %v3012 = vld [vmem:[%s3004 + $0x1c] sm:$0xf]
        %v3013 = vld [vmem:[%s3004 + $0x20] sm:$0xf]
        %v3014 = vld [vmem:[%s3004 + $0x24] sm:$0xf]
        %v3015 = vld [vmem:[%s3004 + $0x28] sm:$0xf]
        %v3016 = vld [vmem:[%s3004 + $0x2c] sm:$0xf]
        %v3017 = vld [vmem:[%s3004 + $0x30] sm:$0xf]
        %v3018 = vld [vmem:[%s3004 + $0x34] sm:$0xf]
        %v3019 = vld [vmem:[%s3004 + $0x38] sm:$0xf]
        %v3020 = vld [vmem:[%s3004 + $0x3c] sm:$0xf]
        %v3021 = vunpack.c.l.bf16 %v3005
        %v3022 = vunpack.c.l.bf16 %v3006
        %v3023 = vunpack.c.l.bf16 %v3007
        %v3024 = vunpack.c.l.bf16 %v3008
        %v3025 = vunpack.c.l.bf16 %v3009
        %v3026 = vunpack.c.l.bf16 %v3010
        %v3027 = vunpack.c.l.bf16 %v3011
        %v3028 = vunpack.c.l.bf16 %v3012
        %v3029 = vunpack.c.l.bf16 %v3013
        %v3030 = vunpack.c.l.bf16 %v3014
        %v3031 = vunpack.c.l.bf16 %v3015
        %v3032 = vunpack.c.l.bf16 %v3016
        %v3033 = vunpack.c.l.bf16 %v3017
        %v3034 = vunpack.c.l.bf16 %v3018
        %v3035 = vunpack.c.l.bf16 %v3019
        %v3036 = vunpack.c.l.bf16 %v3020
        %3037 = vrot.lane.b32.xlu0 %v712, 64
        %v3038 = vpop.permute.xlu0 %3037
        %3039 = vrot.lane.b32.xlu0 %v713, 64
        %v3040 = vpop.permute.xlu0 %3039
        %3041 = vrot.lane.b32.xlu0 %v714, 64
        %v3042 = vpop.permute.xlu0 %3041
        %3043 = vrot.lane.b32.xlu0 %v715, 64
        %v3044 = vpop.permute.xlu0 %3043
        %3045 = vrot.lane.b32.xlu0 %v716, 64
        %v3046 = vpop.permute.xlu0 %3045
        %3047 = vrot.lane.b32.xlu0 %v717, 64
        %v3048 = vpop.permute.xlu0 %3047
        %3049 = vrot.lane.b32.xlu0 %v718, 64
        %v3050 = vpop.permute.xlu0 %3049
        %3051 = vrot.lane.b32.xlu0 %v719, 64
        %v3052 = vpop.permute.xlu0 %3051
        %3053 = vrot.lane.b32.xlu0 %v888, 64
        %v3054 = vpop.permute.xlu0 %3053
        %3055 = vrot.lane.b32.xlu0 %v889, 64
        %v3056 = vpop.permute.xlu0 %3055
        %3057 = vrot.lane.b32.xlu0 %v890, 64
        %v3058 = vpop.permute.xlu0 %3057
        %3059 = vrot.lane.b32.xlu0 %v891, 64
        %v3060 = vpop.permute.xlu0 %3059
        %3061 = vrot.lane.b32.xlu0 %v892, 64
        %v3062 = vpop.permute.xlu0 %3061
        %3063 = vrot.lane.b32.xlu0 %v893, 64
        %v3064 = vpop.permute.xlu0 %3063
        %3065 = vrot.lane.b32.xlu0 %v894, 64
        %v3066 = vpop.permute.xlu0 %3065
        %3067 = vrot.lane.b32.xlu0 %v895, 64
        %v3068 = vpop.permute.xlu0 %3067
        %v3070 = vsel %vm1104, %v3038, 0
        %v3073 = vsel %vm1104, %v3040, 0
        %v3076 = vsel %vm1104, %v3042, 0
        %v3079 = vsel %vm1104, %v3044, 0
        %v3082 = vsel %vm1104, %v3046, 0
        %v3085 = vsel %vm1104, %v3048, 0
        %v3088 = vsel %vm1104, %v3050, 0
        %v3091 = vsel %vm1104, %v3052, 0
        %v3094 = vsel %vm1104, %v3054, 0
        %v3097 = vsel %vm1104, %v3056, 0
        %v3100 = vsel %vm1104, %v3058, 0
        %v3103 = vsel %vm1104, %v3060, 0
        %v3106 = vsel %vm1104, %v3062, 0
        %v3109 = vsel %vm1104, %v3064, 0
        %v3112 = vsel %vm1104, %v3066, 0
        %v3115 = vsel %vm1104, %v3068, 0
        %3117 = vmatprep.subr.bf16.mxu0 0
        %3118 = vmatpush1.bf16.xpose.msra.mxu0 %v3094
        %3119 = vmatprep.subr.bf16.mxu0 0
        %3120 = vmatpush1.bf16.xpose.msra.mxu0 %v3097
        %3121 = vmatprep.subr.bf16.mxu0 0
        %3122 = vmatpush1.bf16.xpose.msra.mxu0 %v3100
        %3123 = vmatprep.subr.bf16.mxu0 0
        %3124 = vmatpush1.bf16.xpose.msra.mxu0 %v3103
        %3125 = vmatprep.subr.bf16.mxu0 0
        %3126 = vmatpush1.bf16.xpose.msra.mxu0 %v3106
        %3127 = vmatprep.subr.bf16.mxu0 0
        %3128 = vmatpush1.bf16.xpose.msra.mxu0 %v3109
        %3129 = vmatprep.subr.bf16.mxu0 0
        %3130 = vmatpush1.bf16.xpose.msra.mxu0 %v3112
        %3131 = vmatprep.subr.bf16.mxu0 0
        %3132 = vmatpush1.bf16.xpose.msra.mxu0 %v3115
        %3133 = vmatprep.subr.bf16.mxu0 0
        %3134 = vmatpush1.bf16.xpose.msra.mxu0 0
        %3135 = vmatprep.subr.bf16.mxu0 0
        %3136 = vmatpush1.bf16.xpose.msra.mxu0 0
        %3137 = vmatprep.subr.bf16.mxu0 0
        %3138 = vmatpush1.bf16.xpose.msra.mxu0 0
        %3139 = vmatprep.subr.bf16.mxu0 0
        %3140 = vmatpush1.bf16.xpose.msra.mxu0 0
        %3141 = vmatprep.subr.bf16.mxu0 0
        %3142 = vmatpush1.bf16.xpose.msra.mxu0 0
        %3143 = vmatprep.subr.bf16.mxu0 0
        %3144 = vmatpush1.bf16.xpose.msra.mxu0 0
        %3145 = vmatprep.subr.bf16.mxu0 0
        %3146 = vmatpush1.bf16.xpose.msra.mxu0 0
        %3147 = vmatprep.subr.bf16.mxu0 0
        %3148 = vmatpush1.bf16.xpose.msra.mxu0 0
        %3149 = vmatprep.mubr.bf16.mxu0 0
        %3150 = vmatmul.mubr.bf16.gmra.mrb[0].mxu0 %v3070
        %v3151 = vpop.f32.mrb[0].mxu0
        %v3152 = vadd.f32 %v3021, %v3151
        %v3153 = vpop.f32.mrb[0].mxu0
        %v3154 = vpop.f32.mrb[0].mxu0
        %v3155 = vadd.f32 %v3022, %v3154
        %v3156 = vpop.f32.mrb[0].mxu0
        %3157 = vmatprep.mubr.bf16.mxu0 0
        %3158 = vmatmul.mubr.bf16.gmra.mrb[0].mxu0 %v3073
        %v3159 = vpop.f32.mrb[0].mxu0
        %v3160 = vadd.f32 %v3023, %v3159
        %v3161 = vpop.f32.mrb[0].mxu0
        %v3162 = vpop.f32.mrb[0].mxu0
        %v3163 = vadd.f32 %v3024, %v3162
        %v3164 = vpop.f32.mrb[0].mxu0
        %3165 = vmatprep.mubr.bf16.mxu0 0
        %3166 = vmatmul.mubr.bf16.gmra.mrb[0].mxu0 %v3076
        %v3167 = vpop.f32.mrb[0].mxu0
        %v3168 = vadd.f32 %v3025, %v3167
        %v3169 = vpop.f32.mrb[0].mxu0
        %v3170 = vpop.f32.mrb[0].mxu0
        %v3171 = vadd.f32 %v3026, %v3170
        %v3172 = vpop.f32.mrb[0].mxu0
        %3173 = vmatprep.mubr.bf16.mxu0 0
        %3174 = vmatmul.mubr.bf16.gmra.mrb[0].mxu0 %v3079
        %v3175 = vpop.f32.mrb[0].mxu0
        %v3176 = vadd.f32 %v3027, %v3175
        %v3177 = vpop.f32.mrb[0].mxu0
        %v3178 = vpop.f32.mrb[0].mxu0
        %v3179 = vadd.f32 %v3028, %v3178
        %v3180 = vpop.f32.mrb[0].mxu0
        %3181 = vmatprep.mubr.bf16.mxu0 0
        %3182 = vmatmul.mubr.bf16.gmra.mrb[0].mxu0 %v3082
        %v3183 = vpop.f32.mrb[0].mxu0
        %v3184 = vadd.f32 %v3029, %v3183
        %v3185 = vpop.f32.mrb[0].mxu0
        %v3186 = vpop.f32.mrb[0].mxu0
        %v3187 = vadd.f32 %v3030, %v3186
        %v3188 = vpop.f32.mrb[0].mxu0
        %3189 = vmatprep.mubr.bf16.mxu0 0
        %3190 = vmatmul.mubr.bf16.gmra.mrb[0].mxu0 %v3085
        %v3191 = vpop.f32.mrb[0].mxu0
        %v3192 = vadd.f32 %v3031, %v3191
        %v3193 = vpop.f32.mrb[0].mxu0
        %v3194 = vpop.f32.mrb[0].mxu0
        %v3195 = vadd.f32 %v3032, %v3194
        %v3196 = vpop.f32.mrb[0].mxu0
        %3197 = vmatprep.mubr.bf16.mxu0 0
        %3198 = vmatmul.mubr.bf16.gmra.mrb[0].mxu0 %v3088
        %v3199 = vpop.f32.mrb[0].mxu0
        %v3200 = vadd.f32 %v3033, %v3199
        %v3201 = vpop.f32.mrb[0].mxu0
        %v3202 = vpop.f32.mrb[0].mxu0
        %v3203 = vadd.f32 %v3034, %v3202
        %v3204 = vpop.f32.mrb[0].mxu0
        %3205 = vmatprep.mubr.bf16.mxu0 0
        %3206 = vmatmul.mubr.bf16.gmra.mrb[0].mxu0 %v3091
        %v3207 = vpop.f32.mrb[0].mxu0
        %v3208 = vadd.f32 %v3035, %v3207
        %v3209 = vpop.f32.mrb[0].mxu0
        %v3210 = vpop.f32.mrb[0].mxu0
        %v3211 = vadd.f32 %v3036, %v3210
        %v3212 = vpop.f32.mrb[0].mxu0
        %3213 = vdwg.mxu0
        %3214 = vmax.xlane.f32.xlu0 %v3152
        %v3215 = vpop.xlane.xlu0 %3214
        %3216 = vmax.xlane.f32.xlu0 %v3155
        %v3217 = vpop.xlane.xlu0 %3216
        %3218 = vmax.xlane.f32.xlu0 %v3160
        %v3219 = vpop.xlane.xlu0 %3218
        %3220 = vmax.xlane.f32.xlu0 %v3163
        %v3221 = vpop.xlane.xlu0 %3220
        %3222 = vmax.xlane.f32.xlu0 %v3168
        %v3223 = vpop.xlane.xlu0 %3222
        %3224 = vmax.xlane.f32.xlu0 %v3171
        %v3225 = vpop.xlane.xlu0 %3224
        %3226 = vmax.xlane.f32.xlu0 %v3176
        %v3227 = vpop.xlane.xlu0 %3226
        %3228 = vmax.xlane.f32.xlu0 %v3179
        %v3229 = vpop.xlane.xlu0 %3228
        %3230 = vmax.xlane.f32.xlu0 %v3184
        %v3231 = vpop.xlane.xlu0 %3230
        %3232 = vmax.xlane.f32.xlu0 %v3187
        %v3233 = vpop.xlane.xlu0 %3232
        %3234 = vmax.xlane.f32.xlu0 %v3192
        %v3235 = vpop.xlane.xlu0 %3234
        %3236 = vmax.xlane.f32.xlu0 %v3195
        %v3237 = vpop.xlane.xlu0 %3236
        %3238 = vmax.xlane.f32.xlu0 %v3200
        %v3239 = vpop.xlane.xlu0 %3238
        %3240 = vmax.xlane.f32.xlu0 %v3203
        %v3241 = vpop.xlane.xlu0 %3240
        %3242 = vmax.xlane.f32.xlu0 %v3208
        %v3243 = vpop.xlane.xlu0 %3242
        %3244 = vmax.xlane.f32.xlu0 %v3211
        %v3245 = vpop.xlane.xlu0 %3244
        %v3246 = vsub.f32 %v3152, %v3215
        %v3247 = vsub.f32 %v3155, %v3217
        %v3248 = vsub.f32 %v3160, %v3219
        %v3249 = vsub.f32 %v3163, %v3221
        %v3250 = vsub.f32 %v3168, %v3223
        %v3251 = vsub.f32 %v3171, %v3225
        %v3252 = vsub.f32 %v3176, %v3227
        %v3253 = vsub.f32 %v3179, %v3229
        %v3254 = vsub.f32 %v3184, %v3231
        %v3255 = vsub.f32 %v3187, %v3233
        %v3256 = vsub.f32 %v3192, %v3235
        %v3257 = vsub.f32 %v3195, %v3237
        %v3258 = vsub.f32 %v3200, %v3239
        %v3259 = vsub.f32 %v3203, %v3241
        %v3260 = vsub.f32 %v3208, %v3243
        %v3261 = vsub.f32 %v3211, %v3245
        %v3262 = vmul.f32 %v3246, 1.442695
        %v3263 = vpow.pop %v3262
        %v3264 = vmul.f32 %v3247, 1.442695
        %v3265 = vpow.pop %v3264
        %v3266 = vmul.f32 %v3248, 1.442695
        %v3267 = vpow.pop %v3266
        %v3268 = vmul.f32 %v3249, 1.442695
        %v3269 = vpow.pop %v3268
        %v3270 = vmul.f32 %v3250, 1.442695
        %v3271 = vpow.pop %v3270
        %v3272 = vmul.f32 %v3251, 1.442695
        %v3273 = vpow.pop %v3272
        %v3274 = vmul.f32 %v3252, 1.442695
        %v3275 = vpow.pop %v3274
        %v3276 = vmul.f32 %v3253, 1.442695
        %v3277 = vpow.pop %v3276
        %v3278 = vmul.f32 %v3254, 1.442695
        %v3279 = vpow.pop %v3278
        %v3280 = vmul.f32 %v3255, 1.442695
        %v3281 = vpow.pop %v3280
        %v3282 = vmul.f32 %v3256, 1.442695
        %v3283 = vpow.pop %v3282
        %v3284 = vmul.f32 %v3257, 1.442695
        %v3285 = vpow.pop %v3284
        %v3286 = vmul.f32 %v3258, 1.442695
        %v3287 = vpow.pop %v3286
        %v3288 = vmul.f32 %v3259, 1.442695
        %v3289 = vpow.pop %v3288
        %v3290 = vmul.f32 %v3260, 1.442695
        %v3291 = vpow.pop %v3290
        %v3292 = vmul.f32 %v3261, 1.442695
        %v3293 = vpow.pop %v3292
        %3294 = vadd.xlane.f32.xlu0 %v3263
        %v3295 = vpop.xlane.xlu0 %3294
        %3296 = vadd.xlane.f32.xlu0 %v3265
        %v3297 = vpop.xlane.xlu0 %3296
        %3298 = vadd.xlane.f32.xlu0 %v3267
        %v3299 = vpop.xlane.xlu0 %3298
        %3300 = vadd.xlane.f32.xlu0 %v3269
        %v3301 = vpop.xlane.xlu0 %3300
        %3302 = vadd.xlane.f32.xlu0 %v3271
        %v3303 = vpop.xlane.xlu0 %3302
        %3304 = vadd.xlane.f32.xlu0 %v3273
        %v3305 = vpop.xlane.xlu0 %3304
        %3306 = vadd.xlane.f32.xlu0 %v3275
        %v3307 = vpop.xlane.xlu0 %3306
        %3308 = vadd.xlane.f32.xlu0 %v3277
        %v3309 = vpop.xlane.xlu0 %3308
        %3310 = vadd.xlane.f32.xlu0 %v3279
        %v3311 = vpop.xlane.xlu0 %3310
        %3312 = vadd.xlane.f32.xlu0 %v3281
        %v3313 = vpop.xlane.xlu0 %3312
        %3314 = vadd.xlane.f32.xlu0 %v3283
        %v3315 = vpop.xlane.xlu0 %3314
        %3316 = vadd.xlane.f32.xlu0 %v3285
        %v3317 = vpop.xlane.xlu0 %3316
        %3318 = vadd.xlane.f32.xlu0 %v3287
        %v3319 = vpop.xlane.xlu0 %3318
        %3320 = vadd.xlane.f32.xlu0 %v3289
        %v3321 = vpop.xlane.xlu0 %3320
        %3322 = vadd.xlane.f32.xlu0 %v3291
        %v3323 = vpop.xlane.xlu0 %3322
        %3324 = vadd.xlane.f32.xlu0 %v3293
        %v3325 = vpop.xlane.xlu0 %3324
        %v3326 = vrcp.pop %v3295
        %v3327 = vmul.f32 %v3263, %v3326
        %v3328 = vrcp.pop %v3297
        %v3329 = vmul.f32 %v3265, %v3328
        %v3330 = vrcp.pop %v3299
        %v3331 = vmul.f32 %v3267, %v3330
        %v3332 = vrcp.pop %v3301
        %v3333 = vmul.f32 %v3269, %v3332
        %v3334 = vrcp.pop %v3303
        %v3335 = vmul.f32 %v3271, %v3334
        %v3336 = vrcp.pop %v3305
        %v3337 = vmul.f32 %v3273, %v3336
        %v3338 = vrcp.pop %v3307
        %v3339 = vmul.f32 %v3275, %v3338
        %v3340 = vrcp.pop %v3309
        %v3341 = vmul.f32 %v3277, %v3340
        %v3342 = vrcp.pop %v3311
        %v3343 = vmul.f32 %v3279, %v3342
        %v3344 = vrcp.pop %v3313
        %v3345 = vmul.f32 %v3281, %v3344
        %v3346 = vrcp.pop %v3315
        %v3347 = vmul.f32 %v3283, %v3346
        %v3348 = vrcp.pop %v3317
        %v3349 = vmul.f32 %v3285, %v3348
        %v3350 = vrcp.pop %v3319
        %v3351 = vmul.f32 %v3287, %v3350
        %v3352 = vrcp.pop %v3321
        %v3353 = vmul.f32 %v3289, %v3352
        %v3354 = vrcp.pop %v3323
        %v3355 = vmul.f32 %v3291, %v3354
        %v3356 = vrcp.pop %v3325
        %v3357 = vmul.f32 %v3293, %v3356
        %v3358 = vpack.c.bf16 %v3329, %v3327
        %v3359 = vpack.c.bf16 %v3333, %v3331
        %v3360 = vpack.c.bf16 %v3337, %v3335
        %v3361 = vpack.c.bf16 %v3341, %v3339
        %v3362 = vpack.c.bf16 %v3345, %v3343
        %v3363 = vpack.c.bf16 %v3349, %v3347
        %v3364 = vpack.c.bf16 %v3353, %v3351
        %v3365 = vpack.c.bf16 %v3357, %v3355
        %3366 = vrot.lane.b32.xlu0 %v1064, 64
        %v3367 = vpop.permute.xlu0 %3366
        %3368 = vrot.lane.b32.xlu0 %v1065, 64
        %v3369 = vpop.permute.xlu0 %3368
        %3370 = vrot.lane.b32.xlu0 %v1066, 64
        %v3371 = vpop.permute.xlu0 %3370
        %3372 = vrot.lane.b32.xlu0 %v1067, 64
        %v3373 = vpop.permute.xlu0 %3372
        %3374 = vrot.lane.b32.xlu0 %v1068, 64
        %v3375 = vpop.permute.xlu0 %3374
        %3376 = vrot.lane.b32.xlu0 %v1069, 64
        %v3377 = vpop.permute.xlu0 %3376
        %3378 = vrot.lane.b32.xlu0 %v1070, 64
        %v3379 = vpop.permute.xlu0 %3378
        %3380 = vrot.lane.b32.xlu0 %v1071, 64
        %v3381 = vpop.permute.xlu0 %3380
        %3390 = vmatprep.subr.bf16.mxu0 0
        %3391 = vmatpush1.bf16.msra.mxu0 %v3367
        %3392 = vmatprep.subr.bf16.mxu0 0
        %3393 = vmatpush1.bf16.msra.mxu0 %v3369
        %3394 = vmatprep.subr.bf16.mxu0 0
        %3395 = vmatpush1.bf16.msra.mxu0 %v3371
        %3396 = vmatprep.subr.bf16.mxu0 0
        %3397 = vmatpush1.bf16.msra.mxu0 %v3373
        %3398 = vmatprep.subr.bf16.mxu0 0
        %3399 = vmatpush1.bf16.msra.mxu0 %v3375
        %3400 = vmatprep.subr.bf16.mxu0 0
        %3401 = vmatpush1.bf16.msra.mxu0 %v3377
        %3402 = vmatprep.subr.bf16.mxu0 0
        %3403 = vmatpush1.bf16.msra.mxu0 %v3379
        %3404 = vmatprep.subr.bf16.mxu0 0
        %3405 = vmatpush1.bf16.msra.mxu0 %v3381
        %3406 = vmatprep.subr.bf16.mxu0 0
        %3407 = vmatpush1.bf16.msra.mxu0 0
        %3408 = vmatprep.subr.bf16.mxu0 0
        %3409 = vmatpush1.bf16.msra.mxu0 0
        %3410 = vmatprep.subr.bf16.mxu0 0
        %3411 = vmatpush1.bf16.msra.mxu0 0
        %3412 = vmatprep.subr.bf16.mxu0 0
        %3413 = vmatpush1.bf16.msra.mxu0 0
        %3414 = vmatprep.subr.bf16.mxu0 0
        %3415 = vmatpush1.bf16.msra.mxu0 0
        %3416 = vmatprep.subr.bf16.mxu0 0
        %3417 = vmatpush1.bf16.msra.mxu0 0
        %3418 = vmatprep.subr.bf16.mxu0 0
        %3419 = vmatpush1.bf16.msra.mxu0 0
        %3420 = vmatprep.subr.bf16.mxu0 0
        %3421 = vmatpush1.bf16.msra.mxu0 0
        %3422 = vmatprep.mubr.bf16.mxu0 0
        %3423 = vmatmul.mubr.bf16.gmra.mrb[0].mxu0 %v3358
        %v3424 = vpop.f32.mrb[0].mxu0
        %v3425 = vadd.f32 0.0, %v3424
        %v3426 = vpop.f32.mrb[0].mxu0
        %v3427 = vpop.f32.mrb[0].mxu0
        %v3428 = vadd.f32 0.0, %v3427
        %v3429 = vpop.f32.mrb[0].mxu0
        %3430 = vmatprep.mubr.bf16.mxu0 0
        %3431 = vmatmul.mubr.bf16.gmra.mrb[0].mxu0 %v3359
        %v3432 = vpop.f32.mrb[0].mxu0
        %v3433 = vadd.f32 0.0, %v3432
        %v3434 = vpop.f32.mrb[0].mxu0
        %v3435 = vpop.f32.mrb[0].mxu0
        %v3436 = vadd.f32 0.0, %v3435
        %v3437 = vpop.f32.mrb[0].mxu0
        %3438 = vmatprep.mubr.bf16.mxu0 0
        %3439 = vmatmul.mubr.bf16.gmra.mrb[0].mxu0 %v3360
        %v3440 = vpop.f32.mrb[0].mxu0
        %v3441 = vadd.f32 0.0, %v3440
        %v3442 = vpop.f32.mrb[0].mxu0
        %v3443 = vpop.f32.mrb[0].mxu0
        %v3444 = vadd.f32 0.0, %v3443
        %v3445 = vpop.f32.mrb[0].mxu0
        %3446 = vmatprep.mubr.bf16.mxu0 0
        %3447 = vmatmul.mubr.bf16.gmra.mrb[0].mxu0 %v3361
        %v3448 = vpop.f32.mrb[0].mxu0
        %v3449 = vadd.f32 0.0, %v3448
        %v3450 = vpop.f32.mrb[0].mxu0
        %v3451 = vpop.f32.mrb[0].mxu0
        %v3452 = vadd.f32 0.0, %v3451
        %v3453 = vpop.f32.mrb[0].mxu0
        %3454 = vmatprep.mubr.bf16.mxu0 0
        %3455 = vmatmul.mubr.bf16.gmra.mrb[0].mxu0 %v3362
        %v3456 = vpop.f32.mrb[0].mxu0
        %v3457 = vadd.f32 0.0, %v3456
        %v3458 = vpop.f32.mrb[0].mxu0
        %v3459 = vpop.f32.mrb[0].mxu0
        %v3460 = vadd.f32 0.0, %v3459
        %v3461 = vpop.f32.mrb[0].mxu0
        %3462 = vmatprep.mubr.bf16.mxu0 0
        %3463 = vmatmul.mubr.bf16.gmra.mrb[0].mxu0 %v3363
        %v3464 = vpop.f32.mrb[0].mxu0
        %v3465 = vadd.f32 0.0, %v3464
        %v3466 = vpop.f32.mrb[0].mxu0
        %v3467 = vpop.f32.mrb[0].mxu0
        %v3468 = vadd.f32 0.0, %v3467
        %v3469 = vpop.f32.mrb[0].mxu0
        %3470 = vmatprep.mubr.bf16.mxu0 0
        %3471 = vmatmul.mubr.bf16.gmra.mrb[0].mxu0 %v3364
        %v3472 = vpop.f32.mrb[0].mxu0
        %v3473 = vadd.f32 0.0, %v3472
        %v3474 = vpop.f32.mrb[0].mxu0
        %v3475 = vpop.f32.mrb[0].mxu0
        %v3476 = vadd.f32 0.0, %v3475
        %v3477 = vpop.f32.mrb[0].mxu0
        %3478 = vmatprep.mubr.bf16.mxu0 0
        %3479 = vmatmul.mubr.bf16.gmra.mrb[0].mxu0 %v3365
        %v3480 = vpop.f32.mrb[0].mxu0
        %v3481 = vadd.f32 0.0, %v3480
        %v3482 = vpop.f32.mrb[0].mxu0
        %v3483 = vpop.f32.mrb[0].mxu0
        %v3484 = vadd.f32 0.0, %v3483
        %v3485 = vpop.f32.mrb[0].mxu0
        %3486 = vdwg.mxu0
        %v3487 = vpack.c.bf16 %v3428, %v3425
        %v3488 = vpack.c.bf16 %v3436, %v3433
        %v3489 = vpack.c.bf16 %v3444, %v3441
        %v3490 = vpack.c.bf16 %v3452, %v3449
        %v3491 = vpack.c.bf16 %v3460, %v3457
        %v3492 = vpack.c.bf16 %v3468, %v3465
        %v3493 = vpack.c.bf16 %v3476, %v3473
        %v3494 = vpack.c.bf16 %v3484, %v3481
        %s3495 = scalar_lea.vmem %s419, 320 [#allocation6]
        %v3496 = vld [vmem:[%s3495] sm:$0xf]
        %v3497 = vld [vmem:[%s3495 + $0x4] sm:$0xf]
        %v3498 = vld [vmem:[%s3495 + $0x8] sm:$0xf]
        %v3499 = vld [vmem:[%s3495 + $0xc] sm:$0xf]
        %v3500 = vld [vmem:[%s3495 + $0x10] sm:$0xf]
        %v3501 = vld [vmem:[%s3495 + $0x14] sm:$0xf]
        %v3502 = vld [vmem:[%s3495 + $0x18] sm:$0xf]
        %v3503 = vld [vmem:[%s3495 + $0x1c] sm:$0xf]
        %v3504 = vld [vmem:[%s3495 + $0x20] sm:$0xf]
        %v3505 = vld [vmem:[%s3495 + $0x24] sm:$0xf]
        %v3506 = vld [vmem:[%s3495 + $0x28] sm:$0xf]
        %v3507 = vld [vmem:[%s3495 + $0x2c] sm:$0xf]
        %v3508 = vld [vmem:[%s3495 + $0x30] sm:$0xf]
        %v3509 = vld [vmem:[%s3495 + $0x34] sm:$0xf]
        %v3510 = vld [vmem:[%s3495 + $0x38] sm:$0xf]
        %v3511 = vld [vmem:[%s3495 + $0x3c] sm:$0xf]
        %v3512 = vunpack.c.l.bf16 %v3496
        %v3513 = vunpack.c.l.bf16 %v3497
        %v3514 = vunpack.c.l.bf16 %v3498
        %v3515 = vunpack.c.l.bf16 %v3499
        %v3516 = vunpack.c.l.bf16 %v3500
        %v3517 = vunpack.c.l.bf16 %v3501
        %v3518 = vunpack.c.l.bf16 %v3502
        %v3519 = vunpack.c.l.bf16 %v3503
        %v3520 = vunpack.c.l.bf16 %v3504
        %v3521 = vunpack.c.l.bf16 %v3505
        %v3522 = vunpack.c.l.bf16 %v3506
        %v3523 = vunpack.c.l.bf16 %v3507
        %v3524 = vunpack.c.l.bf16 %v3508
        %v3525 = vunpack.c.l.bf16 %v3509
        %v3526 = vunpack.c.l.bf16 %v3510
        %v3527 = vunpack.c.l.bf16 %v3511
        %3528 = vrot.lane.b32.xlu0 %v712, 48
        %v3529 = vpop.permute.xlu0 %3528
        %3530 = vrot.lane.b32.xlu0 %v713, 48
        %v3531 = vpop.permute.xlu0 %3530
        %3532 = vrot.lane.b32.xlu0 %v714, 48
        %v3533 = vpop.permute.xlu0 %3532
        %3534 = vrot.lane.b32.xlu0 %v715, 48
        %v3535 = vpop.permute.xlu0 %3534
        %3536 = vrot.lane.b32.xlu0 %v716, 48
        %v3537 = vpop.permute.xlu0 %3536
        %3538 = vrot.lane.b32.xlu0 %v717, 48
        %v3539 = vpop.permute.xlu0 %3538
        %3540 = vrot.lane.b32.xlu0 %v718, 48
        %v3541 = vpop.permute.xlu0 %3540
        %3542 = vrot.lane.b32.xlu0 %v719, 48
        %v3543 = vpop.permute.xlu0 %3542
        %3544 = vrot.lane.b32.xlu0 %v888, 48
        %v3545 = vpop.permute.xlu0 %3544
        %3546 = vrot.lane.b32.xlu0 %v889, 48
        %v3547 = vpop.permute.xlu0 %3546
        %3548 = vrot.lane.b32.xlu0 %v890, 48
        %v3549 = vpop.permute.xlu0 %3548
        %3550 = vrot.lane.b32.xlu0 %v891, 48
        %v3551 = vpop.permute.xlu0 %3550
        %3552 = vrot.lane.b32.xlu0 %v892, 48
        %v3553 = vpop.permute.xlu0 %3552
        %3554 = vrot.lane.b32.xlu0 %v893, 48
        %v3555 = vpop.permute.xlu0 %3554
        %3556 = vrot.lane.b32.xlu0 %v894, 48
        %v3557 = vpop.permute.xlu0 %3556
        %3558 = vrot.lane.b32.xlu0 %v895, 48
        %v3559 = vpop.permute.xlu0 %3558
        %v3561 = vsel %vm1104, %v3529, 0
        %v3564 = vsel %vm1104, %v3531, 0
        %v3567 = vsel %vm1104, %v3533, 0
        %v3570 = vsel %vm1104, %v3535, 0
        %v3573 = vsel %vm1104, %v3537, 0
        %v3576 = vsel %vm1104, %v3539, 0
        %v3579 = vsel %vm1104, %v3541, 0
        %v3582 = vsel %vm1104, %v3543, 0
        %v3585 = vsel %vm1104, %v3545, 0
        %v3588 = vsel %vm1104, %v3547, 0
        %v3591 = vsel %vm1104, %v3549, 0
        %v3594 = vsel %vm1104, %v3551, 0
        %v3597 = vsel %vm1104, %v3553, 0
        %v3600 = vsel %vm1104, %v3555, 0
        %v3603 = vsel %vm1104, %v3557, 0
        %v3606 = vsel %vm1104, %v3559, 0
        %3608 = vmatprep.subr.bf16.mxu0 0
        %3609 = vmatpush1.bf16.xpose.msra.mxu0 %v3585
        %3610 = vmatprep.subr.bf16.mxu0 0
        %3611 = vmatpush1.bf16.xpose.msra.mxu0 %v3588
        %3612 = vmatprep.subr.bf16.mxu0 0
        %3613 = vmatpush1.bf16.xpose.msra.mxu0 %v3591
        %3614 = vmatprep.subr.bf16.mxu0 0
        %3615 = vmatpush1.bf16.xpose.msra.mxu0 %v3594
        %3616 = vmatprep.subr.bf16.mxu0 0
        %3617 = vmatpush1.bf16.xpose.msra.mxu0 %v3597
        %3618 = vmatprep.subr.bf16.mxu0 0
        %3619 = vmatpush1.bf16.xpose.msra.mxu0 %v3600
        %3620 = vmatprep.subr.bf16.mxu0 0
        %3621 = vmatpush1.bf16.xpose.msra.mxu0 %v3603
        %3622 = vmatprep.subr.bf16.mxu0 0
        %3623 = vmatpush1.bf16.xpose.msra.mxu0 %v3606
        %3624 = vmatprep.subr.bf16.mxu0 0
        %3625 = vmatpush1.bf16.xpose.msra.mxu0 0
        %3626 = vmatprep.subr.bf16.mxu0 0
        %3627 = vmatpush1.bf16.xpose.msra.mxu0 0
        %3628 = vmatprep.subr.bf16.mxu0 0
        %3629 = vmatpush1.bf16.xpose.msra.mxu0 0
        %3630 = vmatprep.subr.bf16.mxu0 0
        %3631 = vmatpush1.bf16.xpose.msra.mxu0 0
        %3632 = vmatprep.subr.bf16.mxu0 0
        %3633 = vmatpush1.bf16.xpose.msra.mxu0 0
        %3634 = vmatprep.subr.bf16.mxu0 0
        %3635 = vmatpush1.bf16.xpose.msra.mxu0 0
        %3636 = vmatprep.subr.bf16.mxu0 0
        %3637 = vmatpush1.bf16.xpose.msra.mxu0 0
        %3638 = vmatprep.subr.bf16.mxu0 0
        %3639 = vmatpush1.bf16.xpose.msra.mxu0 0
        %3640 = vmatprep.mubr.bf16.mxu0 0
        %3641 = vmatmul.mubr.bf16.gmra.mrb[0].mxu0 %v3561
        %v3642 = vpop.f32.mrb[0].mxu0
        %v3643 = vadd.f32 %v3512, %v3642
        %v3644 = vpop.f32.mrb[0].mxu0
        %v3645 = vpop.f32.mrb[0].mxu0
        %v3646 = vadd.f32 %v3513, %v3645
        %v3647 = vpop.f32.mrb[0].mxu0
        %3648 = vmatprep.mubr.bf16.mxu0 0
        %3649 = vmatmul.mubr.bf16.gmra.mrb[0].mxu0 %v3564
        %v3650 = vpop.f32.mrb[0].mxu0
        %v3651 = vadd.f32 %v3514, %v3650
        %v3652 = vpop.f32.mrb[0].mxu0
        %v3653 = vpop.f32.mrb[0].mxu0
        %v3654 = vadd.f32 %v3515, %v3653
        %v3655 = vpop.f32.mrb[0].mxu0
        %3656 = vmatprep.mubr.bf16.mxu0 0
        %3657 = vmatmul.mubr.bf16.gmra.mrb[0].mxu0 %v3567
        %v3658 = vpop.f32.mrb[0].mxu0
        %v3659 = vadd.f32 %v3516, %v3658
        %v3660 = vpop.f32.mrb[0].mxu0
        %v3661 = vpop.f32.mrb[0].mxu0
        %v3662 = vadd.f32 %v3517, %v3661
        %v3663 = vpop.f32.mrb[0].mxu0
        %3664 = vmatprep.mubr.bf16.mxu0 0
        %3665 = vmatmul.mubr.bf16.gmra.mrb[0].mxu0 %v3570
        %v3666 = vpop.f32.mrb[0].mxu0
        %v3667 = vadd.f32 %v3518, %v3666
        %v3668 = vpop.f32.mrb[0].mxu0
        %v3669 = vpop.f32.mrb[0].mxu0
        %v3670 = vadd.f32 %v3519, %v3669
        %v3671 = vpop.f32.mrb[0].mxu0
        %3672 = vmatprep.mubr.bf16.mxu0 0
        %3673 = vmatmul.mubr.bf16.gmra.mrb[0].mxu0 %v3573
        %v3674 = vpop.f32.mrb[0].mxu0
        %v3675 = vadd.f32 %v3520, %v3674
        %v3676 = vpop.f32.mrb[0].mxu0
        %v3677 = vpop.f32.mrb[0].mxu0
        %v3678 = vadd.f32 %v3521, %v3677
        %v3679 = vpop.f32.mrb[0].mxu0
        %3680 = vmatprep.mubr.bf16.mxu0 0
        %3681 = vmatmul.mubr.bf16.gmra.mrb[0].mxu0 %v3576
        %v3682 = vpop.f32.mrb[0].mxu0
        %v3683 = vadd.f32 %v3522, %v3682
        %v3684 = vpop.f32.mrb[0].mxu0
        %v3685 = vpop.f32.mrb[0].mxu0
        %v3686 = vadd.f32 %v3523, %v3685
        %v3687 = vpop.f32.mrb[0].mxu0
        %3688 = vmatprep.mubr.bf16.mxu0 0
        %3689 = vmatmul.mubr.bf16.gmra.mrb[0].mxu0 %v3579
        %v3690 = vpop.f32.mrb[0].mxu0
        %v3691 = vadd.f32 %v3524, %v3690
        %v3692 = vpop.f32.mrb[0].mxu0
        %v3693 = vpop.f32.mrb[0].mxu0
        %v3694 = vadd.f32 %v3525, %v3693
        %v3695 = vpop.f32.mrb[0].mxu0
        %3696 = vmatprep.mubr.bf16.mxu0 0
        %3697 = vmatmul.mubr.bf16.gmra.mrb[0].mxu0 %v3582
        %v3698 = vpop.f32.mrb[0].mxu0
        %v3699 = vadd.f32 %v3526, %v3698
        %v3700 = vpop.f32.mrb[0].mxu0
        %v3701 = vpop.f32.mrb[0].mxu0
        %v3702 = vadd.f32 %v3527, %v3701
        %v3703 = vpop.f32.mrb[0].mxu0
        %3704 = vdwg.mxu0
        %3705 = vmax.xlane.f32.xlu0 %v3643
        %v3706 = vpop.xlane.xlu0 %3705
        %3707 = vmax.xlane.f32.xlu0 %v3646
        %v3708 = vpop.xlane.xlu0 %3707
        %3709 = vmax.xlane.f32.xlu0 %v3651
        %v3710 = vpop.xlane.xlu0 %3709
        %3711 = vmax.xlane.f32.xlu0 %v3654
        %v3712 = vpop.xlane.xlu0 %3711
        %3713 = vmax.xlane.f32.xlu0 %v3659
        %v3714 = vpop.xlane.xlu0 %3713
        %3715 = vmax.xlane.f32.xlu0 %v3662
        %v3716 = vpop.xlane.xlu0 %3715
        %3717 = vmax.xlane.f32.xlu0 %v3667
        %v3718 = vpop.xlane.xlu0 %3717
        %3719 = vmax.xlane.f32.xlu0 %v3670
        %v3720 = vpop.xlane.xlu0 %3719
        %3721 = vmax.xlane.f32.xlu0 %v3675
        %v3722 = vpop.xlane.xlu0 %3721
        %3723 = vmax.xlane.f32.xlu0 %v3678
        %v3724 = vpop.xlane.xlu0 %3723
        %3725 = vmax.xlane.f32.xlu0 %v3683
        %v3726 = vpop.xlane.xlu0 %3725
        %3727 = vmax.xlane.f32.xlu0 %v3686
        %v3728 = vpop.xlane.xlu0 %3727
        %3729 = vmax.xlane.f32.xlu0 %v3691
        %v3730 = vpop.xlane.xlu0 %3729
        %3731 = vmax.xlane.f32.xlu0 %v3694
        %v3732 = vpop.xlane.xlu0 %3731
        %3733 = vmax.xlane.f32.xlu0 %v3699
        %v3734 = vpop.xlane.xlu0 %3733
        %3735 = vmax.xlane.f32.xlu0 %v3702
        %v3736 = vpop.xlane.xlu0 %3735
        %v3737 = vsub.f32 %v3643, %v3706
        %v3738 = vsub.f32 %v3646, %v3708
        %v3739 = vsub.f32 %v3651, %v3710
        %v3740 = vsub.f32 %v3654, %v3712
        %v3741 = vsub.f32 %v3659, %v3714
        %v3742 = vsub.f32 %v3662, %v3716
        %v3743 = vsub.f32 %v3667, %v3718
        %v3744 = vsub.f32 %v3670, %v3720
        %v3745 = vsub.f32 %v3675, %v3722
        %v3746 = vsub.f32 %v3678, %v3724
        %v3747 = vsub.f32 %v3683, %v3726
        %v3748 = vsub.f32 %v3686, %v3728
        %v3749 = vsub.f32 %v3691, %v3730
        %v3750 = vsub.f32 %v3694, %v3732
        %v3751 = vsub.f32 %v3699, %v3734
        %v3752 = vsub.f32 %v3702, %v3736
        %v3753 = vmul.f32 %v3737, 1.442695
        %v3754 = vpow.pop %v3753
        %v3755 = vmul.f32 %v3738, 1.442695
        %v3756 = vpow.pop %v3755
        %v3757 = vmul.f32 %v3739, 1.442695
        %v3758 = vpow.pop %v3757
        %v3759 = vmul.f32 %v3740, 1.442695
        %v3760 = vpow.pop %v3759
        %v3761 = vmul.f32 %v3741, 1.442695
        %v3762 = vpow.pop %v3761
        %v3763 = vmul.f32 %v3742, 1.442695
        %v3764 = vpow.pop %v3763
        %v3765 = vmul.f32 %v3743, 1.442695
        %v3766 = vpow.pop %v3765
        %v3767 = vmul.f32 %v3744, 1.442695
        %v3768 = vpow.pop %v3767
        %v3769 = vmul.f32 %v3745, 1.442695
        %v3770 = vpow.pop %v3769
        %v3771 = vmul.f32 %v3746, 1.442695
        %v3772 = vpow.pop %v3771
        %v3773 = vmul.f32 %v3747, 1.442695
        %v3774 = vpow.pop %v3773
        %v3775 = vmul.f32 %v3748, 1.442695
        %v3776 = vpow.pop %v3775
        %v3777 = vmul.f32 %v3749, 1.442695
        %v3778 = vpow.pop %v3777
        %v3779 = vmul.f32 %v3750, 1.442695
        %v3780 = vpow.pop %v3779
        %v3781 = vmul.f32 %v3751, 1.442695
        %v3782 = vpow.pop %v3781
        %v3783 = vmul.f32 %v3752, 1.442695
        %v3784 = vpow.pop %v3783
        %3785 = vadd.xlane.f32.xlu0 %v3754
        %v3786 = vpop.xlane.xlu0 %3785
        %3787 = vadd.xlane.f32.xlu0 %v3756
        %v3788 = vpop.xlane.xlu0 %3787
        %3789 = vadd.xlane.f32.xlu0 %v3758
        %v3790 = vpop.xlane.xlu0 %3789
        %3791 = vadd.xlane.f32.xlu0 %v3760
        %v3792 = vpop.xlane.xlu0 %3791
        %3793 = vadd.xlane.f32.xlu0 %v3762
        %v3794 = vpop.xlane.xlu0 %3793
        %3795 = vadd.xlane.f32.xlu0 %v3764
        %v3796 = vpop.xlane.xlu0 %3795
        %3797 = vadd.xlane.f32.xlu0 %v3766
        %v3798 = vpop.xlane.xlu0 %3797
        %3799 = vadd.xlane.f32.xlu0 %v3768
        %v3800 = vpop.xlane.xlu0 %3799
        %3801 = vadd.xlane.f32.xlu0 %v3770
        %v3802 = vpop.xlane.xlu0 %3801
        %3803 = vadd.xlane.f32.xlu0 %v3772
        %v3804 = vpop.xlane.xlu0 %3803
        %3805 = vadd.xlane.f32.xlu0 %v3774
        %v3806 = vpop.xlane.xlu0 %3805
        %3807 = vadd.xlane.f32.xlu0 %v3776
        %v3808 = vpop.xlane.xlu0 %3807
        %3809 = vadd.xlane.f32.xlu0 %v3778
        %v3810 = vpop.xlane.xlu0 %3809
        %3811 = vadd.xlane.f32.xlu0 %v3780
        %v3812 = vpop.xlane.xlu0 %3811
        %3813 = vadd.xlane.f32.xlu0 %v3782
        %v3814 = vpop.xlane.xlu0 %3813
        %3815 = vadd.xlane.f32.xlu0 %v3784
        %v3816 = vpop.xlane.xlu0 %3815
        %v3817 = vrcp.pop %v3786
        %v3818 = vmul.f32 %v3754, %v3817
        %v3819 = vrcp.pop %v3788
        %v3820 = vmul.f32 %v3756, %v3819
        %v3821 = vrcp.pop %v3790
        %v3822 = vmul.f32 %v3758, %v3821
        %v3823 = vrcp.pop %v3792
        %v3824 = vmul.f32 %v3760, %v3823
        %v3825 = vrcp.pop %v3794
        %v3826 = vmul.f32 %v3762, %v3825
        %v3827 = vrcp.pop %v3796
        %v3828 = vmul.f32 %v3764, %v3827
        %v3829 = vrcp.pop %v3798
        %v3830 = vmul.f32 %v3766, %v3829
        %v3831 = vrcp.pop %v3800
        %v3832 = vmul.f32 %v3768, %v3831
        %v3833 = vrcp.pop %v3802
        %v3834 = vmul.f32 %v3770, %v3833
        %v3835 = vrcp.pop %v3804
        %v3836 = vmul.f32 %v3772, %v3835
        %v3837 = vrcp.pop %v3806
        %v3838 = vmul.f32 %v3774, %v3837
        %v3839 = vrcp.pop %v3808
        %v3840 = vmul.f32 %v3776, %v3839
        %v3841 = vrcp.pop %v3810
        %v3842 = vmul.f32 %v3778, %v3841
        %v3843 = vrcp.pop %v3812
        %v3844 = vmul.f32 %v3780, %v3843
        %v3845 = vrcp.pop %v3814
        %v3846 = vmul.f32 %v3782, %v3845
        %v3847 = vrcp.pop %v3816
        %v3848 = vmul.f32 %v3784, %v3847
        %v3849 = vpack.c.bf16 %v3820, %v3818
        %v3850 = vpack.c.bf16 %v3824, %v3822
        %v3851 = vpack.c.bf16 %v3828, %v3826
        %v3852 = vpack.c.bf16 %v3832, %v3830
        %v3853 = vpack.c.bf16 %v3836, %v3834
        %v3854 = vpack.c.bf16 %v3840, %v3838
        %v3855 = vpack.c.bf16 %v3844, %v3842
        %v3856 = vpack.c.bf16 %v3848, %v3846
        %3857 = vrot.lane.b32.xlu0 %v1064, 48
        %v3858 = vpop.permute.xlu0 %3857
        %3859 = vrot.lane.b32.xlu0 %v1065, 48
        %v3860 = vpop.permute.xlu0 %3859
        %3861 = vrot.lane.b32.xlu0 %v1066, 48
        %v3862 = vpop.permute.xlu0 %3861
        %3863 = vrot.lane.b32.xlu0 %v1067, 48
        %v3864 = vpop.permute.xlu0 %3863
        %3865 = vrot.lane.b32.xlu0 %v1068, 48
        %v3866 = vpop.permute.xlu0 %3865
        %3867 = vrot.lane.b32.xlu0 %v1069, 48
        %v3868 = vpop.permute.xlu0 %3867
        %3869 = vrot.lane.b32.xlu0 %v1070, 48
        %v3870 = vpop.permute.xlu0 %3869
        %3871 = vrot.lane.b32.xlu0 %v1071, 48
        %v3872 = vpop.permute.xlu0 %3871
        %3881 = vmatprep.subr.bf16.mxu0 0
        %3882 = vmatpush1.bf16.msra.mxu0 %v3858
        %3883 = vmatprep.subr.bf16.mxu0 0
        %3884 = vmatpush1.bf16.msra.mxu0 %v3860
        %3885 = vmatprep.subr.bf16.mxu0 0
        %3886 = vmatpush1.bf16.msra.mxu0 %v3862
        %3887 = vmatprep.subr.bf16.mxu0 0
        %3888 = vmatpush1.bf16.msra.mxu0 %v3864
        %3889 = vmatprep.subr.bf16.mxu0 0
        %3890 = vmatpush1.bf16.msra.mxu0 %v3866
        %3891 = vmatprep.subr.bf16.mxu0 0
        %3892 = vmatpush1.bf16.msra.mxu0 %v3868
        %3893 = vmatprep.subr.bf16.mxu0 0
        %3894 = vmatpush1.bf16.msra.mxu0 %v3870
        %3895 = vmatprep.subr.bf16.mxu0 0
        %3896 = vmatpush1.bf16.msra.mxu0 %v3872
        %3897 = vmatprep.subr.bf16.mxu0 0
        %3898 = vmatpush1.bf16.msra.mxu0 0
        %3899 = vmatprep.subr.bf16.mxu0 0
        %3900 = vmatpush1.bf16.msra.mxu0 0
        %3901 = vmatprep.subr.bf16.mxu0 0
        %3902 = vmatpush1.bf16.msra.mxu0 0
        %3903 = vmatprep.subr.bf16.mxu0 0
        %3904 = vmatpush1.bf16.msra.mxu0 0
        %3905 = vmatprep.subr.bf16.mxu0 0
        %3906 = vmatpush1.bf16.msra.mxu0 0
        %3907 = vmatprep.subr.bf16.mxu0 0
        %3908 = vmatpush1.bf16.msra.mxu0 0
        %3909 = vmatprep.subr.bf16.mxu0 0
        %3910 = vmatpush1.bf16.msra.mxu0 0
        %3911 = vmatprep.subr.bf16.mxu0 0
        %3912 = vmatpush1.bf16.msra.mxu0 0
        %3913 = vmatprep.mubr.bf16.mxu0 0
        %3914 = vmatmul.mubr.bf16.gmra.mrb[0].mxu0 %v3849
        %v3915 = vpop.f32.mrb[0].mxu0
        %v3916 = vadd.f32 0.0, %v3915
        %v3917 = vpop.f32.mrb[0].mxu0
        %v3918 = vpop.f32.mrb[0].mxu0
        %v3919 = vadd.f32 0.0, %v3918
        %v3920 = vpop.f32.mrb[0].mxu0
        %3921 = vmatprep.mubr.bf16.mxu0 0
        %3922 = vmatmul.mubr.bf16.gmra.mrb[0].mxu0 %v3850
        %v3923 = vpop.f32.mrb[0].mxu0
        %v3924 = vadd.f32 0.0, %v3923
        %v3925 = vpop.f32.mrb[0].mxu0
        %v3926 = vpop.f32.mrb[0].mxu0
        %v3927 = vadd.f32 0.0, %v3926
        %v3928 = vpop.f32.mrb[0].mxu0
        %3929 = vmatprep.mubr.bf16.mxu0 0
        %3930 = vmatmul.mubr.bf16.gmra.mrb[0].mxu0 %v3851
        %v3931 = vpop.f32.mrb[0].mxu0
        %v3932 = vadd.f32 0.0, %v3931
        %v3933 = vpop.f32.mrb[0].mxu0
        %v3934 = vpop.f32.mrb[0].mxu0
        %v3935 = vadd.f32 0.0, %v3934
        %v3936 = vpop.f32.mrb[0].mxu0
        %3937 = vmatprep.mubr.bf16.mxu0 0
        %3938 = vmatmul.mubr.bf16.gmra.mrb[0].mxu0 %v3852
        %v3939 = vpop.f32.mrb[0].mxu0
        %v3940 = vadd.f32 0.0, %v3939
        %v3941 = vpop.f32.mrb[0].mxu0
        %v3942 = vpop.f32.mrb[0].mxu0
        %v3943 = vadd.f32 0.0, %v3942
        %v3944 = vpop.f32.mrb[0].mxu0
        %3945 = vmatprep.mubr.bf16.mxu0 0
        %3946 = vmatmul.mubr.bf16.gmra.mrb[0].mxu0 %v3853
        %v3947 = vpop.f32.mrb[0].mxu0
        %v3948 = vadd.f32 0.0, %v3947
        %v3949 = vpop.f32.mrb[0].mxu0
        %v3950 = vpop.f32.mrb[0].mxu0
        %v3951 = vadd.f32 0.0, %v3950
        %v3952 = vpop.f32.mrb[0].mxu0
        %3953 = vmatprep.mubr.bf16.mxu0 0
        %3954 = vmatmul.mubr.bf16.gmra.mrb[0].mxu0 %v3854
        %v3955 = vpop.f32.mrb[0].mxu0
        %v3956 = vadd.f32 0.0, %v3955
        %v3957 = vpop.f32.mrb[0].mxu0
        %v3958 = vpop.f32.mrb[0].mxu0
        %v3959 = vadd.f32 0.0, %v3958
        %v3960 = vpop.f32.mrb[0].mxu0
        %3961 = vmatprep.mubr.bf16.mxu0 0
        %3962 = vmatmul.mubr.bf16.gmra.mrb[0].mxu0 %v3855
        %v3963 = vpop.f32.mrb[0].mxu0
        %v3964 = vadd.f32 0.0, %v3963
        %v3965 = vpop.f32.mrb[0].mxu0
        %v3966 = vpop.f32.mrb[0].mxu0
        %v3967 = vadd.f32 0.0, %v3966
        %v3968 = vpop.f32.mrb[0].mxu0
        %3969 = vmatprep.mubr.bf16.mxu0 0
        %3970 = vmatmul.mubr.bf16.gmra.mrb[0].mxu0 %v3856
        %v3971 = vpop.f32.mrb[0].mxu0
        %v3972 = vadd.f32 0.0, %v3971
        %v3973 = vpop.f32.mrb[0].mxu0
        %v3974 = vpop.f32.mrb[0].mxu0
        %v3975 = vadd.f32 0.0, %v3974
        %v3976 = vpop.f32.mrb[0].mxu0
        %3977 = vdwg.mxu0
        %v3978 = vpack.c.bf16 %v3919, %v3916
        %v3979 = vpack.c.bf16 %v3927, %v3924
        %v3980 = vpack.c.bf16 %v3935, %v3932
        %v3981 = vpack.c.bf16 %v3943, %v3940
        %v3982 = vpack.c.bf16 %v3951, %v3948
        %v3983 = vpack.c.bf16 %v3959, %v3956
        %v3984 = vpack.c.bf16 %v3967, %v3964
        %v3985 = vpack.c.bf16 %v3975, %v3972
        %s3986 = scalar_lea.vmem %s419, 384 [#allocation6]
        %v3987 = vld [vmem:[%s3986] sm:$0xf]
        %v3988 = vld [vmem:[%s3986 + $0x4] sm:$0xf]
        %v3989 = vld [vmem:[%s3986 + $0x8] sm:$0xf]
        %v3990 = vld [vmem:[%s3986 + $0xc] sm:$0xf]
        %v3991 = vld [vmem:[%s3986 + $0x10] sm:$0xf]
        %v3992 = vld [vmem:[%s3986 + $0x14] sm:$0xf]
        %v3993 = vld [vmem:[%s3986 + $0x18] sm:$0xf]
        %v3994 = vld [vmem:[%s3986 + $0x1c] sm:$0xf]
        %v3995 = vld [vmem:[%s3986 + $0x20] sm:$0xf]
        %v3996 = vld [vmem:[%s3986 + $0x24] sm:$0xf]
        %v3997 = vld [vmem:[%s3986 + $0x28] sm:$0xf]
        %v3998 = vld [vmem:[%s3986 + $0x2c] sm:$0xf]
        %v3999 = vld [vmem:[%s3986 + $0x30] sm:$0xf]
        %v4000 = vld [vmem:[%s3986 + $0x34] sm:$0xf]
        %v4001 = vld [vmem:[%s3986 + $0x38] sm:$0xf]
        %v4002 = vld [vmem:[%s3986 + $0x3c] sm:$0xf]
        %v4003 = vunpack.c.l.bf16 %v3987
        %v4004 = vunpack.c.l.bf16 %v3988
        %v4005 = vunpack.c.l.bf16 %v3989
        %v4006 = vunpack.c.l.bf16 %v3990
        %v4007 = vunpack.c.l.bf16 %v3991
        %v4008 = vunpack.c.l.bf16 %v3992
        %v4009 = vunpack.c.l.bf16 %v3993
        %v4010 = vunpack.c.l.bf16 %v3994
        %v4011 = vunpack.c.l.bf16 %v3995
        %v4012 = vunpack.c.l.bf16 %v3996
        %v4013 = vunpack.c.l.bf16 %v3997
        %v4014 = vunpack.c.l.bf16 %v3998
        %v4015 = vunpack.c.l.bf16 %v3999
        %v4016 = vunpack.c.l.bf16 %v4000
        %v4017 = vunpack.c.l.bf16 %v4001
        %v4018 = vunpack.c.l.bf16 %v4002
        %4019 = vrot.lane.b32.xlu0 %v712, 32
        %v4020 = vpop.permute.xlu0 %4019
        %4021 = vrot.lane.b32.xlu0 %v713, 32
        %v4022 = vpop.permute.xlu0 %4021
        %4023 = vrot.lane.b32.xlu0 %v714, 32
        %v4024 = vpop.permute.xlu0 %4023
        %4025 = vrot.lane.b32.xlu0 %v715, 32
        %v4026 = vpop.permute.xlu0 %4025
        %4027 = vrot.lane.b32.xlu0 %v716, 32
        %v4028 = vpop.permute.xlu0 %4027
        %4029 = vrot.lane.b32.xlu0 %v717, 32
        %v4030 = vpop.permute.xlu0 %4029
        %4031 = vrot.lane.b32.xlu0 %v718, 32
        %v4032 = vpop.permute.xlu0 %4031
        %4033 = vrot.lane.b32.xlu0 %v719, 32
        %v4034 = vpop.permute.xlu0 %4033
        %4035 = vrot.lane.b32.xlu0 %v888, 32
        %v4036 = vpop.permute.xlu0 %4035
        %4037 = vrot.lane.b32.xlu0 %v889, 32
        %v4038 = vpop.permute.xlu0 %4037
        %4039 = vrot.lane.b32.xlu0 %v890, 32
        %v4040 = vpop.permute.xlu0 %4039
        %4041 = vrot.lane.b32.xlu0 %v891, 32
        %v4042 = vpop.permute.xlu0 %4041
        %4043 = vrot.lane.b32.xlu0 %v892, 32
        %v4044 = vpop.permute.xlu0 %4043
        %4045 = vrot.lane.b32.xlu0 %v893, 32
        %v4046 = vpop.permute.xlu0 %4045
        %4047 = vrot.lane.b32.xlu0 %v894, 32
        %v4048 = vpop.permute.xlu0 %4047
        %4049 = vrot.lane.b32.xlu0 %v895, 32
        %v4050 = vpop.permute.xlu0 %4049
        %v4052 = vsel %vm1104, %v4020, 0
        %v4055 = vsel %vm1104, %v4022, 0
        %v4058 = vsel %vm1104, %v4024, 0
        %v4061 = vsel %vm1104, %v4026, 0
        %v4064 = vsel %vm1104, %v4028, 0
        %v4067 = vsel %vm1104, %v4030, 0
        %v4070 = vsel %vm1104, %v4032, 0
        %v4073 = vsel %vm1104, %v4034, 0
        %v4076 = vsel %vm1104, %v4036, 0
        %v4079 = vsel %vm1104, %v4038, 0
        %v4082 = vsel %vm1104, %v4040, 0
        %v4085 = vsel %vm1104, %v4042, 0
        %v4088 = vsel %vm1104, %v4044, 0
        %v4091 = vsel %vm1104, %v4046, 0
        %v4094 = vsel %vm1104, %v4048, 0
        %v4097 = vsel %vm1104, %v4050, 0
        %4099 = vmatprep.subr.bf16.mxu0 0
        %4100 = vmatpush1.bf16.xpose.msra.mxu0 %v4076
        %4101 = vmatprep.subr.bf16.mxu0 0
        %4102 = vmatpush1.bf16.xpose.msra.mxu0 %v4079
        %4103 = vmatprep.subr.bf16.mxu0 0
        %4104 = vmatpush1.bf16.xpose.msra.mxu0 %v4082
        %4105 = vmatprep.subr.bf16.mxu0 0
        %4106 = vmatpush1.bf16.xpose.msra.mxu0 %v4085
        %4107 = vmatprep.subr.bf16.mxu0 0
        %4108 = vmatpush1.bf16.xpose.msra.mxu0 %v4088
        %4109 = vmatprep.subr.bf16.mxu0 0
        %4110 = vmatpush1.bf16.xpose.msra.mxu0 %v4091
        %4111 = vmatprep.subr.bf16.mxu0 0
        %4112 = vmatpush1.bf16.xpose.msra.mxu0 %v4094
        %4113 = vmatprep.subr.bf16.mxu0 0
        %4114 = vmatpush1.bf16.xpose.msra.mxu0 %v4097
        %4115 = vmatprep.subr.bf16.mxu0 0
        %4116 = vmatpush1.bf16.xpose.msra.mxu0 0
        %4117 = vmatprep.subr.bf16.mxu0 0
        %4118 = vmatpush1.bf16.xpose.msra.mxu0 0
        %4119 = vmatprep.subr.bf16.mxu0 0
        %4120 = vmatpush1.bf16.xpose.msra.mxu0 0
        %4121 = vmatprep.subr.bf16.mxu0 0
        %4122 = vmatpush1.bf16.xpose.msra.mxu0 0
        %4123 = vmatprep.subr.bf16.mxu0 0
        %4124 = vmatpush1.bf16.xpose.msra.mxu0 0
        %4125 = vmatprep.subr.bf16.mxu0 0
        %4126 = vmatpush1.bf16.xpose.msra.mxu0 0
        %4127 = vmatprep.subr.bf16.mxu0 0
        %4128 = vmatpush1.bf16.xpose.msra.mxu0 0
        %4129 = vmatprep.subr.bf16.mxu0 0
        %4130 = vmatpush1.bf16.xpose.msra.mxu0 0
        %4131 = vmatprep.mubr.bf16.mxu0 0
        %4132 = vmatmul.mubr.bf16.gmra.mrb[0].mxu0 %v4052
        %v4133 = vpop.f32.mrb[0].mxu0
        %v4134 = vadd.f32 %v4003, %v4133
        %v4135 = vpop.f32.mrb[0].mxu0
        %v4136 = vpop.f32.mrb[0].mxu0
        %v4137 = vadd.f32 %v4004, %v4136
        %v4138 = vpop.f32.mrb[0].mxu0
        %4139 = vmatprep.mubr.bf16.mxu0 0
        %4140 = vmatmul.mubr.bf16.gmra.mrb[0].mxu0 %v4055
        %v4141 = vpop.f32.mrb[0].mxu0
        %v4142 = vadd.f32 %v4005, %v4141
        %v4143 = vpop.f32.mrb[0].mxu0
        %v4144 = vpop.f32.mrb[0].mxu0
        %v4145 = vadd.f32 %v4006, %v4144
        %v4146 = vpop.f32.mrb[0].mxu0
        %4147 = vmatprep.mubr.bf16.mxu0 0
        %4148 = vmatmul.mubr.bf16.gmra.mrb[0].mxu0 %v4058
        %v4149 = vpop.f32.mrb[0].mxu0
        %v4150 = vadd.f32 %v4007, %v4149
        %v4151 = vpop.f32.mrb[0].mxu0
        %v4152 = vpop.f32.mrb[0].mxu0
        %v4153 = vadd.f32 %v4008, %v4152
        %v4154 = vpop.f32.mrb[0].mxu0
        %4155 = vmatprep.mubr.bf16.mxu0 0
        %4156 = vmatmul.mubr.bf16.gmra.mrb[0].mxu0 %v4061
        %v4157 = vpop.f32.mrb[0].mxu0
        %v4158 = vadd.f32 %v4009, %v4157
        %v4159 = vpop.f32.mrb[0].mxu0
        %v4160 = vpop.f32.mrb[0].mxu0
        %v4161 = vadd.f32 %v4010, %v4160
        %v4162 = vpop.f32.mrb[0].mxu0
        %4163 = vmatprep.mubr.bf16.mxu0 0
        %4164 = vmatmul.mubr.bf16.gmra.mrb[0].mxu0 %v4064
        %v4165 = vpop.f32.mrb[0].mxu0
        %v4166 = vadd.f32 %v4011, %v4165
        %v4167 = vpop.f32.mrb[0].mxu0
        %v4168 = vpop.f32.mrb[0].mxu0
        %v4169 = vadd.f32 %v4012, %v4168
        %v4170 = vpop.f32.mrb[0].mxu0
        %4171 = vmatprep.mubr.bf16.mxu0 0
        %4172 = vmatmul.mubr.bf16.gmra.mrb[0].mxu0 %v4067
        %v4173 = vpop.f32.mrb[0].mxu0
        %v4174 = vadd.f32 %v4013, %v4173
        %v4175 = vpop.f32.mrb[0].mxu0
        %v4176 = vpop.f32.mrb[0].mxu0
        %v4177 = vadd.f32 %v4014, %v4176
        %v4178 = vpop.f32.mrb[0].mxu0
        %4179 = vmatprep.mubr.bf16.mxu0 0
        %4180 = vmatmul.mubr.bf16.gmra.mrb[0].mxu0 %v4070
        %v4181 = vpop.f32.mrb[0].mxu0
        %v4182 = vadd.f32 %v4015, %v4181
        %v4183 = vpop.f32.mrb[0].mxu0
        %v4184 = vpop.f32.mrb[0].mxu0
        %v4185 = vadd.f32 %v4016, %v4184
        %v4186 = vpop.f32.mrb[0].mxu0
        %4187 = vmatprep.mubr.bf16.mxu0 0
        %4188 = vmatmul.mubr.bf16.gmra.mrb[0].mxu0 %v4073
        %v4189 = vpop.f32.mrb[0].mxu0
        %v4190 = vadd.f32 %v4017, %v4189
        %v4191 = vpop.f32.mrb[0].mxu0
        %v4192 = vpop.f32.mrb[0].mxu0
        %v4193 = vadd.f32 %v4018, %v4192
        %v4194 = vpop.f32.mrb[0].mxu0
        %4195 = vdwg.mxu0
        %4196 = vmax.xlane.f32.xlu0 %v4134
        %v4197 = vpop.xlane.xlu0 %4196
        %4198 = vmax.xlane.f32.xlu0 %v4137
        %v4199 = vpop.xlane.xlu0 %4198
        %4200 = vmax.xlane.f32.xlu0 %v4142
        %v4201 = vpop.xlane.xlu0 %4200
        %4202 = vmax.xlane.f32.xlu0 %v4145
        %v4203 = vpop.xlane.xlu0 %4202
        %4204 = vmax.xlane.f32.xlu0 %v4150
        %v4205 = vpop.xlane.xlu0 %4204
        %4206 = vmax.xlane.f32.xlu0 %v4153
        %v4207 = vpop.xlane.xlu0 %4206
        %4208 = vmax.xlane.f32.xlu0 %v4158
        %v4209 = vpop.xlane.xlu0 %4208
        %4210 = vmax.xlane.f32.xlu0 %v4161
        %v4211 = vpop.xlane.xlu0 %4210
        %4212 = vmax.xlane.f32.xlu0 %v4166
        %v4213 = vpop.xlane.xlu0 %4212
        %4214 = vmax.xlane.f32.xlu0 %v4169
        %v4215 = vpop.xlane.xlu0 %4214
        %4216 = vmax.xlane.f32.xlu0 %v4174
        %v4217 = vpop.xlane.xlu0 %4216
        %4218 = vmax.xlane.f32.xlu0 %v4177
        %v4219 = vpop.xlane.xlu0 %4218
        %4220 = vmax.xlane.f32.xlu0 %v4182
        %v4221 = vpop.xlane.xlu0 %4220
        %4222 = vmax.xlane.f32.xlu0 %v4185
        %v4223 = vpop.xlane.xlu0 %4222
        %4224 = vmax.xlane.f32.xlu0 %v4190
        %v4225 = vpop.xlane.xlu0 %4224
        %4226 = vmax.xlane.f32.xlu0 %v4193
        %v4227 = vpop.xlane.xlu0 %4226
        %v4228 = vsub.f32 %v4134, %v4197
        %v4229 = vsub.f32 %v4137, %v4199
        %v4230 = vsub.f32 %v4142, %v4201
        %v4231 = vsub.f32 %v4145, %v4203
        %v4232 = vsub.f32 %v4150, %v4205
        %v4233 = vsub.f32 %v4153, %v4207
        %v4234 = vsub.f32 %v4158, %v4209
        %v4235 = vsub.f32 %v4161, %v4211
        %v4236 = vsub.f32 %v4166, %v4213
        %v4237 = vsub.f32 %v4169, %v4215
        %v4238 = vsub.f32 %v4174, %v4217
        %v4239 = vsub.f32 %v4177, %v4219
        %v4240 = vsub.f32 %v4182, %v4221
        %v4241 = vsub.f32 %v4185, %v4223
        %v4242 = vsub.f32 %v4190, %v4225
        %v4243 = vsub.f32 %v4193, %v4227
        %v4244 = vmul.f32 %v4228, 1.442695
        %v4245 = vpow.pop %v4244
        %v4246 = vmul.f32 %v4229, 1.442695
        %v4247 = vpow.pop %v4246
        %v4248 = vmul.f32 %v4230, 1.442695
        %v4249 = vpow.pop %v4248
        %v4250 = vmul.f32 %v4231, 1.442695
        %v4251 = vpow.pop %v4250
        %v4252 = vmul.f32 %v4232, 1.442695
        %v4253 = vpow.pop %v4252
        %v4254 = vmul.f32 %v4233, 1.442695
        %v4255 = vpow.pop %v4254
        %v4256 = vmul.f32 %v4234, 1.442695
        %v4257 = vpow.pop %v4256
        %v4258 = vmul.f32 %v4235, 1.442695
        %v4259 = vpow.pop %v4258
        %v4260 = vmul.f32 %v4236, 1.442695
        %v4261 = vpow.pop %v4260
        %v4262 = vmul.f32 %v4237, 1.442695
        %v4263 = vpow.pop %v4262
        %v4264 = vmul.f32 %v4238, 1.442695
        %v4265 = vpow.pop %v4264
        %v4266 = vmul.f32 %v4239, 1.442695
        %v4267 = vpow.pop %v4266
        %v4268 = vmul.f32 %v4240, 1.442695
        %v4269 = vpow.pop %v4268
        %v4270 = vmul.f32 %v4241, 1.442695
        %v4271 = vpow.pop %v4270
        %v4272 = vmul.f32 %v4242, 1.442695
        %v4273 = vpow.pop %v4272
        %v4274 = vmul.f32 %v4243, 1.442695
        %v4275 = vpow.pop %v4274
        %4276 = vadd.xlane.f32.xlu0 %v4245
        %v4277 = vpop.xlane.xlu0 %4276
        %4278 = vadd.xlane.f32.xlu0 %v4247
        %v4279 = vpop.xlane.xlu0 %4278
        %4280 = vadd.xlane.f32.xlu0 %v4249
        %v4281 = vpop.xlane.xlu0 %4280
        %4282 = vadd.xlane.f32.xlu0 %v4251
        %v4283 = vpop.xlane.xlu0 %4282
        %4284 = vadd.xlane.f32.xlu0 %v4253
        %v4285 = vpop.xlane.xlu0 %4284
        %4286 = vadd.xlane.f32.xlu0 %v4255
        %v4287 = vpop.xlane.xlu0 %4286
        %4288 = vadd.xlane.f32.xlu0 %v4257
        %v4289 = vpop.xlane.xlu0 %4288
        %4290 = vadd.xlane.f32.xlu0 %v4259
        %v4291 = vpop.xlane.xlu0 %4290
        %4292 = vadd.xlane.f32.xlu0 %v4261
        %v4293 = vpop.xlane.xlu0 %4292
        %4294 = vadd.xlane.f32.xlu0 %v4263
        %v4295 = vpop.xlane.xlu0 %4294
        %4296 = vadd.xlane.f32.xlu0 %v4265
        %v4297 = vpop.xlane.xlu0 %4296
        %4298 = vadd.xlane.f32.xlu0 %v4267
        %v4299 = vpop.xlane.xlu0 %4298
        %4300 = vadd.xlane.f32.xlu0 %v4269
        %v4301 = vpop.xlane.xlu0 %4300
        %4302 = vadd.xlane.f32.xlu0 %v4271
        %v4303 = vpop.xlane.xlu0 %4302
        %4304 = vadd.xlane.f32.xlu0 %v4273
        %v4305 = vpop.xlane.xlu0 %4304
        %4306 = vadd.xlane.f32.xlu0 %v4275
        %v4307 = vpop.xlane.xlu0 %4306
        %v4308 = vrcp.pop %v4277
        %v4309 = vmul.f32 %v4245, %v4308
        %v4310 = vrcp.pop %v4279
        %v4311 = vmul.f32 %v4247, %v4310
        %v4312 = vrcp.pop %v4281
        %v4313 = vmul.f32 %v4249, %v4312
        %v4314 = vrcp.pop %v4283
        %v4315 = vmul.f32 %v4251, %v4314
        %v4316 = vrcp.pop %v4285
        %v4317 = vmul.f32 %v4253, %v4316
        %v4318 = vrcp.pop %v4287
        %v4319 = vmul.f32 %v4255, %v4318
        %v4320 = vrcp.pop %v4289
        %v4321 = vmul.f32 %v4257, %v4320
        %v4322 = vrcp.pop %v4291
        %v4323 = vmul.f32 %v4259, %v4322
        %v4324 = vrcp.pop %v4293
        %v4325 = vmul.f32 %v4261, %v4324
        %v4326 = vrcp.pop %v4295
        %v4327 = vmul.f32 %v4263, %v4326
        %v4328 = vrcp.pop %v4297
        %v4329 = vmul.f32 %v4265, %v4328
        %v4330 = vrcp.pop %v4299
        %v4331 = vmul.f32 %v4267, %v4330
        %v4332 = vrcp.pop %v4301
        %v4333 = vmul.f32 %v4269, %v4332
        %v4334 = vrcp.pop %v4303
        %v4335 = vmul.f32 %v4271, %v4334
        %v4336 = vrcp.pop %v4305
        %v4337 = vmul.f32 %v4273, %v4336
        %v4338 = vrcp.pop %v4307
        %v4339 = vmul.f32 %v4275, %v4338
        %v4340 = vpack.c.bf16 %v4311, %v4309
        %v4341 = vpack.c.bf16 %v4315, %v4313
        %v4342 = vpack.c.bf16 %v4319, %v4317
        %v4343 = vpack.c.bf16 %v4323, %v4321
        %v4344 = vpack.c.bf16 %v4327, %v4325
        %v4345 = vpack.c.bf16 %v4331, %v4329
        %v4346 = vpack.c.bf16 %v4335, %v4333
        %v4347 = vpack.c.bf16 %v4339, %v4337
        %4348 = vrot.lane.b32.xlu0 %v1064, 32
        %v4349 = vpop.permute.xlu0 %4348
        %4350 = vrot.lane.b32.xlu0 %v1065, 32
        %v4351 = vpop.permute.xlu0 %4350
        %4352 = vrot.lane.b32.xlu0 %v1066, 32
        %v4353 = vpop.permute.xlu0 %4352
        %4354 = vrot.lane.b32.xlu0 %v1067, 32
        %v4355 = vpop.permute.xlu0 %4354
        %4356 = vrot.lane.b32.xlu0 %v1068, 32
        %v4357 = vpop.permute.xlu0 %4356
        %4358 = vrot.lane.b32.xlu0 %v1069, 32
        %v4359 = vpop.permute.xlu0 %4358
        %4360 = vrot.lane.b32.xlu0 %v1070, 32
        %v4361 = vpop.permute.xlu0 %4360
        %4362 = vrot.lane.b32.xlu0 %v1071, 32
        %v4363 = vpop.permute.xlu0 %4362
        %4372 = vmatprep.subr.bf16.mxu0 0
        %4373 = vmatpush1.bf16.msra.mxu0 %v4349
        %4374 = vmatprep.subr.bf16.mxu0 0
        %4375 = vmatpush1.bf16.msra.mxu0 %v4351
        %4376 = vmatprep.subr.bf16.mxu0 0
        %4377 = vmatpush1.bf16.msra.mxu0 %v4353
        %4378 = vmatprep.subr.bf16.mxu0 0
        %4379 = vmatpush1.bf16.msra.mxu0 %v4355
        %4380 = vmatprep.subr.bf16.mxu0 0
        %4381 = vmatpush1.bf16.msra.mxu0 %v4357
        %4382 = vmatprep.subr.bf16.mxu0 0
        %4383 = vmatpush1.bf16.msra.mxu0 %v4359
        %4384 = vmatprep.subr.bf16.mxu0 0
        %4385 = vmatpush1.bf16.msra.mxu0 %v4361
        %4386 = vmatprep.subr.bf16.mxu0 0
        %4387 = vmatpush1.bf16.msra.mxu0 %v4363
        %4388 = vmatprep.subr.bf16.mxu0 0
        %4389 = vmatpush1.bf16.msra.mxu0 0
        %4390 = vmatprep.subr.bf16.mxu0 0
        %4391 = vmatpush1.bf16.msra.mxu0 0
        %4392 = vmatprep.subr.bf16.mxu0 0
        %4393 = vmatpush1.bf16.msra.mxu0 0
        %4394 = vmatprep.subr.bf16.mxu0 0
        %4395 = vmatpush1.bf16.msra.mxu0 0
        %4396 = vmatprep.subr.bf16.mxu0 0
        %4397 = vmatpush1.bf16.msra.mxu0 0
        %4398 = vmatprep.subr.bf16.mxu0 0
        %4399 = vmatpush1.bf16.msra.mxu0 0
        %4400 = vmatprep.subr.bf16.mxu0 0
        %4401 = vmatpush1.bf16.msra.mxu0 0
        %4402 = vmatprep.subr.bf16.mxu0 0
        %4403 = vmatpush1.bf16.msra.mxu0 0
        %4404 = vmatprep.mubr.bf16.mxu0 0
        %4405 = vmatmul.mubr.bf16.gmra.mrb[0].mxu0 %v4340
        %v4406 = vpop.f32.mrb[0].mxu0
        %v4407 = vadd.f32 0.0, %v4406
        %v4408 = vpop.f32.mrb[0].mxu0
        %v4409 = vpop.f32.mrb[0].mxu0
        %v4410 = vadd.f32 0.0, %v4409
        %v4411 = vpop.f32.mrb[0].mxu0
        %4412 = vmatprep.mubr.bf16.mxu0 0
        %4413 = vmatmul.mubr.bf16.gmra.mrb[0].mxu0 %v4341
        %v4414 = vpop.f32.mrb[0].mxu0
        %v4415 = vadd.f32 0.0, %v4414
        %v4416 = vpop.f32.mrb[0].mxu0
        %v4417 = vpop.f32.mrb[0].mxu0
        %v4418 = vadd.f32 0.0, %v4417
        %v4419 = vpop.f32.mrb[0].mxu0
        %4420 = vmatprep.mubr.bf16.mxu0 0
        %4421 = vmatmul.mubr.bf16.gmra.mrb[0].mxu0 %v4342
        %v4422 = vpop.f32.mrb[0].mxu0
        %v4423 = vadd.f32 0.0, %v4422
        %v4424 = vpop.f32.mrb[0].mxu0
        %v4425 = vpop.f32.mrb[0].mxu0
        %v4426 = vadd.f32 0.0, %v4425
        %v4427 = vpop.f32.mrb[0].mxu0
        %4428 = vmatprep.mubr.bf16.mxu0 0
        %4429 = vmatmul.mubr.bf16.gmra.mrb[0].mxu0 %v4343
        %v4430 = vpop.f32.mrb[0].mxu0
        %v4431 = vadd.f32 0.0, %v4430
        %v4432 = vpop.f32.mrb[0].mxu0
        %v4433 = vpop.f32.mrb[0].mxu0
        %v4434 = vadd.f32 0.0, %v4433
        %v4435 = vpop.f32.mrb[0].mxu0
        %4436 = vmatprep.mubr.bf16.mxu0 0
        %4437 = vmatmul.mubr.bf16.gmra.mrb[0].mxu0 %v4344
        %v4438 = vpop.f32.mrb[0].mxu0
        %v4439 = vadd.f32 0.0, %v4438
        %v4440 = vpop.f32.mrb[0].mxu0
        %v4441 = vpop.f32.mrb[0].mxu0
        %v4442 = vadd.f32 0.0, %v4441
        %v4443 = vpop.f32.mrb[0].mxu0
        %4444 = vmatprep.mubr.bf16.mxu0 0
        %4445 = vmatmul.mubr.bf16.gmra.mrb[0].mxu0 %v4345
        %v4446 = vpop.f32.mrb[0].mxu0
        %v4447 = vadd.f32 0.0, %v4446
        %v4448 = vpop.f32.mrb[0].mxu0
        %v4449 = vpop.f32.mrb[0].mxu0
        %v4450 = vadd.f32 0.0, %v4449
        %v4451 = vpop.f32.mrb[0].mxu0
        %4452 = vmatprep.mubr.bf16.mxu0 0
        %4453 = vmatmul.mubr.bf16.gmra.mrb[0].mxu0 %v4346
        %v4454 = vpop.f32.mrb[0].mxu0
        %v4455 = vadd.f32 0.0, %v4454
        %v4456 = vpop.f32.mrb[0].mxu0
        %v4457 = vpop.f32.mrb[0].mxu0
        %v4458 = vadd.f32 0.0, %v4457
        %v4459 = vpop.f32.mrb[0].mxu0
        %4460 = vmatprep.mubr.bf16.mxu0 0
        %4461 = vmatmul.mubr.bf16.gmra.mrb[0].mxu0 %v4347
        %v4462 = vpop.f32.mrb[0].mxu0
        %v4463 = vadd.f32 0.0, %v4462
        %v4464 = vpop.f32.mrb[0].mxu0
        %v4465 = vpop.f32.mrb[0].mxu0
        %v4466 = vadd.f32 0.0, %v4465
        %v4467 = vpop.f32.mrb[0].mxu0
        %4468 = vdwg.mxu0
        %v4469 = vpack.c.bf16 %v4410, %v4407
        %v4470 = vpack.c.bf16 %v4418, %v4415
        %v4471 = vpack.c.bf16 %v4426, %v4423
        %v4472 = vpack.c.bf16 %v4434, %v4431
        %v4473 = vpack.c.bf16 %v4442, %v4439
        %v4474 = vpack.c.bf16 %v4450, %v4447
        %v4475 = vpack.c.bf16 %v4458, %v4455
        %v4476 = vpack.c.bf16 %v4466, %v4463
        %s4477 = scalar_lea.vmem %s419, 448 [#allocation6]
        %v4478 = vld [vmem:[%s4477] sm:$0xf]
        %v4479 = vld [vmem:[%s4477 + $0x4] sm:$0xf]
        %v4480 = vld [vmem:[%s4477 + $0x8] sm:$0xf]
        %v4481 = vld [vmem:[%s4477 + $0xc] sm:$0xf]
        %v4482 = vld [vmem:[%s4477 + $0x10] sm:$0xf]
        %v4483 = vld [vmem:[%s4477 + $0x14] sm:$0xf]
        %v4484 = vld [vmem:[%s4477 + $0x18] sm:$0xf]
        %v4485 = vld [vmem:[%s4477 + $0x1c] sm:$0xf]
        %v4486 = vld [vmem:[%s4477 + $0x20] sm:$0xf]
        %v4487 = vld [vmem:[%s4477 + $0x24] sm:$0xf]
        %v4488 = vld [vmem:[%s4477 + $0x28] sm:$0xf]
        %v4489 = vld [vmem:[%s4477 + $0x2c] sm:$0xf]
        %v4490 = vld [vmem:[%s4477 + $0x30] sm:$0xf]
        %v4491 = vld [vmem:[%s4477 + $0x34] sm:$0xf]
        %v4492 = vld [vmem:[%s4477 + $0x38] sm:$0xf]
        %v4493 = vld [vmem:[%s4477 + $0x3c] sm:$0xf]
        %v4494 = vunpack.c.l.bf16 %v4478
        %v4495 = vunpack.c.l.bf16 %v4479
        %v4496 = vunpack.c.l.bf16 %v4480
        %v4497 = vunpack.c.l.bf16 %v4481
        %v4498 = vunpack.c.l.bf16 %v4482
        %v4499 = vunpack.c.l.bf16 %v4483
        %v4500 = vunpack.c.l.bf16 %v4484
        %v4501 = vunpack.c.l.bf16 %v4485
        %v4502 = vunpack.c.l.bf16 %v4486
        %v4503 = vunpack.c.l.bf16 %v4487
        %v4504 = vunpack.c.l.bf16 %v4488
        %v4505 = vunpack.c.l.bf16 %v4489
        %v4506 = vunpack.c.l.bf16 %v4490
        %v4507 = vunpack.c.l.bf16 %v4491
        %v4508 = vunpack.c.l.bf16 %v4492
        %v4509 = vunpack.c.l.bf16 %v4493
        %4510 = vrot.lane.b32.xlu0 %v712, 16
        %v4511 = vpop.permute.xlu0 %4510
        %4512 = vrot.lane.b32.xlu0 %v713, 16
        %v4513 = vpop.permute.xlu0 %4512
        %4514 = vrot.lane.b32.xlu0 %v714, 16
        %v4515 = vpop.permute.xlu0 %4514
        %4516 = vrot.lane.b32.xlu0 %v715, 16
        %v4517 = vpop.permute.xlu0 %4516
        %4518 = vrot.lane.b32.xlu0 %v716, 16
        %v4519 = vpop.permute.xlu0 %4518
        %4520 = vrot.lane.b32.xlu0 %v717, 16
        %v4521 = vpop.permute.xlu0 %4520
        %4522 = vrot.lane.b32.xlu0 %v718, 16
        %v4523 = vpop.permute.xlu0 %4522
        %4524 = vrot.lane.b32.xlu0 %v719, 16
        %v4525 = vpop.permute.xlu0 %4524
        %4526 = vrot.lane.b32.xlu0 %v888, 16
        %v4527 = vpop.permute.xlu0 %4526
        %4528 = vrot.lane.b32.xlu0 %v889, 16
        %v4529 = vpop.permute.xlu0 %4528
        %4530 = vrot.lane.b32.xlu0 %v890, 16
        %v4531 = vpop.permute.xlu0 %4530
        %4532 = vrot.lane.b32.xlu0 %v891, 16
        %v4533 = vpop.permute.xlu0 %4532
        %4534 = vrot.lane.b32.xlu0 %v892, 16
        %v4535 = vpop.permute.xlu0 %4534
        %4536 = vrot.lane.b32.xlu0 %v893, 16
        %v4537 = vpop.permute.xlu0 %4536
        %4538 = vrot.lane.b32.xlu0 %v894, 16
        %v4539 = vpop.permute.xlu0 %4538
        %4540 = vrot.lane.b32.xlu0 %v895, 16
        %v4541 = vpop.permute.xlu0 %4540
        %v4543 = vsel %vm1104, %v4511, 0
        %v4546 = vsel %vm1104, %v4513, 0
        %v4549 = vsel %vm1104, %v4515, 0
        %v4552 = vsel %vm1104, %v4517, 0
        %v4555 = vsel %vm1104, %v4519, 0
        %v4558 = vsel %vm1104, %v4521, 0
        %v4561 = vsel %vm1104, %v4523, 0
        %v4564 = vsel %vm1104, %v4525, 0
        %v4567 = vsel %vm1104, %v4527, 0
        %v4570 = vsel %vm1104, %v4529, 0
        %v4573 = vsel %vm1104, %v4531, 0
        %v4576 = vsel %vm1104, %v4533, 0
        %v4579 = vsel %vm1104, %v4535, 0
        %v4582 = vsel %vm1104, %v4537, 0
        %v4585 = vsel %vm1104, %v4539, 0
        %v4588 = vsel %vm1104, %v4541, 0
        %4590 = vmatprep.subr.bf16.mxu0 0
        %4591 = vmatpush1.bf16.xpose.msra.mxu0 %v4567
        %4592 = vmatprep.subr.bf16.mxu0 0
        %4593 = vmatpush1.bf16.xpose.msra.mxu0 %v4570
        %4594 = vmatprep.subr.bf16.mxu0 0
        %4595 = vmatpush1.bf16.xpose.msra.mxu0 %v4573
        %4596 = vmatprep.subr.bf16.mxu0 0
        %4597 = vmatpush1.bf16.xpose.msra.mxu0 %v4576
        %4598 = vmatprep.subr.bf16.mxu0 0
        %4599 = vmatpush1.bf16.xpose.msra.mxu0 %v4579
        %4600 = vmatprep.subr.bf16.mxu0 0
        %4601 = vmatpush1.bf16.xpose.msra.mxu0 %v4582
        %4602 = vmatprep.subr.bf16.mxu0 0
        %4603 = vmatpush1.bf16.xpose.msra.mxu0 %v4585
        %4604 = vmatprep.subr.bf16.mxu0 0
        %4605 = vmatpush1.bf16.xpose.msra.mxu0 %v4588
        %4606 = vmatprep.subr.bf16.mxu0 0
        %4607 = vmatpush1.bf16.xpose.msra.mxu0 0
        %4608 = vmatprep.subr.bf16.mxu0 0
        %4609 = vmatpush1.bf16.xpose.msra.mxu0 0
        %4610 = vmatprep.subr.bf16.mxu0 0
        %4611 = vmatpush1.bf16.xpose.msra.mxu0 0
        %4612 = vmatprep.subr.bf16.mxu0 0
        %4613 = vmatpush1.bf16.xpose.msra.mxu0 0
        %4614 = vmatprep.subr.bf16.mxu0 0
        %4615 = vmatpush1.bf16.xpose.msra.mxu0 0
        %4616 = vmatprep.subr.bf16.mxu0 0
        %4617 = vmatpush1.bf16.xpose.msra.mxu0 0
        %4618 = vmatprep.subr.bf16.mxu0 0
        %4619 = vmatpush1.bf16.xpose.msra.mxu0 0
        %4620 = vmatprep.subr.bf16.mxu0 0
        %4621 = vmatpush1.bf16.xpose.msra.mxu0 0
        %4622 = vmatprep.mubr.bf16.mxu0 0
        %4623 = vmatmul.mubr.bf16.gmra.mrb[0].mxu0 %v4543
        %v4624 = vpop.f32.mrb[0].mxu0
        %v4625 = vadd.f32 %v4494, %v4624
        %v4626 = vpop.f32.mrb[0].mxu0
        %v4627 = vpop.f32.mrb[0].mxu0
        %v4628 = vadd.f32 %v4495, %v4627
        %v4629 = vpop.f32.mrb[0].mxu0
        %4630 = vmatprep.mubr.bf16.mxu0 0
        %4631 = vmatmul.mubr.bf16.gmra.mrb[0].mxu0 %v4546
        %v4632 = vpop.f32.mrb[0].mxu0
        %v4633 = vadd.f32 %v4496, %v4632
        %v4634 = vpop.f32.mrb[0].mxu0
        %v4635 = vpop.f32.mrb[0].mxu0
        %v4636 = vadd.f32 %v4497, %v4635
        %v4637 = vpop.f32.mrb[0].mxu0
        %4638 = vmatprep.mubr.bf16.mxu0 0
        %4639 = vmatmul.mubr.bf16.gmra.mrb[0].mxu0 %v4549
        %v4640 = vpop.f32.mrb[0].mxu0
        %v4641 = vadd.f32 %v4498, %v4640
        %v4642 = vpop.f32.mrb[0].mxu0
        %v4643 = vpop.f32.mrb[0].mxu0
        %v4644 = vadd.f32 %v4499, %v4643
        %v4645 = vpop.f32.mrb[0].mxu0
        %4646 = vmatprep.mubr.bf16.mxu0 0
        %4647 = vmatmul.mubr.bf16.gmra.mrb[0].mxu0 %v4552
        %v4648 = vpop.f32.mrb[0].mxu0
        %v4649 = vadd.f32 %v4500, %v4648
        %v4650 = vpop.f32.mrb[0].mxu0
        %v4651 = vpop.f32.mrb[0].mxu0
        %v4652 = vadd.f32 %v4501, %v4651
        %v4653 = vpop.f32.mrb[0].mxu0
        %4654 = vmatprep.mubr.bf16.mxu0 0
        %4655 = vmatmul.mubr.bf16.gmra.mrb[0].mxu0 %v4555
        %v4656 = vpop.f32.mrb[0].mxu0
        %v4657 = vadd.f32 %v4502, %v4656
        %v4658 = vpop.f32.mrb[0].mxu0
        %v4659 = vpop.f32.mrb[0].mxu0
        %v4660 = vadd.f32 %v4503, %v4659
        %v4661 = vpop.f32.mrb[0].mxu0
        %4662 = vmatprep.mubr.bf16.mxu0 0
        %4663 = vmatmul.mubr.bf16.gmra.mrb[0].mxu0 %v4558
        %v4664 = vpop.f32.mrb[0].mxu0
        %v4665 = vadd.f32 %v4504, %v4664
        %v4666 = vpop.f32.mrb[0].mxu0
        %v4667 = vpop.f32.mrb[0].mxu0
        %v4668 = vadd.f32 %v4505, %v4667
        %v4669 = vpop.f32.mrb[0].mxu0
        %4670 = vmatprep.mubr.bf16.mxu0 0
        %4671 = vmatmul.mubr.bf16.gmra.mrb[0].mxu0 %v4561
        %v4672 = vpop.f32.mrb[0].mxu0
        %v4673 = vadd.f32 %v4506, %v4672
        %v4674 = vpop.f32.mrb[0].mxu0
        %v4675 = vpop.f32.mrb[0].mxu0
        %v4676 = vadd.f32 %v4507, %v4675
        %v4677 = vpop.f32.mrb[0].mxu0
        %4678 = vmatprep.mubr.bf16.mxu0 0
        %4679 = vmatmul.mubr.bf16.gmra.mrb[0].mxu0 %v4564
        %v4680 = vpop.f32.mrb[0].mxu0
        %v4681 = vadd.f32 %v4508, %v4680
        %v4682 = vpop.f32.mrb[0].mxu0
        %v4683 = vpop.f32.mrb[0].mxu0
        %v4684 = vadd.f32 %v4509, %v4683
        %v4685 = vpop.f32.mrb[0].mxu0
        %4686 = vdwg.mxu0
        %4687 = vmax.xlane.f32.xlu0 %v4625
        %v4688 = vpop.xlane.xlu0 %4687
        %4689 = vmax.xlane.f32.xlu0 %v4628
        %v4690 = vpop.xlane.xlu0 %4689
        %4691 = vmax.xlane.f32.xlu0 %v4633
        %v4692 = vpop.xlane.xlu0 %4691
        %4693 = vmax.xlane.f32.xlu0 %v4636
        %v4694 = vpop.xlane.xlu0 %4693
        %4695 = vmax.xlane.f32.xlu0 %v4641
        %v4696 = vpop.xlane.xlu0 %4695
        %4697 = vmax.xlane.f32.xlu0 %v4644
        %v4698 = vpop.xlane.xlu0 %4697
        %4699 = vmax.xlane.f32.xlu0 %v4649
        %v4700 = vpop.xlane.xlu0 %4699
        %4701 = vmax.xlane.f32.xlu0 %v4652
        %v4702 = vpop.xlane.xlu0 %4701
        %4703 = vmax.xlane.f32.xlu0 %v4657
        %v4704 = vpop.xlane.xlu0 %4703
        %4705 = vmax.xlane.f32.xlu0 %v4660
        %v4706 = vpop.xlane.xlu0 %4705
        %4707 = vmax.xlane.f32.xlu0 %v4665
        %v4708 = vpop.xlane.xlu0 %4707
        %4709 = vmax.xlane.f32.xlu0 %v4668
        %v4710 = vpop.xlane.xlu0 %4709
        %4711 = vmax.xlane.f32.xlu0 %v4673
        %v4712 = vpop.xlane.xlu0 %4711
        %4713 = vmax.xlane.f32.xlu0 %v4676
        %v4714 = vpop.xlane.xlu0 %4713
        %4715 = vmax.xlane.f32.xlu0 %v4681
        %v4716 = vpop.xlane.xlu0 %4715
        %4717 = vmax.xlane.f32.xlu0 %v4684
        %v4718 = vpop.xlane.xlu0 %4717
        %v4719 = vsub.f32 %v4625, %v4688
        %v4720 = vsub.f32 %v4628, %v4690
        %v4721 = vsub.f32 %v4633, %v4692
        %v4722 = vsub.f32 %v4636, %v4694
        %v4723 = vsub.f32 %v4641, %v4696
        %v4724 = vsub.f32 %v4644, %v4698
        %v4725 = vsub.f32 %v4649, %v4700
        %v4726 = vsub.f32 %v4652, %v4702
        %v4727 = vsub.f32 %v4657, %v4704
        %v4728 = vsub.f32 %v4660, %v4706
        %v4729 = vsub.f32 %v4665, %v4708
        %v4730 = vsub.f32 %v4668, %v4710
        %v4731 = vsub.f32 %v4673, %v4712
        %v4732 = vsub.f32 %v4676, %v4714
        %v4733 = vsub.f32 %v4681, %v4716
        %v4734 = vsub.f32 %v4684, %v4718
        %v4735 = vmul.f32 %v4719, 1.442695
        %v4736 = vpow.pop %v4735
        %v4737 = vmul.f32 %v4720, 1.442695
        %v4738 = vpow.pop %v4737
        %v4739 = vmul.f32 %v4721, 1.442695
        %v4740 = vpow.pop %v4739
        %v4741 = vmul.f32 %v4722, 1.442695
        %v4742 = vpow.pop %v4741
        %v4743 = vmul.f32 %v4723, 1.442695
        %v4744 = vpow.pop %v4743
        %v4745 = vmul.f32 %v4724, 1.442695
        %v4746 = vpow.pop %v4745
        %v4747 = vmul.f32 %v4725, 1.442695
        %v4748 = vpow.pop %v4747
        %v4749 = vmul.f32 %v4726, 1.442695
        %v4750 = vpow.pop %v4749
        %v4751 = vmul.f32 %v4727, 1.442695
        %v4752 = vpow.pop %v4751
        %v4753 = vmul.f32 %v4728, 1.442695
        %v4754 = vpow.pop %v4753
        %v4755 = vmul.f32 %v4729, 1.442695
        %v4756 = vpow.pop %v4755
        %v4757 = vmul.f32 %v4730, 1.442695
        %v4758 = vpow.pop %v4757
        %v4759 = vmul.f32 %v4731, 1.442695
        %v4760 = vpow.pop %v4759
        %v4761 = vmul.f32 %v4732, 1.442695
        %v4762 = vpow.pop %v4761
        %v4763 = vmul.f32 %v4733, 1.442695
        %v4764 = vpow.pop %v4763
        %v4765 = vmul.f32 %v4734, 1.442695
        %v4766 = vpow.pop %v4765
        %4767 = vadd.xlane.f32.xlu0 %v4736
        %v4768 = vpop.xlane.xlu0 %4767
        %4769 = vadd.xlane.f32.xlu0 %v4738
        %v4770 = vpop.xlane.xlu0 %4769
        %4771 = vadd.xlane.f32.xlu0 %v4740
        %v4772 = vpop.xlane.xlu0 %4771
        %4773 = vadd.xlane.f32.xlu0 %v4742
        %v4774 = vpop.xlane.xlu0 %4773
        %4775 = vadd.xlane.f32.xlu0 %v4744
        %v4776 = vpop.xlane.xlu0 %4775
        %4777 = vadd.xlane.f32.xlu0 %v4746
        %v4778 = vpop.xlane.xlu0 %4777
        %4779 = vadd.xlane.f32.xlu0 %v4748
        %v4780 = vpop.xlane.xlu0 %4779
        %4781 = vadd.xlane.f32.xlu0 %v4750
        %v4782 = vpop.xlane.xlu0 %4781
        %4783 = vadd.xlane.f32.xlu0 %v4752
        %v4784 = vpop.xlane.xlu0 %4783
        %4785 = vadd.xlane.f32.xlu0 %v4754
        %v4786 = vpop.xlane.xlu0 %4785
        %4787 = vadd.xlane.f32.xlu0 %v4756
        %v4788 = vpop.xlane.xlu0 %4787
        %4789 = vadd.xlane.f32.xlu0 %v4758
        %v4790 = vpop.xlane.xlu0 %4789
        %4791 = vadd.xlane.f32.xlu0 %v4760
        %v4792 = vpop.xlane.xlu0 %4791
        %4793 = vadd.xlane.f32.xlu0 %v4762
        %v4794 = vpop.xlane.xlu0 %4793
        %4795 = vadd.xlane.f32.xlu0 %v4764
        %v4796 = vpop.xlane.xlu0 %4795
        %4797 = vadd.xlane.f32.xlu0 %v4766
        %v4798 = vpop.xlane.xlu0 %4797
        %v4799 = vrcp.pop %v4768
        %v4800 = vmul.f32 %v4736, %v4799
        %v4801 = vrcp.pop %v4770
        %v4802 = vmul.f32 %v4738, %v4801
        %v4803 = vrcp.pop %v4772
        %v4804 = vmul.f32 %v4740, %v4803
        %v4805 = vrcp.pop %v4774
        %v4806 = vmul.f32 %v4742, %v4805
        %v4807 = vrcp.pop %v4776
        %v4808 = vmul.f32 %v4744, %v4807
        %v4809 = vrcp.pop %v4778
        %v4810 = vmul.f32 %v4746, %v4809
        %v4811 = vrcp.pop %v4780
        %v4812 = vmul.f32 %v4748, %v4811
        %v4813 = vrcp.pop %v4782
        %v4814 = vmul.f32 %v4750, %v4813
        %v4815 = vrcp.pop %v4784
        %v4816 = vmul.f32 %v4752, %v4815
        %v4817 = vrcp.pop %v4786
        %v4818 = vmul.f32 %v4754, %v4817
        %v4819 = vrcp.pop %v4788
        %v4820 = vmul.f32 %v4756, %v4819
        %v4821 = vrcp.pop %v4790
        %v4822 = vmul.f32 %v4758, %v4821
        %v4823 = vrcp.pop %v4792
        %v4824 = vmul.f32 %v4760, %v4823
        %v4825 = vrcp.pop %v4794
        %v4826 = vmul.f32 %v4762, %v4825
        %v4827 = vrcp.pop %v4796
        %v4828 = vmul.f32 %v4764, %v4827
        %v4829 = vrcp.pop %v4798
        %v4830 = vmul.f32 %v4766, %v4829
        %v4831 = vpack.c.bf16 %v4802, %v4800
        %v4832 = vpack.c.bf16 %v4806, %v4804
        %v4833 = vpack.c.bf16 %v4810, %v4808
        %v4834 = vpack.c.bf16 %v4814, %v4812
        %v4835 = vpack.c.bf16 %v4818, %v4816
        %v4836 = vpack.c.bf16 %v4822, %v4820
        %v4837 = vpack.c.bf16 %v4826, %v4824
        %v4838 = vpack.c.bf16 %v4830, %v4828
        %4839 = vrot.lane.b32.xlu0 %v1064, 16
        %v4840 = vpop.permute.xlu0 %4839
        %4841 = vrot.lane.b32.xlu0 %v1065, 16
        %v4842 = vpop.permute.xlu0 %4841
        %4843 = vrot.lane.b32.xlu0 %v1066, 16
        %v4844 = vpop.permute.xlu0 %4843
        %4845 = vrot.lane.b32.xlu0 %v1067, 16
        %v4846 = vpop.permute.xlu0 %4845
        %4847 = vrot.lane.b32.xlu0 %v1068, 16
        %v4848 = vpop.permute.xlu0 %4847
        %4849 = vrot.lane.b32.xlu0 %v1069, 16
        %v4850 = vpop.permute.xlu0 %4849
        %4851 = vrot.lane.b32.xlu0 %v1070, 16
        %v4852 = vpop.permute.xlu0 %4851
        %4853 = vrot.lane.b32.xlu0 %v1071, 16
        %v4854 = vpop.permute.xlu0 %4853
        %4863 = vmatprep.subr.bf16.mxu0 0
        %4864 = vmatpush1.bf16.msra.mxu0 %v4840
        %4865 = vmatprep.subr.bf16.mxu0 0
        %4866 = vmatpush1.bf16.msra.mxu0 %v4842
        %4867 = vmatprep.subr.bf16.mxu0 0
        %4868 = vmatpush1.bf16.msra.mxu0 %v4844
        %4869 = vmatprep.subr.bf16.mxu0 0
        %4870 = vmatpush1.bf16.msra.mxu0 %v4846
        %4871 = vmatprep.subr.bf16.mxu0 0
        %4872 = vmatpush1.bf16.msra.mxu0 %v4848
        %4873 = vmatprep.subr.bf16.mxu0 0
        %4874 = vmatpush1.bf16.msra.mxu0 %v4850
        %4875 = vmatprep.subr.bf16.mxu0 0
        %4876 = vmatpush1.bf16.msra.mxu0 %v4852
        %4877 = vmatprep.subr.bf16.mxu0 0
        %4878 = vmatpush1.bf16.msra.mxu0 %v4854
        %4879 = vmatprep.subr.bf16.mxu0 0
        %4880 = vmatpush1.bf16.msra.mxu0 0
        %4881 = vmatprep.subr.bf16.mxu0 0
        %4882 = vmatpush1.bf16.msra.mxu0 0
        %4883 = vmatprep.subr.bf16.mxu0 0
        %4884 = vmatpush1.bf16.msra.mxu0 0
        %4885 = vmatprep.subr.bf16.mxu0 0
        %4886 = vmatpush1.bf16.msra.mxu0 0
        %4887 = vmatprep.subr.bf16.mxu0 0
        %4888 = vmatpush1.bf16.msra.mxu0 0
        %4889 = vmatprep.subr.bf16.mxu0 0
        %4890 = vmatpush1.bf16.msra.mxu0 0
        %4891 = vmatprep.subr.bf16.mxu0 0
        %4892 = vmatpush1.bf16.msra.mxu0 0
        %4893 = vmatprep.subr.bf16.mxu0 0
        %4894 = vmatpush1.bf16.msra.mxu0 0
        %4895 = vmatprep.mubr.bf16.mxu0 0
        %4896 = vmatmul.mubr.bf16.gmra.mrb[0].mxu0 %v4831
        %v4897 = vpop.f32.mrb[0].mxu0
        %v4898 = vadd.f32 0.0, %v4897
        %v4899 = vpop.f32.mrb[0].mxu0
        %v4900 = vpop.f32.mrb[0].mxu0
        %v4901 = vadd.f32 0.0, %v4900
        %v4902 = vpop.f32.mrb[0].mxu0
        %4903 = vmatprep.mubr.bf16.mxu0 0
        %4904 = vmatmul.mubr.bf16.gmra.mrb[0].mxu0 %v4832
        %v4905 = vpop.f32.mrb[0].mxu0
        %v4906 = vadd.f32 0.0, %v4905
        %v4907 = vpop.f32.mrb[0].mxu0
        %v4908 = vpop.f32.mrb[0].mxu0
        %v4909 = vadd.f32 0.0, %v4908
        %v4910 = vpop.f32.mrb[0].mxu0
        %4911 = vmatprep.mubr.bf16.mxu0 0
        %4912 = vmatmul.mubr.bf16.gmra.mrb[0].mxu0 %v4833
        %v4913 = vpop.f32.mrb[0].mxu0
        %v4914 = vadd.f32 0.0, %v4913
        %v4915 = vpop.f32.mrb[0].mxu0
        %v4916 = vpop.f32.mrb[0].mxu0
        %v4917 = vadd.f32 0.0, %v4916
        %v4918 = vpop.f32.mrb[0].mxu0
        %4919 = vmatprep.mubr.bf16.mxu0 0
        %4920 = vmatmul.mubr.bf16.gmra.mrb[0].mxu0 %v4834
        %v4921 = vpop.f32.mrb[0].mxu0
        %v4922 = vadd.f32 0.0, %v4921
        %v4923 = vpop.f32.mrb[0].mxu0
        %v4924 = vpop.f32.mrb[0].mxu0
        %v4925 = vadd.f32 0.0, %v4924
        %v4926 = vpop.f32.mrb[0].mxu0
        %4927 = vmatprep.mubr.bf16.mxu0 0
        %4928 = vmatmul.mubr.bf16.gmra.mrb[0].mxu0 %v4835
        %v4929 = vpop.f32.mrb[0].mxu0
        %v4930 = vadd.f32 0.0, %v4929
        %v4931 = vpop.f32.mrb[0].mxu0
        %v4932 = vpop.f32.mrb[0].mxu0
        %v4933 = vadd.f32 0.0, %v4932
        %v4934 = vpop.f32.mrb[0].mxu0
        %4935 = vmatprep.mubr.bf16.mxu0 0
        %4936 = vmatmul.mubr.bf16.gmra.mrb[0].mxu0 %v4836
        %v4937 = vpop.f32.mrb[0].mxu0
        %v4938 = vadd.f32 0.0, %v4937
        %v4939 = vpop.f32.mrb[0].mxu0
        %v4940 = vpop.f32.mrb[0].mxu0
        %v4941 = vadd.f32 0.0, %v4940
        %v4942 = vpop.f32.mrb[0].mxu0
        %4943 = vmatprep.mubr.bf16.mxu0 0
        %4944 = vmatmul.mubr.bf16.gmra.mrb[0].mxu0 %v4837
        %v4945 = vpop.f32.mrb[0].mxu0
        %v4946 = vadd.f32 0.0, %v4945
        %v4947 = vpop.f32.mrb[0].mxu0
        %v4948 = vpop.f32.mrb[0].mxu0
        %v4949 = vadd.f32 0.0, %v4948
        %v4950 = vpop.f32.mrb[0].mxu0
        %4951 = vmatprep.mubr.bf16.mxu0 0
        %4952 = vmatmul.mubr.bf16.gmra.mrb[0].mxu0 %v4838
        %v4953 = vpop.f32.mrb[0].mxu0
        %v4954 = vadd.f32 0.0, %v4953
        %v4955 = vpop.f32.mrb[0].mxu0
        %v4956 = vpop.f32.mrb[0].mxu0
        %v4957 = vadd.f32 0.0, %v4956
        %v4958 = vpop.f32.mrb[0].mxu0
        %4959 = vdwg.mxu0
        %v4960 = vpack.c.bf16 %v4901, %v4898
        %v4961 = vpack.c.bf16 %v4909, %v4906
        %v4962 = vpack.c.bf16 %v4917, %v4914
        %v4963 = vpack.c.bf16 %v4925, %v4922
        %v4964 = vpack.c.bf16 %v4933, %v4930
        %v4965 = vpack.c.bf16 %v4941, %v4938
        %v4966 = vpack.c.bf16 %v4949, %v4946
        %v4967 = vpack.c.bf16 %v4957, %v4954
        %4976 = vrot.lane.b32.xlu0 %v2014, 16
        %v4977 = vpop.permute.xlu0 %4976
        %4978 = vrot.lane.b32.xlu0 %v2015, 16
        %v4979 = vpop.permute.xlu0 %4978
        %4980 = vrot.lane.b32.xlu0 %v2016, 16
        %v4981 = vpop.permute.xlu0 %4980
        %4982 = vrot.lane.b32.xlu0 %v2017, 16
        %v4983 = vpop.permute.xlu0 %4982
        %4984 = vrot.lane.b32.xlu0 %v2018, 16
        %v4985 = vpop.permute.xlu0 %4984
        %4986 = vrot.lane.b32.xlu0 %v2019, 16
        %v4987 = vpop.permute.xlu0 %4986
        %4988 = vrot.lane.b32.xlu0 %v2020, 16
        %v4989 = vpop.permute.xlu0 %4988
        %4990 = vrot.lane.b32.xlu0 %v2021, 16
        %v4991 = vpop.permute.xlu0 %4990
        %5000 = vrot.lane.b32.xlu0 %v2505, 32
        %v5001 = vpop.permute.xlu0 %5000
        %5002 = vrot.lane.b32.xlu0 %v2506, 32
        %v5003 = vpop.permute.xlu0 %5002
        %5004 = vrot.lane.b32.xlu0 %v2507, 32
        %v5005 = vpop.permute.xlu0 %5004
        %5006 = vrot.lane.b32.xlu0 %v2508, 32
        %v5007 = vpop.permute.xlu0 %5006
        %5008 = vrot.lane.b32.xlu0 %v2509, 32
        %v5009 = vpop.permute.xlu0 %5008
        %5010 = vrot.lane.b32.xlu0 %v2510, 32
        %v5011 = vpop.permute.xlu0 %5010
        %5012 = vrot.lane.b32.xlu0 %v2511, 32
        %v5013 = vpop.permute.xlu0 %5012
        %5014 = vrot.lane.b32.xlu0 %v2512, 32
        %v5015 = vpop.permute.xlu0 %5014
        %5024 = vrot.lane.b32.xlu0 %v2996, 48
        %v5025 = vpop.permute.xlu0 %5024
        %5026 = vrot.lane.b32.xlu0 %v2997, 48
        %v5027 = vpop.permute.xlu0 %5026
        %5028 = vrot.lane.b32.xlu0 %v2998, 48
        %v5029 = vpop.permute.xlu0 %5028
        %5030 = vrot.lane.b32.xlu0 %v2999, 48
        %v5031 = vpop.permute.xlu0 %5030
        %5032 = vrot.lane.b32.xlu0 %v3000, 48
        %v5033 = vpop.permute.xlu0 %5032
        %5034 = vrot.lane.b32.xlu0 %v3001, 48
        %v5035 = vpop.permute.xlu0 %5034
        %5036 = vrot.lane.b32.xlu0 %v3002, 48
        %v5037 = vpop.permute.xlu0 %5036
        %5038 = vrot.lane.b32.xlu0 %v3003, 48
        %v5039 = vpop.permute.xlu0 %5038
        %5048 = vrot.lane.b32.xlu0 %v3487, 64
        %v5049 = vpop.permute.xlu0 %5048
        %5050 = vrot.lane.b32.xlu0 %v3488, 64
        %v5051 = vpop.permute.xlu0 %5050
        %5052 = vrot.lane.b32.xlu0 %v3489, 64
        %v5053 = vpop.permute.xlu0 %5052
        %5054 = vrot.lane.b32.xlu0 %v3490, 64
        %v5055 = vpop.permute.xlu0 %5054
        %5056 = vrot.lane.b32.xlu0 %v3491, 64
        %v5057 = vpop.permute.xlu0 %5056
        %5058 = vrot.lane.b32.xlu0 %v3492, 64
        %v5059 = vpop.permute.xlu0 %5058
        %5060 = vrot.lane.b32.xlu0 %v3493, 64
        %v5061 = vpop.permute.xlu0 %5060
        %5062 = vrot.lane.b32.xlu0 %v3494, 64
        %v5063 = vpop.permute.xlu0 %5062
        %5072 = vrot.lane.b32.xlu0 %v3978, 80
        %v5073 = vpop.permute.xlu0 %5072
        %5074 = vrot.lane.b32.xlu0 %v3979, 80
        %v5075 = vpop.permute.xlu0 %5074
        %5076 = vrot.lane.b32.xlu0 %v3980, 80
        %v5077 = vpop.permute.xlu0 %5076
        %5078 = vrot.lane.b32.xlu0 %v3981, 80
        %v5079 = vpop.permute.xlu0 %5078
        %5080 = vrot.lane.b32.xlu0 %v3982, 80
        %v5081 = vpop.permute.xlu0 %5080
        %5082 = vrot.lane.b32.xlu0 %v3983, 80
        %v5083 = vpop.permute.xlu0 %5082
        %5084 = vrot.lane.b32.xlu0 %v3984, 80
        %v5085 = vpop.permute.xlu0 %5084
        %5086 = vrot.lane.b32.xlu0 %v3985, 80
        %v5087 = vpop.permute.xlu0 %5086
        %5096 = vrot.lane.b32.xlu0 %v4469, 96
        %v5097 = vpop.permute.xlu0 %5096
        %5098 = vrot.lane.b32.xlu0 %v4470, 96
        %v5099 = vpop.permute.xlu0 %5098
        %5100 = vrot.lane.b32.xlu0 %v4471, 96
        %v5101 = vpop.permute.xlu0 %5100
        %5102 = vrot.lane.b32.xlu0 %v4472, 96
        %v5103 = vpop.permute.xlu0 %5102
        %5104 = vrot.lane.b32.xlu0 %v4473, 96
        %v5105 = vpop.permute.xlu0 %5104
        %5106 = vrot.lane.b32.xlu0 %v4474, 96
        %v5107 = vpop.permute.xlu0 %5106
        %5108 = vrot.lane.b32.xlu0 %v4475, 96
        %v5109 = vpop.permute.xlu0 %5108
        %5110 = vrot.lane.b32.xlu0 %v4476, 96
        %v5111 = vpop.permute.xlu0 %5110
        %5120 = vrot.lane.b32.xlu0 %v4960, 112
        %v5121 = vpop.permute.xlu0 %5120
        %5122 = vrot.lane.b32.xlu0 %v4961, 112
        %v5123 = vpop.permute.xlu0 %5122
        %5124 = vrot.lane.b32.xlu0 %v4962, 112
        %v5125 = vpop.permute.xlu0 %5124
        %5126 = vrot.lane.b32.xlu0 %v4963, 112
        %v5127 = vpop.permute.xlu0 %5126
        %5128 = vrot.lane.b32.xlu0 %v4964, 112
        %v5129 = vpop.permute.xlu0 %5128
        %5130 = vrot.lane.b32.xlu0 %v4965, 112
        %v5131 = vpop.permute.xlu0 %5130
        %5132 = vrot.lane.b32.xlu0 %v4966, 112
        %v5133 = vpop.permute.xlu0 %5132
        %5134 = vrot.lane.b32.xlu0 %v4967, 112
        %v5135 = vpop.permute.xlu0 %5134
        %v5138 = vsel %vm1104, %v1499, %v4977
        %v5141 = vsel %vm1104, %v1500, %v4979
        %v5144 = vsel %vm1104, %v1501, %v4981
        %v5147 = vsel %vm1104, %v1502, %v4983
        %v5150 = vsel %vm1104, %v1503, %v4985
        %v5153 = vsel %vm1104, %v1504, %v4987
        %v5156 = vsel %vm1104, %v1505, %v4989
        %v5159 = vsel %vm1104, %v1506, %v4991
        %vm5160 = vcmask 261120
        %v5162 = vsel %vm5160, %v5138, %v5001
        %v5164 = vsel %vm5160, %v5141, %v5003
        %v5166 = vsel %vm5160, %v5144, %v5005
        %v5168 = vsel %vm5160, %v5147, %v5007
        %v5170 = vsel %vm5160, %v5150, %v5009
        %v5172 = vsel %vm5160, %v5153, %v5011
        %v5174 = vsel %vm5160, %v5156, %v5013
        %v5176 = vsel %vm5160, %v5159, %v5015
        %vm5177 = vcmask 392192
        %v5179 = vsel %vm5177, %v5162, %v5025
        %v5181 = vsel %vm5177, %v5164, %v5027
        %v5183 = vsel %vm5177, %v5166, %v5029
        %v5185 = vsel %vm5177, %v5168, %v5031
        %v5187 = vsel %vm5177, %v5170, %v5033
        %v5189 = vsel %vm5177, %v5172, %v5035
        %v5191 = vsel %vm5177, %v5174, %v5037
        %v5193 = vsel %vm5177, %v5176, %v5039
        %vm5194 = vcmask 523264
        %v5196 = vsel %vm5194, %v5179, %v5049
        %v5198 = vsel %vm5194, %v5181, %v5051
        %v5200 = vsel %vm5194, %v5183, %v5053
        %v5202 = vsel %vm5194, %v5185, %v5055
        %v5204 = vsel %vm5194, %v5187, %v5057
        %v5206 = vsel %vm5194, %v5189, %v5059
        %v5208 = vsel %vm5194, %v5191, %v5061
        %v5210 = vsel %vm5194, %v5193, %v5063
        %vm5211 = vcmask 654336
        %v5213 = vsel %vm5211, %v5196, %v5073
        %v5215 = vsel %vm5211, %v5198, %v5075
        %v5217 = vsel %vm5211, %v5200, %v5077
        %v5219 = vsel %vm5211, %v5202, %v5079
        %v5221 = vsel %vm5211, %v5204, %v5081
        %v5223 = vsel %vm5211, %v5206, %v5083
        %v5225 = vsel %vm5211, %v5208, %v5085
        %v5227 = vsel %vm5211, %v5210, %v5087
        %vm5228 = vcmask 785408
        %v5230 = vsel %vm5228, %v5213, %v5097
        %v5232 = vsel %vm5228, %v5215, %v5099
        %v5234 = vsel %vm5228, %v5217, %v5101
        %v5236 = vsel %vm5228, %v5219, %v5103
        %v5238 = vsel %vm5228, %v5221, %v5105
        %v5240 = vsel %vm5228, %v5223, %v5107
        %v5242 = vsel %vm5228, %v5225, %v5109
        %v5244 = vsel %vm5228, %v5227, %v5111
        %vm5245 = vcmask 916480
        %v5247 = vsel %vm5245, %v5230, %v5121
        %v5250 = vsel %vm5245, %v5232, %v5123
        %v5253 = vsel %vm5245, %v5234, %v5125
        %v5256 = vsel %vm5245, %v5236, %v5127
        %v5259 = vsel %vm5245, %v5238, %v5129
        %v5262 = vsel %vm5245, %v5240, %v5131
        %v5265 = vsel %vm5245, %v5242, %v5133
        %v5268 = vsel %vm5245, %v5244, %v5135
        %5270 = vst [vmem:[#allocation2] sm:$0xff] %v5247
        %5271 = vst [vmem:[#allocation2 + $0x8] sm:$0xff] %v5250
        %5272 = vst [vmem:[#allocation2 + $0x10] sm:$0xff] %v5253
        %5273 = vst [vmem:[#allocation2 + $0x18] sm:$0xff] %v5256
        %5274 = vst [vmem:[#allocation2 + $0x20] sm:$0xff] %v5259
        %5275 = vst [vmem:[#allocation2 + $0x28] sm:$0xff] %v5262
        %5276 = vst [vmem:[#allocation2 + $0x30] sm:$0xff] %v5265
        %5277 = vst [vmem:[#allocation2 + $0x38] sm:$0xff] %v5268
        %v5278 = vld [vmem:[#allocation2] sm:$0xff]
        %v5279 = vld [vmem:[#allocation2 + $0x8] sm:$0xff]
        %v5280 = vld [vmem:[#allocation2 + $0x10] sm:$0xff]
        %v5281 = vld [vmem:[#allocation2 + $0x18] sm:$0xff]
        %v5282 = vld [vmem:[#allocation2 + $0x20] sm:$0xff]
        %v5283 = vld [vmem:[#allocation2 + $0x28] sm:$0xff]
        %v5284 = vld [vmem:[#allocation2 + $0x30] sm:$0xff]
        %v5285 = vld [vmem:[#allocation2 + $0x38] sm:$0xff]
        %v5286 = vld [vmem:[#allocation12] sm:$0xf]
        %v5287 = vld [vmem:[#allocation12 + $0x4] sm:$0xf]
        %v5288 = vld [vmem:[#allocation12 + $0x8] sm:$0xf]
        %v5289 = vld [vmem:[#allocation12 + $0xc] sm:$0xf]
        %v5290 = vld [vmem:[#allocation12 + $0x10] sm:$0xf]
        %v5291 = vld [vmem:[#allocation12 + $0x14] sm:$0xf]
        %v5292 = vld [vmem:[#allocation12 + $0x18] sm:$0xf]
        %v5293 = vld [vmem:[#allocation12 + $0x1c] sm:$0xf]
        %v5294 = vld [vmem:[#allocation12 + $0x20] sm:$0xf]
        %v5295 = vld [vmem:[#allocation12 + $0x24] sm:$0xf]
        %v5296 = vld [vmem:[#allocation12 + $0x28] sm:$0xf]
        %v5297 = vld [vmem:[#allocation12 + $0x2c] sm:$0xf]
        %v5298 = vld [vmem:[#allocation12 + $0x30] sm:$0xf]
        %v5299 = vld [vmem:[#allocation12 + $0x34] sm:$0xf]
        %v5300 = vld [vmem:[#allocation12 + $0x38] sm:$0xf]
        %v5301 = vld [vmem:[#allocation12 + $0x3c] sm:$0xf]
        %v5302 = vld [vmem:[%s9] sm:$0x1]
        %v5304 = vlaneseq
        %v5305 = vshrl.u32 %v5304, 7
        %v5306 = vsub.s32 0, %v5305
        %v5307 = vrot.slane %v5302, %v5306
        %v5325 = vunpack.c.l.b16 %v5286
        %v5326 = vunpack.c.l.b16 %v5287
        %v5327 = vunpack.c.l.b16 %v5288
        %v5328 = vunpack.c.l.b16 %v5289
        %v5329 = vunpack.c.l.b16 %v5290
        %v5330 = vunpack.c.l.b16 %v5291
        %v5331 = vunpack.c.l.b16 %v5292
        %v5332 = vunpack.c.l.b16 %v5293
        %v5333 = vunpack.c.l.b16 %v5294
        %v5334 = vunpack.c.l.b16 %v5295
        %v5335 = vunpack.c.l.b16 %v5296
        %v5336 = vunpack.c.l.b16 %v5297
        %v5337 = vunpack.c.l.b16 %v5298
        %v5338 = vunpack.c.l.b16 %v5299
        %v5339 = vunpack.c.l.b16 %v5300
        %v5340 = vunpack.c.l.b16 %v5301
        %v5341 = vpack.c.b16 %v5326, %v5325
        %v5342 = vpack.c.b16 %v5328, %v5327
        %v5343 = vpack.c.b16 %v5330, %v5329
        %v5344 = vpack.c.b16 %v5332, %v5331
        %v5345 = vpack.c.b16 %v5334, %v5333
        %v5346 = vpack.c.b16 %v5336, %v5335
        %v5347 = vpack.c.b16 %v5338, %v5337
        %v5348 = vpack.c.b16 %v5340, %v5339
        %5357 = vmatprep.subr.bf16.mxu0 0
        %5358 = vmatpush1.bf16.msra.mxu0 %v5341
        %5359 = vmatprep.subr.bf16.mxu0 0
        %5360 = vmatpush1.bf16.msra.mxu0 %v5342
        %5361 = vmatprep.subr.bf16.mxu0 0
        %5362 = vmatpush1.bf16.msra.mxu0 %v5343
        %5363 = vmatprep.subr.bf16.mxu0 0
        %5364 = vmatpush1.bf16.msra.mxu0 %v5344
        %5365 = vmatprep.subr.bf16.mxu0 0
        %5366 = vmatpush1.bf16.msra.mxu0 %v5345
        %5367 = vmatprep.subr.bf16.mxu0 0
        %5368 = vmatpush1.bf16.msra.mxu0 %v5346
        %5369 = vmatprep.subr.bf16.mxu0 0
        %5370 = vmatpush1.bf16.msra.mxu0 %v5347
        %5371 = vmatprep.subr.bf16.mxu0 0
        %5372 = vmatpush1.bf16.msra.mxu0 %v5348
        %5373 = vmatprep.subr.bf16.mxu0 0
        %5374 = vmatpush1.bf16.msra.mxu0 0
        %5375 = vmatprep.subr.bf16.mxu0 0
        %5376 = vmatpush1.bf16.msra.mxu0 0
        %5377 = vmatprep.subr.bf16.mxu0 0
        %5378 = vmatpush1.bf16.msra.mxu0 0
        %5379 = vmatprep.subr.bf16.mxu0 0
        %5380 = vmatpush1.bf16.msra.mxu0 0
        %5381 = vmatprep.subr.bf16.mxu0 0
        %5382 = vmatpush1.bf16.msra.mxu0 0
        %5383 = vmatprep.subr.bf16.mxu0 0
        %5384 = vmatpush1.bf16.msra.mxu0 0
        %5385 = vmatprep.subr.bf16.mxu0 0
        %5386 = vmatpush1.bf16.msra.mxu0 0
        %5387 = vmatprep.subr.bf16.mxu0 0
        %5388 = vmatpush1.bf16.msra.mxu0 0
        %5389 = vmatprep.mubr.bf16.mxu0 0
        %5390 = vmatmul.mubr.bf16.gmra.mrb[0].mxu0 %v5278
        %v5391 = vpop.f32.mrb[0].mxu0
        %v5392 = vadd.f32 %v5307, %v5391
        %v5393 = vpop.f32.mrb[0].mxu0
        %v5394 = vpop.f32.mrb[0].mxu0
        %v5395 = vadd.f32 %v5307, %v5394
        %v5396 = vpop.f32.mrb[0].mxu0
        %5397 = vmatprep.mubr.bf16.mxu0 0
        %5398 = vmatmul.mubr.bf16.gmra.mrb[0].mxu0 %v5279
        %v5399 = vpop.f32.mrb[0].mxu0
        %v5400 = vadd.f32 %v5307, %v5399
        %v5401 = vpop.f32.mrb[0].mxu0
        %v5402 = vpop.f32.mrb[0].mxu0
        %v5403 = vadd.f32 %v5307, %v5402
        %v5404 = vpop.f32.mrb[0].mxu0
        %5405 = vmatprep.mubr.bf16.mxu0 0
        %5406 = vmatmul.mubr.bf16.gmra.mrb[0].mxu0 %v5280
        %v5407 = vpop.f32.mrb[0].mxu0
        %v5408 = vadd.f32 %v5307, %v5407
        %v5409 = vpop.f32.mrb[0].mxu0
        %v5410 = vpop.f32.mrb[0].mxu0
        %v5411 = vadd.f32 %v5307, %v5410
        %v5412 = vpop.f32.mrb[0].mxu0
        %5413 = vmatprep.mubr.bf16.mxu0 0
        %5414 = vmatmul.mubr.bf16.gmra.mrb[0].mxu0 %v5281
        %v5415 = vpop.f32.mrb[0].mxu0
        %v5416 = vadd.f32 %v5307, %v5415
        %v5417 = vpop.f32.mrb[0].mxu0
        %v5418 = vpop.f32.mrb[0].mxu0
        %v5419 = vadd.f32 %v5307, %v5418
        %v5420 = vpop.f32.mrb[0].mxu0
        %5421 = vmatprep.mubr.bf16.mxu0 0
        %5422 = vmatmul.mubr.bf16.gmra.mrb[0].mxu0 %v5282
        %v5423 = vpop.f32.mrb[0].mxu0
        %v5424 = vadd.f32 %v5307, %v5423
        %v5425 = vpop.f32.mrb[0].mxu0
        %v5426 = vpop.f32.mrb[0].mxu0
        %v5427 = vadd.f32 %v5307, %v5426
        %v5428 = vpop.f32.mrb[0].mxu0
        %5429 = vmatprep.mubr.bf16.mxu0 0
        %5430 = vmatmul.mubr.bf16.gmra.mrb[0].mxu0 %v5283
        %v5431 = vpop.f32.mrb[0].mxu0
        %v5432 = vadd.f32 %v5307, %v5431
        %v5433 = vpop.f32.mrb[0].mxu0
        %v5434 = vpop.f32.mrb[0].mxu0
        %v5435 = vadd.f32 %v5307, %v5434
        %v5436 = vpop.f32.mrb[0].mxu0
        %5437 = vmatprep.mubr.bf16.mxu0 0
        %5438 = vmatmul.mubr.bf16.gmra.mrb[0].mxu0 %v5284
        %v5439 = vpop.f32.mrb[0].mxu0
        %v5440 = vadd.f32 %v5307, %v5439
        %v5441 = vpop.f32.mrb[0].mxu0
        %v5442 = vpop.f32.mrb[0].mxu0
        %v5443 = vadd.f32 %v5307, %v5442
        %v5444 = vpop.f32.mrb[0].mxu0
        %5445 = vmatprep.mubr.bf16.mxu0 0
        %5446 = vmatmul.mubr.bf16.gmra.mrb[0].mxu0 %v5285
        %v5447 = vpop.f32.mrb[0].mxu0
        %v5448 = vadd.f32 %v5307, %v5447
        %v5449 = vpop.f32.mrb[0].mxu0
        %v5450 = vpop.f32.mrb[0].mxu0
        %v5451 = vadd.f32 %v5307, %v5450
        %v5452 = vpop.f32.mrb[0].mxu0
        %5453 = vdwg.mxu0
        %5454 = vst [vmem:[%s476] sm:$0xff] %v5392
        %5455 = vst [vmem:[%s476 + $0x8] sm:$0xff] %v5395
        %5456 = vst [vmem:[%s476 + $0x10] sm:$0xff] %v5400
        %5457 = vst [vmem:[%s476 + $0x18] sm:$0xff] %v5403
        %5458 = vst [vmem:[%s476 + $0x20] sm:$0xff] %v5408
        %5459 = vst [vmem:[%s476 + $0x28] sm:$0xff] %v5411
        %5460 = vst [vmem:[%s476 + $0x30] sm:$0xff] %v5416
        %5461 = vst [vmem:[%s476 + $0x38] sm:$0xff] %v5419
        %5462 = vst [vmem:[%s476 + $0x40] sm:$0xff] %v5424
        %5463 = vst [vmem:[%s476 + $0x48] sm:$0xff] %v5427
        %5464 = vst [vmem:[%s476 + $0x50] sm:$0xff] %v5432
        %5465 = vst [vmem:[%s476 + $0x58] sm:$0xff] %v5435
        %5466 = vst [vmem:[%s476 + $0x60] sm:$0xff] %v5440
        %5467 = vst [vmem:[%s476 + $0x68] sm:$0xff] %v5443
        %5468 = vst [vmem:[%s476 + $0x70] sm:$0xff] %v5448
        %5469 = vst [vmem:[%s476 + $0x78] sm:$0xff] %v5451
        %s5470 = sand.u32 %s260, 1
        %s5471 = scalar_lea.sflag [#allocation5], %s5470
        %s5472 = sand.u32 %s260, 1
        %s5473 = smul.addr %s5472, 128
        %s5474 = scalar_lea.vmem [#allocation14], %s5473
        // Predicated region
        $region85: #{tpu_custom_call.1} parent=59 // pred_check
          %p5475 = pneg %p270
        $region86: #{tpu_custom_call.1} parent=59 // pred_check_branch
          %5477 = sbr.rel (%p5475) target = $region88
        $region87: #{tpu_custom_call.1} parent=59 // pred_region
          %s5478 = smul.u32 8, %s32
          %s5480 = ssub.s32 2048, 2048
          %5481 = vsyncadd %s5471, %s5480
          %s5482 = smul.addr %s5478, 2
          %s5483 = smul.addr %s5482, 128
          %s5484 = scalar_lea.hbm %s10, %s5483
          %s5485 = sshll.u32 %s5474, 4
          %s5486 = int_to_ptr.vmem [resolvable:$true] %s5485
          %5491 = dma.vmem_to_hbm [thread:$0]  %s5486, 2048, %s5484, %s5471, 128, 128, 8
        $region88: #{tpu_custom_call.1} parent=59 // pred_fallthru
          _
      $region60: #{tpu_custom_call.1} parent=5 // pred_fallthru
        _
      %p5492 = scmp.le.s32.totalorder 2, %s27
      // Predicated region
      $region89: #{tpu_custom_call.1} parent=5 // pred_check
        %p5493 = pneg %p5492
      $region90: #{tpu_custom_call.1} parent=5 // pred_check_branch
        %5495 = sbr.rel (%p5493) target = $region92
      $region91: #{tpu_custom_call.1} parent=5 // pred_region
        %s5496 = ssub.s32 %s27, 2
        // Predicated region
        $region93: #{tpu_custom_call.1} parent=91 // pred_check
          %p5497 = pneg %p276
        $region94: #{tpu_custom_call.1} parent=91 // pred_check_branch
          %5499 = sbr.rel (%p5497) target = $region96
        $region95: #{tpu_custom_call.1} parent=91 // pred_region
          %s5500 = sand.u32 %s261, 1
          %s5501 = scalar_lea.sflag [#allocation5], %s5500
          %s5502 = sand.u32 %s261, 1
          %s5503 = smul.addr %s5502, 128
          %s5504 = scalar_lea.vmem [#allocation14], %s5503
          %5505 = dma.done %s5501, 2048
        $region96: #{tpu_custom_call.1} parent=91 // pred_fallthru
          _
      $region92: #{tpu_custom_call.1} parent=5 // pred_fallthru
        _
    $region6: #{tpu_custom_call.1} parent=1 // loop_footer
      %s31 = sadd.s32 1, %s27
    $region7: #{tpu_custom_call.1} parent=1 // loop_footer_branch
      %26 = sbr.rel target = $region3
    $region8: #{tpu_custom_call.1} parent=1 // loop_exit
      _
    %5506 = vsyncpa [#allocation4], 1
    %s5507 = scalar_lea.sflag [#allocation4], 1
    %5508 = vsyncpa %s5507, 1
    %5509 = vsyncpa [#allocation7], 1
    %s5510 = scalar_lea.sflag [#allocation7], 1
    %5511 = vsyncpa %s5510, 1
    %5512 = vsyncpa [#allocation10], 1
    %5513 = vsyncpa [#allocation13], 1
    %5514 = vsyncpa [#allocation5], 1
    %s5515 = scalar_lea.sflag [#allocation5], 1
    %5516 = vsyncpa %s5515, 1

</llo_original>
